<compile_context>
chip_gen: v7x
topology: tpu7x:2x2x1
jax: 0.10.0
libtpu: 0.0.40
codegen_flags: <defaults>
</compile_context>

<pallas_src>
import jax
import jax.numpy as jnp
from jax import lax
from jax.experimental import pallas as pl
from jax.experimental.pallas import tpu as pltpu

EPS = 1e-5  # torch LayerNorm default


def _layernorm(x, g, b):
    mu = jnp.mean(x, axis=-1, keepdims=True)
    var = jnp.mean((x - mu) ** 2, axis=-1, keepdims=True)
    return (x - mu) * lax.rsqrt(var + EPS) * g + b


# ---------------------------------------------------------------------------
# Fused kernel: all L layers + positional add + EOT gather + ln_final + proj
#   grid = (B // TB, L): batch-block "parallel", layer "arbitrary".
# ---------------------------------------------------------------------------
def make_fused_kernel(n_heads, d_model, seq, tb):
    d_head = d_model // n_heads
    scale = 1.0 / float(d_head) ** 0.5
    m_rows = tb * seq

    def kernel(eot_ref,                          # SMEM (B,) int32 (prefetch)
               prom_ref, pos_ref,
               ln1g, ln1b, wqkv, bqkv, wo, bo,
               ln2g, ln2b, wfc, bfc, wpr, bpr,
               lnfg, lnfb, proj_ref,
               out_ref,
               x_scr, qkv_scr, ctx_scr):
        nb = pl.program_id(0)
        l = pl.program_id(1)
        n_l = pl.num_programs(1)

        # Layer 0: residual stream = prompts + positional embedding (fused).
        @pl.when(l == 0)
        def _():
            xin = (prom_ref[...].astype(jnp.float32)
                   + pos_ref[...].astype(jnp.float32))        # (TB, S, D)
            x_scr[...] = xin.reshape(m_rows, d_model)

        x = x_scr[...]                                          # (M, D) f32

        # ---- attention branch --------------------------------------------
        xn = _layernorm(x, ln1g[0], ln1b[0]).astype(jnp.bfloat16)
        qkv_scr[...] = (jnp.dot(xn, wqkv[0],
                                preferred_element_type=jnp.float32)
                        + bqkv[0]).astype(jnp.bfloat16)         # (M, 3D) bf16

        # additive causal bias, built once per layer step (VPU, not per-head)
        rows = lax.broadcasted_iota(jnp.int32, (seq, seq), 0)
        cols = lax.broadcasted_iota(jnp.int32, (seq, seq), 1)
        causal_bias = jnp.where(cols > rows,
                                jnp.float32(-1e9), jnp.float32(0.0))

        for t in range(tb):                                     # static unroll
            r0 = t * seq
            for h in range(n_heads):
                c0 = h * d_head
                qh = qkv_scr[r0:r0 + seq, c0:c0 + d_head]               # bf16
                kh = qkv_scr[r0:r0 + seq,
                             d_model + c0:d_model + c0 + d_head]
                vh = qkv_scr[r0:r0 + seq,
                             2 * d_model + c0:2 * d_model + c0 + d_head]
                s = lax.dot_general(qh, kh, (((1,), (1,)), ((), ())),
                                    preferred_element_type=jnp.float32)
                s = s * scale + causal_bias
                s = s - jnp.max(s, axis=-1, keepdims=True)
                p = jnp.exp(s)
                p = p * pl.reciprocal(jnp.sum(p, axis=-1, keepdims=True),
                                      approx=True)
                ctx = jnp.dot(p.astype(jnp.bfloat16), vh,
                              preferred_element_type=jnp.float32)  # (S, dh)
                ctx_scr[r0:r0 + seq, c0:c0 + d_head] = ctx.astype(jnp.bfloat16)

        # single K=D out-projection over the whole (M, D) ctx slab
        attn = jnp.dot(ctx_scr[...], wo[0],
                       preferred_element_type=jnp.float32) + bo[0]
        x1 = x + attn

        # ---- MLP branch (QuickGELU, as in CLIP) ---------------------------
        xn2 = _layernorm(x1, ln2g[0], ln2b[0]).astype(jnp.bfloat16)
        h1 = jnp.dot(xn2, wfc[0],
                     preferred_element_type=jnp.float32) + bfc[0]
        h1 = h1 * jax.nn.sigmoid(1.702 * h1)                    # f32 EUP
        h2 = jnp.dot(h1.astype(jnp.bfloat16), wpr[0],
                     preferred_element_type=jnp.float32) + bpr[0]
        x2 = x1 + h2

        x_scr[...] = x2                                          # carry layer

        # ---- last layer: EOT gather + ln_final + text_projection ----------
        @pl.when(l == n_l - 1)
        def _():
            eot_rows = []
            for t in range(tb):
                idx = eot_ref[nb * tb + t]                       # SMEM scalar
                eot_rows.append(x_scr[pl.ds(t * seq + idx, 1), :])   # (1, D)
            e = (jnp.concatenate(eot_rows, axis=0)
                 if tb > 1 else eot_rows[0])                     # (TB, D)
            en = _layernorm(e, lnfg[...], lnfb[...])
            out_ref[...] = jnp.dot(en.astype(jnp.bfloat16), proj_ref[...],
                                   preferred_element_type=jnp.float32
                                   ).astype(out_ref.dtype)

    return kernel


def _pick_tb(batch):
    # batch tile: prefer a multiple-of-8 divisor (satisfies (8,128) sublane
    # rule for the (TB, E) output block when TB < B); else take the full
    # batch (block == full dim is always legal).
    for tb in (16, 8):
        if batch % tb == 0:
            return tb
    return batch


# ---------------------------------------------------------------------------
# TextEncoder forward
# ---------------------------------------------------------------------------
def text_encoder_forward(prompts, tokenized_prompts, params):
    B, S, D = prompts.shape
    H = params["n_heads"]
    L = params["wqkv"].shape[0]
    E = params["text_projection"].shape[1]
    TB = _pick_tb(B)
    NB = B // TB

    eot_idx = jnp.argmax(tokenized_prompts, axis=-1).astype(jnp.int32)  # glue

    kern = make_fused_kernel(H, D, S, TB)

    def w_spec(arr):
        nd = arr.ndim
        shp = arr.shape
        return pl.BlockSpec((1,) + shp[1:],
                            lambda nb, l, eot, _nd=nd: (l,) + (0,) * (_nd - 1))

    def const_spec(arr):
        nd = arr.ndim
        return pl.BlockSpec(arr.shape,
                            lambda nb, l, eot, _nd=nd: (0,) * _nd)

    in_specs = [
        pl.BlockSpec((TB, S, D), lambda nb, l, eot: (nb, 0, 0)),   # prompts
        const_spec(params["pos"]),
        w_spec(params["ln1_g"]), w_spec(params["ln1_b"]),
        w_spec(params["wqkv"]), w_spec(params["bqkv"]),
        w_spec(params["wo"]), w_spec(params["bo"]),
        w_spec(params["ln2_g"]), w_spec(params["ln2_b"]),
        w_spec(params["wfc"]), w_spec(params["bfc"]),
        w_spec(params["wpr"]), w_spec(params["bpr"]),
        const_spec(params["lnf_g"]), const_spec(params["lnf_b"]),
        const_spec(params["text_projection"]),
    ]

    return pl.pallas_call(
        kern,
        out_shape=jax.ShapeDtypeStruct((B, E), jnp.float32),
        grid_spec=pltpu.PrefetchScalarGridSpec(
            num_scalar_prefetch=1,
            grid=(NB, L),
            in_specs=in_specs,
            out_specs=pl.BlockSpec((TB, E), lambda nb, l, eot: (nb, 0)),
            scratch_shapes=[
                pltpu.VMEM((TB * S, D), jnp.float32),       # residual stream
                pltpu.VMEM((TB * S, 3 * D), jnp.bfloat16),  # qkv staging
                pltpu.VMEM((TB * S, D), jnp.bfloat16),      # head-context slab
            ],
        ),
        compiler_params=pltpu.CompilerParams(
            dimension_semantics=("parallel", "arbitrary"),
            vmem_limit_bytes=100 * 1024 * 1024,
        ),
    )(eot_idx, prompts, params["pos"],
      params["ln1_g"], params["ln1_b"],
      params["wqkv"], params["bqkv"],
      params["wo"], params["bo"],
      params["ln2_g"], params["ln2_b"],
      params["wfc"], params["bfc"],
      params["wpr"], params["bpr"],
      params["lnf_g"], params["lnf_b"],
      params["text_projection"])


# ---------------------------------------------------------------------------
# Deterministic synthetic parameters (stacked over layers; bf16 matmul weights)
# NOTE: real CLIP checkpoints store nn.Linear weights as (out, in) and apply
# x @ W.T — transpose on load before feeding this kernel.
# ---------------------------------------------------------------------------
def init_params(key, n_layers, d_model, n_heads, seq, embed_dim):
    def nrm(k, shape, dtype=jnp.float32):
        return (0.02 * jax.random.normal(k, shape, jnp.float32)).astype(dtype)

    L, D = n_layers, d_model
    bf16 = jnp.bfloat16
    ks = jax.random.split(key, 16)
    return dict(
        n_heads=n_heads,
        pos=nrm(ks[0], (seq, D)),
        ln1_g=1.0 + nrm(ks[1], (L, 1, D)),
        ln1_b=nrm(ks[2], (L, 1, D)),
        wqkv=nrm(ks[3], (L, D, 3 * D), bf16),
        bqkv=nrm(ks[4], (L, 1, 3 * D)),
        wo=nrm(ks[5], (L, D, D), bf16),
        bo=nrm(ks[6], (L, 1, D)),
        ln2_g=1.0 + nrm(ks[7], (L, 1, D)),
        ln2_b=nrm(ks[8], (L, 1, D)),
        wfc=nrm(ks[9], (L, D, 4 * D), bf16),
        bfc=nrm(ks[10], (L, 1, 4 * D)),
        wpr=nrm(ks[11], (L, 4 * D, D), bf16),
        bpr=nrm(ks[12], (L, 1, D)),
        lnf_g=1.0 + nrm(ks[13], (1, D)),
        lnf_b=nrm(ks[14], (1, D)),
        text_projection=nrm(ks[15], (D, embed_dim), bf16),
    )


if __name__ == "__main__":
    B, S, D, H, L, E = 2, 8, 32, 4, 2, 16

    key = jax.random.PRNGKey(0)
    k_prompts, k_tok, k_params = jax.random.split(key, 3)

    prompts = jax.random.normal(k_prompts, (B, S, D), jnp.float32)
    tokenized_prompts = jax.random.randint(k_tok, (B, S), 0, 1000, jnp.int32)
    params = init_params(k_params, L, D, H, S, E)

    out = text_encoder_forward(prompts, tokenized_prompts, params)
    out = jax.block_until_ready(out)
    assert out.shape == (B, E), out.shape
    print("KERNEL_OK")
</pallas_src>

<mosaic_0001>
module attributes {stable_mosaic.version = 11 : i64} {
  func.func @kernel(%arg0: i32, %arg1: i32, %arg2: memref<2xi32, #tpu.memory_space<smem>>, %arg3: memref<2x8x32xf32, #tpu.memory_space<vmem>>, %arg4: memref<8x32xf32, #tpu.memory_space<vmem>>, %arg5: memref<1x1x32xf32, #tpu.memory_space<vmem>>, %arg6: memref<1x1x32xf32, #tpu.memory_space<vmem>>, %arg7: memref<1x32x96xbf16, #tpu.memory_space<vmem>>, %arg8: memref<1x1x96xf32, #tpu.memory_space<vmem>>, %arg9: memref<1x32x32xbf16, #tpu.memory_space<vmem>>, %arg10: memref<1x1x32xf32, #tpu.memory_space<vmem>>, %arg11: memref<1x1x32xf32, #tpu.memory_space<vmem>>, %arg12: memref<1x1x32xf32, #tpu.memory_space<vmem>>, %arg13: memref<1x32x128xbf16, #tpu.memory_space<vmem>>, %arg14: memref<1x1x128xf32, #tpu.memory_space<vmem>>, %arg15: memref<1x128x32xbf16, #tpu.memory_space<vmem>>, %arg16: memref<1x1x32xf32, #tpu.memory_space<vmem>>, %arg17: memref<1x32xf32, #tpu.memory_space<vmem>>, %arg18: memref<1x32xf32, #tpu.memory_space<vmem>>, %arg19: memref<32x16xbf16, #tpu.memory_space<vmem>>, %arg20: memref<2x16xf32, #tpu.memory_space<vmem>>, %arg21: memref<16x32xf32, #tpu.memory_space<vmem>>, %arg22: memref<16x96xbf16, #tpu.memory_space<vmem>>, %arg23: memref<16x32xbf16, #tpu.memory_space<vmem>>) attributes {dimension_semantics = [#tpu.dimension_semantics<parallel>, #tpu.dimension_semantics<arbitrary>], iteration_bounds = array<i64: 1, 2>, scalar_prefetch = 1 : i64, scratch_operands = 3 : i64, tpu.core_type = #tpu.core_type<tc>, window_params = [{transform_indices = @transform_0, window_bounds = array<i64: 2, 8, 32>}, {pipeline_mode = #tpu.pipeline_mode<synchronous>, transform_indices = @transform_1, window_bounds = array<i64: 8, 32>}, {transform_indices = @transform_2, window_bounds = array<i64: 1, 1, 32>}, {transform_indices = @transform_3, window_bounds = array<i64: 1, 1, 32>}, {transform_indices = @transform_4, window_bounds = array<i64: 1, 32, 96>}, {transform_indices = @transform_5, window_bounds = array<i64: 1, 1, 96>}, {transform_indices = @transform_6, window_bounds = array<i64: 1, 32, 32>}, {transform_indices = @transform_7, window_bounds = array<i64: 1, 1, 32>}, {transform_indices = @transform_8, window_bounds = array<i64: 1, 1, 32>}, {transform_indices = @transform_9, window_bounds = array<i64: 1, 1, 32>}, {transform_indices = @transform_10, window_bounds = array<i64: 1, 32, 128>}, {transform_indices = @transform_11, window_bounds = array<i64: 1, 1, 128>}, {transform_indices = @transform_12, window_bounds = array<i64: 1, 128, 32>}, {transform_indices = @transform_13, window_bounds = array<i64: 1, 1, 32>}, {pipeline_mode = #tpu.pipeline_mode<synchronous>, transform_indices = @transform_14, window_bounds = array<i64: 1, 32>}, {pipeline_mode = #tpu.pipeline_mode<synchronous>, transform_indices = @transform_15, window_bounds = array<i64: 1, 32>}, {pipeline_mode = #tpu.pipeline_mode<synchronous>, transform_indices = @transform_16, window_bounds = array<i64: 32, 16>}, {transform_indices = @transform_17, window_bounds = array<i64: 2, 16>}]} {
    %c0_i32 = arith.constant 0 : i32
    %0 = arith.cmpi eq, %arg1, %c0_i32 : i32
    %1 = arith.extui %0 : i1 to i32
    %c0_i32_0 = arith.constant 0 : i32
    %2 = arith.cmpi ne, %1, %c0_i32_0 : i32
    scf.if %2 {
      %c0_155 = arith.constant 0 : index
      %c0_156 = arith.constant 0 : index
      %c0_157 = arith.constant 0 : index
      %278 = vector.load %arg3[%c0_155, %c0_156, %c0_157] : memref<2x8x32xf32, #tpu.memory_space<vmem>>, vector<2x8x32xf32>
      %c0_158 = arith.constant 0 : index
      %c0_159 = arith.constant 0 : index
      %279 = vector.load %arg4[%c0_158, %c0_159] : memref<8x32xf32, #tpu.memory_space<vmem>>, vector<8x32xf32>
      %280 = vector.shape_cast %279 : vector<8x32xf32> to vector<1x8x32xf32>
      %281 = vector.broadcast %280 : vector<1x8x32xf32> to vector<2x8x32xf32>
      %282 = arith.addf %278, %281 : vector<2x8x32xf32>
      %283 = vector.shape_cast %282 : vector<2x8x32xf32> to vector<16x32xf32>
      %c0_160 = arith.constant 0 : index
      %c0_161 = arith.constant 0 : index
      %284 = vector.load %arg21[%c0_160, %c0_161] : memref<16x32xf32, #tpu.memory_space<vmem>>, vector<16x32xf32>
      tpu.vector_store %arg21[%c0_160, %c0_161], %283 {strides = array<i32>} : memref<16x32xf32, #tpu.memory_space<vmem>>, vector<16x32xf32>,
    } else {
    }
    %c0 = arith.constant 0 : index
    %c0_1 = arith.constant 0 : index
    %3 = vector.load %arg21[%c0, %c0_1] : memref<16x32xf32, #tpu.memory_space<vmem>>, vector<16x32xf32>
    %c0_2 = arith.constant 0 : index
    %c0_3 = arith.constant 0 : index
    %c0_4 = arith.constant 0 : index
    %4 = vector.load %arg5[%c0_2, %c0_3, %c0_4] : memref<1x1x32xf32, #tpu.memory_space<vmem>>, vector<1x1x32xf32>
    %5 = vector.shape_cast %4 : vector<1x1x32xf32> to vector<1x32xf32>
    %c0_5 = arith.constant 0 : index
    %c0_6 = arith.constant 0 : index
    %c0_7 = arith.constant 0 : index
    %6 = vector.load %arg6[%c0_5, %c0_6, %c0_7] : memref<1x1x32xf32, #tpu.memory_space<vmem>>, vector<1x1x32xf32>
    %7 = vector.shape_cast %6 : vector<1x1x32xf32> to vector<1x32xf32>
    %cst = arith.constant dense<0.000000e+00> : vector<16xf32>
    %8 = vector.multi_reduction <add>, %3, %cst [1] : vector<16x32xf32> to vector<16xf32>
    %9 = vector.shape_cast %8 : vector<16xf32> to vector<16x1xf32>
    %cst_8 = arith.constant 3.200000e+01 : f32
    %10 = vector.broadcast %cst_8 : f32 to vector<16x1xf32>
    %11 = arith.divf %9, %10 : vector<16x1xf32>
    %12 = vector.broadcast %11 : vector<16x1xf32> to vector<16x32xf32>
    %13 = arith.subf %3, %12 : vector<16x32xf32>
    %14 = arith.mulf %13, %13 : vector<16x32xf32>
    %cst_9 = arith.constant dense<0.000000e+00> : vector<16xf32>
    %15 = vector.multi_reduction <add>, %14, %cst_9 [1] : vector<16x32xf32> to vector<16xf32>
    %16 = vector.shape_cast %15 : vector<16xf32> to vector<16x1xf32>
    %cst_10 = arith.constant 3.200000e+01 : f32
    %17 = vector.broadcast %cst_10 : f32 to vector<16x1xf32>
    %18 = arith.divf %16, %17 : vector<16x1xf32>
    %19 = vector.broadcast %11 : vector<16x1xf32> to vector<16x32xf32>
    %20 = arith.subf %3, %19 : vector<16x32xf32>
    %cst_11 = arith.constant 9.99999974E-6 : f32
    %21 = vector.broadcast %cst_11 : f32 to vector<16x1xf32>
    %22 = arith.addf %18, %21 : vector<16x1xf32>
    %23 = math.rsqrt %22 : vector<16x1xf32>
    %24 = vector.broadcast %23 : vector<16x1xf32> to vector<16x32xf32>
    %25 = arith.mulf %20, %24 : vector<16x32xf32>
    %26 = vector.broadcast %5 : vector<1x32xf32> to vector<16x32xf32>
    %27 = arith.mulf %25, %26 : vector<16x32xf32>
    %28 = vector.broadcast %7 : vector<1x32xf32> to vector<16x32xf32>
    %29 = arith.addf %27, %28 : vector<16x32xf32>
    %30 = arith.truncf %29 : vector<16x32xf32> to vector<16x32xbf16>
    %c0_12 = arith.constant 0 : index
    %c0_13 = arith.constant 0 : index
    %c0_14 = arith.constant 0 : index
    %31 = vector.load %arg7[%c0_12, %c0_13, %c0_14] : memref<1x32x96xbf16, #tpu.memory_space<vmem>>, vector<1x32x96xbf16>
    %32 = vector.shape_cast %31 : vector<1x32x96xbf16> to vector<32x96xbf16>
    %cst_15 = arith.constant dense<0.000000e+00> : vector<16x96xf32>
    %33 = tpu.matmul %30, %32, %cst_15 {dimension_numbers = #tpu.dot_dimension_numbers<[1], [0], [0], [1], [0, 0, 1, 1], [], []>} : vector<16x32xbf16>, vector<32x96xbf16>, vector<16x96xf32> -> vector<16x96xf32>
    %c0_16 = arith.constant 0 : index
    %c0_17 = arith.constant 0 : index
    %c0_18 = arith.constant 0 : index
    %34 = vector.load %arg8[%c0_16, %c0_17, %c0_18] : memref<1x1x96xf32, #tpu.memory_space<vmem>>, vector<1x1x96xf32>
    %35 = vector.shape_cast %34 : vector<1x1x96xf32> to vector<1x96xf32>
    %36 = vector.broadcast %35 : vector<1x96xf32> to vector<16x96xf32>
    %37 = arith.addf %33, %36 : vector<16x96xf32>
    %38 = arith.truncf %37 : vector<16x96xf32> to vector<16x96xbf16>
    %c0_19 = arith.constant 0 : index
    %c0_20 = arith.constant 0 : index
    %39 = vector.load %arg22[%c0_19, %c0_20] : memref<16x96xbf16, #tpu.memory_space<vmem>>, vector<16x96xbf16>
    tpu.vector_store %arg22[%c0_19, %c0_20], %38 {strides = array<i32>} : memref<16x96xbf16, #tpu.memory_space<vmem>>, vector<16x96xbf16>,
    %40 = tpu.iota {dimensions = array<i32: 0>} : vector<8x8xi32>
    %41 = tpu.iota {dimensions = array<i32: 1>} : vector<8x8xi32>
    %42 = arith.cmpi sgt, %41, %40 : vector<8x8xi32>
    %cst_21 = arith.constant -1.000000e+09 : f32
    %cst_22 = arith.constant 0.000000e+00 : f32
    %43 = vector.broadcast %cst_21 : f32 to vector<8x8xf32>
    %44 = vector.broadcast %cst_22 : f32 to vector<8x8xf32>
    %45 = arith.select %42, %43, %44 : vector<8x8xi1>, vector<8x8xf32>
    %c0_23 = arith.constant 0 : index
    %c0_24 = arith.constant 0 : index
    %46 = vector.load %arg22[%c0_23, %c0_24] : memref<16x96xbf16, #tpu.memory_space<vmem>>, vector<8x8xbf16>
    %c0_25 = arith.constant 0 : index
    %c32 = arith.constant 32 : index
    %47 = vector.load %arg22[%c0_25, %c32] : memref<16x96xbf16, #tpu.memory_space<vmem>>, vector<8x8xbf16>
    %c0_26 = arith.constant 0 : index
    %c64 = arith.constant 64 : index
    %48 = vector.load %arg22[%c0_26, %c64] : memref<16x96xbf16, #tpu.memory_space<vmem>>, vector<8x8xbf16>
    %cst_27 = arith.constant dense<0.000000e+00> : vector<8x8xf32>
    %49 = tpu.matmul %46, %47, %cst_27 {dimension_numbers = #tpu.dot_dimension_numbers<[1], [1], [0], [0], [0, 0, 1, 0], [], []>} : vector<8x8xbf16>, vector<8x8xbf16>, vector<8x8xf32> -> vector<8x8xf32>
    %cst_28 = arith.constant 0.353553385 : f32
    %50 = vector.broadcast %cst_28 : f32 to vector<8x8xf32>
    %51 = arith.mulf %49, %50 : vector<8x8xf32>
    %52 = arith.addf %51, %45 : vector<8x8xf32>
    %cst_29 = arith.constant dense<0xFF800000> : vector<8xf32>
    %53 = vector.multi_reduction <maximumf>, %52, %cst_29 [1] : vector<8x8xf32> to vector<8xf32>
    %54 = vector.shape_cast %53 : vector<8xf32> to vector<8x1xf32>
    %55 = vector.broadcast %54 : vector<8x1xf32> to vector<8x8xf32>
    %56 = arith.subf %52, %55 : vector<8x8xf32>
    %57 = math.exp %56 : vector<8x8xf32>
    %cst_30 = arith.constant dense<0.000000e+00> : vector<8xf32>
    %58 = vector.multi_reduction <add>, %57, %cst_30 [1] : vector<8x8xf32> to vector<8xf32>
    %59 = vector.shape_cast %58 : vector<8xf32> to vector<8x1xf32>
    %60 = tpu.reciprocal %59 {approx = true} : vector<8x1xf32> -> vector<8x1xf32>
    %61 = vector.broadcast %60 : vector<8x1xf32> to vector<8x8xf32>
    %62 = arith.mulf %57, %61 : vector<8x8xf32>
    %63 = arith.truncf %62 : vector<8x8xf32> to vector<8x8xbf16>
    %cst_31 = arith.constant dense<0.000000e+00> : vector<8x8xf32>
    %64 = tpu.matmul %63, %48, %cst_31 {dimension_numbers = #tpu.dot_dimension_numbers<[1], [0], [0], [1], [0, 0, 1, 1], [], []>} : vector<8x8xbf16>, vector<8x8xbf16>, vector<8x8xf32> -> vector<8x8xf32>
    %65 = arith.truncf %64 : vector<8x8xf32> to vector<8x8xbf16>
    %c0_32 = arith.constant 0 : index
    %c0_33 = arith.constant 0 : index
    %66 = vector.load %arg23[%c0_32, %c0_33] : memref<16x32xbf16, #tpu.memory_space<vmem>>, vector<8x8xbf16>
    tpu.vector_store %arg23[%c0_32, %c0_33], %65 {strides = array<i32>} : memref<16x32xbf16, #tpu.memory_space<vmem>>, vector<8x8xbf16>,
    %c0_34 = arith.constant 0 : index
    %c8 = arith.constant 8 : index
    %67 = vector.load %arg22[%c0_34, %c8] : memref<16x96xbf16, #tpu.memory_space<vmem>>, vector<8x8xbf16>
    %c0_35 = arith.constant 0 : index
    %c40 = arith.constant 40 : index
    %68 = vector.load %arg22[%c0_35, %c40] : memref<16x96xbf16, #tpu.memory_space<vmem>>, vector<8x8xbf16>
    %c0_36 = arith.constant 0 : index
    %c72 = arith.constant 72 : index
    %69 = vector.load %arg22[%c0_36, %c72] : memref<16x96xbf16, #tpu.memory_space<vmem>>, vector<8x8xbf16>
    %cst_37 = arith.constant dense<0.000000e+00> : vector<8x8xf32>
    %70 = tpu.matmul %67, %68, %cst_37 {dimension_numbers = #tpu.dot_dimension_numbers<[1], [1], [0], [0], [0, 0, 1, 0], [], []>} : vector<8x8xbf16>, vector<8x8xbf16>, vector<8x8xf32> -> vector<8x8xf32>
    %cst_38 = arith.constant 0.353553385 : f32
    %71 = vector.broadcast %cst_38 : f32 to vector<8x8xf32>
    %72 = arith.mulf %70, %71 : vector<8x8xf32>
    %73 = arith.addf %72, %45 : vector<8x8xf32>
    %cst_39 = arith.constant dense<0xFF800000> : vector<8xf32>
    %74 = vector.multi_reduction <maximumf>, %73, %cst_39 [1] : vector<8x8xf32> to vector<8xf32>
    %75 = vector.shape_cast %74 : vector<8xf32> to vector<8x1xf32>
    %76 = vector.broadcast %75 : vector<8x1xf32> to vector<8x8xf32>
    %77 = arith.subf %73, %76 : vector<8x8xf32>
    %78 = math.exp %77 : vector<8x8xf32>
    %cst_40 = arith.constant dense<0.000000e+00> : vector<8xf32>
    %79 = vector.multi_reduction <add>, %78, %cst_40 [1] : vector<8x8xf32> to vector<8xf32>
    %80 = vector.shape_cast %79 : vector<8xf32> to vector<8x1xf32>
    %81 = tpu.reciprocal %80 {approx = true} : vector<8x1xf32> -> vector<8x1xf32>
    %82 = vector.broadcast %81 : vector<8x1xf32> to vector<8x8xf32>
    %83 = arith.mulf %78, %82 : vector<8x8xf32>
    %84 = arith.truncf %83 : vector<8x8xf32> to vector<8x8xbf16>
    %cst_41 = arith.constant dense<0.000000e+00> : vector<8x8xf32>
    %85 = tpu.matmul %84, %69, %cst_41 {dimension_numbers = #tpu.dot_dimension_numbers<[1], [0], [0], [1], [0, 0, 1, 1], [], []>} : vector<8x8xbf16>, vector<8x8xbf16>, vector<8x8xf32> -> vector<8x8xf32>
    %86 = arith.truncf %85 : vector<8x8xf32> to vector<8x8xbf16>
    %c0_42 = arith.constant 0 : index
    %c8_43 = arith.constant 8 : index
    %87 = vector.load %arg23[%c0_42, %c8_43] : memref<16x32xbf16, #tpu.memory_space<vmem>>, vector<8x8xbf16>
    tpu.vector_store %arg23[%c0_42, %c8_43], %86 {strides = array<i32>} : memref<16x32xbf16, #tpu.memory_space<vmem>>, vector<8x8xbf16>,
    %c0_44 = arith.constant 0 : index
    %c16 = arith.constant 16 : index
    %88 = vector.load %arg22[%c0_44, %c16] : memref<16x96xbf16, #tpu.memory_space<vmem>>, vector<8x8xbf16>
    %c0_45 = arith.constant 0 : index
    %c48 = arith.constant 48 : index
    %89 = vector.load %arg22[%c0_45, %c48] : memref<16x96xbf16, #tpu.memory_space<vmem>>, vector<8x8xbf16>
    %c0_46 = arith.constant 0 : index
    %c80 = arith.constant 80 : index
    %90 = vector.load %arg22[%c0_46, %c80] : memref<16x96xbf16, #tpu.memory_space<vmem>>, vector<8x8xbf16>
    %cst_47 = arith.constant dense<0.000000e+00> : vector<8x8xf32>
    %91 = tpu.matmul %88, %89, %cst_47 {dimension_numbers = #tpu.dot_dimension_numbers<[1], [1], [0], [0], [0, 0, 1, 0], [], []>} : vector<8x8xbf16>, vector<8x8xbf16>, vector<8x8xf32> -> vector<8x8xf32>
    %cst_48 = arith.constant 0.353553385 : f32
    %92 = vector.broadcast %cst_48 : f32 to vector<8x8xf32>
    %93 = arith.mulf %91, %92 : vector<8x8xf32>
    %94 = arith.addf %93, %45 : vector<8x8xf32>
    %cst_49 = arith.constant dense<0xFF800000> : vector<8xf32>
    %95 = vector.multi_reduction <maximumf>, %94, %cst_49 [1] : vector<8x8xf32> to vector<8xf32>
    %96 = vector.shape_cast %95 : vector<8xf32> to vector<8x1xf32>
    %97 = vector.broadcast %96 : vector<8x1xf32> to vector<8x8xf32>
    %98 = arith.subf %94, %97 : vector<8x8xf32>
    %99 = math.exp %98 : vector<8x8xf32>
    %cst_50 = arith.constant dense<0.000000e+00> : vector<8xf32>
    %100 = vector.multi_reduction <add>, %99, %cst_50 [1] : vector<8x8xf32> to vector<8xf32>
    %101 = vector.shape_cast %100 : vector<8xf32> to vector<8x1xf32>
    %102 = tpu.reciprocal %101 {approx = true} : vector<8x1xf32> -> vector<8x1xf32>
    %103 = vector.broadcast %102 : vector<8x1xf32> to vector<8x8xf32>
    %104 = arith.mulf %99, %103 : vector<8x8xf32>
    %105 = arith.truncf %104 : vector<8x8xf32> to vector<8x8xbf16>
    %cst_51 = arith.constant dense<0.000000e+00> : vector<8x8xf32>
    %106 = tpu.matmul %105, %90, %cst_51 {dimension_numbers = #tpu.dot_dimension_numbers<[1], [0], [0], [1], [0, 0, 1, 1], [], []>} : vector<8x8xbf16>, vector<8x8xbf16>, vector<8x8xf32> -> vector<8x8xf32>
    %107 = arith.truncf %106 : vector<8x8xf32> to vector<8x8xbf16>
    %c0_52 = arith.constant 0 : index
    %c16_53 = arith.constant 16 : index
    %108 = vector.load %arg23[%c0_52, %c16_53] : memref<16x32xbf16, #tpu.memory_space<vmem>>, vector<8x8xbf16>
    tpu.vector_store %arg23[%c0_52, %c16_53], %107 {strides = array<i32>} : memref<16x32xbf16, #tpu.memory_space<vmem>>, vector<8x8xbf16>,
    %c0_54 = arith.constant 0 : index
    %c24 = arith.constant 24 : index
    %109 = vector.load %arg22[%c0_54, %c24] : memref<16x96xbf16, #tpu.memory_space<vmem>>, vector<8x8xbf16>
    %c0_55 = arith.constant 0 : index
    %c56 = arith.constant 56 : index
    %110 = vector.load %arg22[%c0_55, %c56] : memref<16x96xbf16, #tpu.memory_space<vmem>>, vector<8x8xbf16>
    %c0_56 = arith.constant 0 : index
    %c88 = arith.constant 88 : index
    %111 = vector.load %arg22[%c0_56, %c88] : memref<16x96xbf16, #tpu.memory_space<vmem>>, vector<8x8xbf16>
    %cst_57 = arith.constant dense<0.000000e+00> : vector<8x8xf32>
    %112 = tpu.matmul %109, %110, %cst_57 {dimension_numbers = #tpu.dot_dimension_numbers<[1], [1], [0], [0], [0, 0, 1, 0], [], []>} : vector<8x8xbf16>, vector<8x8xbf16>, vector<8x8xf32> -> vector<8x8xf32>
    %cst_58 = arith.constant 0.353553385 : f32
    %113 = vector.broadcast %cst_58 : f32 to vector<8x8xf32>
    %114 = arith.mulf %112, %113 : vector<8x8xf32>
    %115 = arith.addf %114, %45 : vector<8x8xf32>
    %cst_59 = arith.constant dense<0xFF800000> : vector<8xf32>
    %116 = vector.multi_reduction <maximumf>, %115, %cst_59 [1] : vector<8x8xf32> to vector<8xf32>
    %117 = vector.shape_cast %116 : vector<8xf32> to vector<8x1xf32>
    %118 = vector.broadcast %117 : vector<8x1xf32> to vector<8x8xf32>
    %119 = arith.subf %115, %118 : vector<8x8xf32>
    %120 = math.exp %119 : vector<8x8xf32>
    %cst_60 = arith.constant dense<0.000000e+00> : vector<8xf32>
    %121 = vector.multi_reduction <add>, %120, %cst_60 [1] : vector<8x8xf32> to vector<8xf32>
    %122 = vector.shape_cast %121 : vector<8xf32> to vector<8x1xf32>
    %123 = tpu.reciprocal %122 {approx = true} : vector<8x1xf32> -> vector<8x1xf32>
    %124 = vector.broadcast %123 : vector<8x1xf32> to vector<8x8xf32>
    %125 = arith.mulf %120, %124 : vector<8x8xf32>
    %126 = arith.truncf %125 : vector<8x8xf32> to vector<8x8xbf16>
    %cst_61 = arith.constant dense<0.000000e+00> : vector<8x8xf32>
    %127 = tpu.matmul %126, %111, %cst_61 {dimension_numbers = #tpu.dot_dimension_numbers<[1], [0], [0], [1], [0, 0, 1, 1], [], []>} : vector<8x8xbf16>, vector<8x8xbf16>, vector<8x8xf32> -> vector<8x8xf32>
    %128 = arith.truncf %127 : vector<8x8xf32> to vector<8x8xbf16>
    %c0_62 = arith.constant 0 : index
    %c24_63 = arith.constant 24 : index
    %129 = vector.load %arg23[%c0_62, %c24_63] : memref<16x32xbf16, #tpu.memory_space<vmem>>, vector<8x8xbf16>
    tpu.vector_store %arg23[%c0_62, %c24_63], %128 {strides = array<i32>} : memref<16x32xbf16, #tpu.memory_space<vmem>>, vector<8x8xbf16>,
    %c8_64 = arith.constant 8 : index
    %c0_65 = arith.constant 0 : index
    %130 = vector.load %arg22[%c8_64, %c0_65] : memref<16x96xbf16, #tpu.memory_space<vmem>>, vector<8x8xbf16>
    %c8_66 = arith.constant 8 : index
    %c32_67 = arith.constant 32 : index
    %131 = vector.load %arg22[%c8_66, %c32_67] : memref<16x96xbf16, #tpu.memory_space<vmem>>, vector<8x8xbf16>
    %c8_68 = arith.constant 8 : index
    %c64_69 = arith.constant 64 : index
    %132 = vector.load %arg22[%c8_68, %c64_69] : memref<16x96xbf16, #tpu.memory_space<vmem>>, vector<8x8xbf16>
    %cst_70 = arith.constant dense<0.000000e+00> : vector<8x8xf32>
    %133 = tpu.matmul %130, %131, %cst_70 {dimension_numbers = #tpu.dot_dimension_numbers<[1], [1], [0], [0], [0, 0, 1, 0], [], []>} : vector<8x8xbf16>, vector<8x8xbf16>, vector<8x8xf32> -> vector<8x8xf32>
    %cst_71 = arith.constant 0.353553385 : f32
    %134 = vector.broadcast %cst_71 : f32 to vector<8x8xf32>
    %135 = arith.mulf %133, %134 : vector<8x8xf32>
    %136 = arith.addf %135, %45 : vector<8x8xf32>
    %cst_72 = arith.constant dense<0xFF800000> : vector<8xf32>
    %137 = vector.multi_reduction <maximumf>, %136, %cst_72 [1] : vector<8x8xf32> to vector<8xf32>
    %138 = vector.shape_cast %137 : vector<8xf32> to vector<8x1xf32>
    %139 = vector.broadcast %138 : vector<8x1xf32> to vector<8x8xf32>
    %140 = arith.subf %136, %139 : vector<8x8xf32>
    %141 = math.exp %140 : vector<8x8xf32>
    %cst_73 = arith.constant dense<0.000000e+00> : vector<8xf32>
    %142 = vector.multi_reduction <add>, %141, %cst_73 [1] : vector<8x8xf32> to vector<8xf32>
    %143 = vector.shape_cast %142 : vector<8xf32> to vector<8x1xf32>
    %144 = tpu.reciprocal %143 {approx = true} : vector<8x1xf32> -> vector<8x1xf32>
    %145 = vector.broadcast %144 : vector<8x1xf32> to vector<8x8xf32>
    %146 = arith.mulf %141, %145 : vector<8x8xf32>
    %147 = arith.truncf %146 : vector<8x8xf32> to vector<8x8xbf16>
    %cst_74 = arith.constant dense<0.000000e+00> : vector<8x8xf32>
    %148 = tpu.matmul %147, %132, %cst_74 {dimension_numbers = #tpu.dot_dimension_numbers<[1], [0], [0], [1], [0, 0, 1, 1], [], []>} : vector<8x8xbf16>, vector<8x8xbf16>, vector<8x8xf32> -> vector<8x8xf32>
    %149 = arith.truncf %148 : vector<8x8xf32> to vector<8x8xbf16>
    %c8_75 = arith.constant 8 : index
    %c0_76 = arith.constant 0 : index
    %150 = vector.load %arg23[%c8_75, %c0_76] : memref<16x32xbf16, #tpu.memory_space<vmem>>, vector<8x8xbf16>
    tpu.vector_store %arg23[%c8_75, %c0_76], %149 {strides = array<i32>} : memref<16x32xbf16, #tpu.memory_space<vmem>>, vector<8x8xbf16>,
    %c8_77 = arith.constant 8 : index
    %c8_78 = arith.constant 8 : index
    %151 = vector.load %arg22[%c8_77, %c8_78] : memref<16x96xbf16, #tpu.memory_space<vmem>>, vector<8x8xbf16>
    %c8_79 = arith.constant 8 : index
    %c40_80 = arith.constant 40 : index
    %152 = vector.load %arg22[%c8_79, %c40_80] : memref<16x96xbf16, #tpu.memory_space<vmem>>, vector<8x8xbf16>
    %c8_81 = arith.constant 8 : index
    %c72_82 = arith.constant 72 : index
    %153 = vector.load %arg22[%c8_81, %c72_82] : memref<16x96xbf16, #tpu.memory_space<vmem>>, vector<8x8xbf16>
    %cst_83 = arith.constant dense<0.000000e+00> : vector<8x8xf32>
    %154 = tpu.matmul %151, %152, %cst_83 {dimension_numbers = #tpu.dot_dimension_numbers<[1], [1], [0], [0], [0, 0, 1, 0], [], []>} : vector<8x8xbf16>, vector<8x8xbf16>, vector<8x8xf32> -> vector<8x8xf32>
    %cst_84 = arith.constant 0.353553385 : f32
    %155 = vector.broadcast %cst_84 : f32 to vector<8x8xf32>
    %156 = arith.mulf %154, %155 : vector<8x8xf32>
    %157 = arith.addf %156, %45 : vector<8x8xf32>
    %cst_85 = arith.constant dense<0xFF800000> : vector<8xf32>
    %158 = vector.multi_reduction <maximumf>, %157, %cst_85 [1] : vector<8x8xf32> to vector<8xf32>
    %159 = vector.shape_cast %158 : vector<8xf32> to vector<8x1xf32>
    %160 = vector.broadcast %159 : vector<8x1xf32> to vector<8x8xf32>
    %161 = arith.subf %157, %160 : vector<8x8xf32>
    %162 = math.exp %161 : vector<8x8xf32>
    %cst_86 = arith.constant dense<0.000000e+00> : vector<8xf32>
    %163 = vector.multi_reduction <add>, %162, %cst_86 [1] : vector<8x8xf32> to vector<8xf32>
    %164 = vector.shape_cast %163 : vector<8xf32> to vector<8x1xf32>
    %165 = tpu.reciprocal %164 {approx = true} : vector<8x1xf32> -> vector<8x1xf32>
    %166 = vector.broadcast %165 : vector<8x1xf32> to vector<8x8xf32>
    %167 = arith.mulf %162, %166 : vector<8x8xf32>
    %168 = arith.truncf %167 : vector<8x8xf32> to vector<8x8xbf16>
    %cst_87 = arith.constant dense<0.000000e+00> : vector<8x8xf32>
    %169 = tpu.matmul %168, %153, %cst_87 {dimension_numbers = #tpu.dot_dimension_numbers<[1], [0], [0], [1], [0, 0, 1, 1], [], []>} : vector<8x8xbf16>, vector<8x8xbf16>, vector<8x8xf32> -> vector<8x8xf32>
    %170 = arith.truncf %169 : vector<8x8xf32> to vector<8x8xbf16>
    %c8_88 = arith.constant 8 : index
    %c8_89 = arith.constant 8 : index
    %171 = vector.load %arg23[%c8_88, %c8_89] : memref<16x32xbf16, #tpu.memory_space<vmem>>, vector<8x8xbf16>
    tpu.vector_store %arg23[%c8_88, %c8_89], %170 {strides = array<i32>} : memref<16x32xbf16, #tpu.memory_space<vmem>>, vector<8x8xbf16>,
    %c8_90 = arith.constant 8 : index
    %c16_91 = arith.constant 16 : index
    %172 = vector.load %arg22[%c8_90, %c16_91] : memref<16x96xbf16, #tpu.memory_space<vmem>>, vector<8x8xbf16>
    %c8_92 = arith.constant 8 : index
    %c48_93 = arith.constant 48 : index
    %173 = vector.load %arg22[%c8_92, %c48_93] : memref<16x96xbf16, #tpu.memory_space<vmem>>, vector<8x8xbf16>
    %c8_94 = arith.constant 8 : index
    %c80_95 = arith.constant 80 : index
    %174 = vector.load %arg22[%c8_94, %c80_95] : memref<16x96xbf16, #tpu.memory_space<vmem>>, vector<8x8xbf16>
    %cst_96 = arith.constant dense<0.000000e+00> : vector<8x8xf32>
    %175 = tpu.matmul %172, %173, %cst_96 {dimension_numbers = #tpu.dot_dimension_numbers<[1], [1], [0], [0], [0, 0, 1, 0], [], []>} : vector<8x8xbf16>, vector<8x8xbf16>, vector<8x8xf32> -> vector<8x8xf32>
    %cst_97 = arith.constant 0.353553385 : f32
    %176 = vector.broadcast %cst_97 : f32 to vector<8x8xf32>
    %177 = arith.mulf %175, %176 : vector<8x8xf32>
    %178 = arith.addf %177, %45 : vector<8x8xf32>
    %cst_98 = arith.constant dense<0xFF800000> : vector<8xf32>
    %179 = vector.multi_reduction <maximumf>, %178, %cst_98 [1] : vector<8x8xf32> to vector<8xf32>
    %180 = vector.shape_cast %179 : vector<8xf32> to vector<8x1xf32>
    %181 = vector.broadcast %180 : vector<8x1xf32> to vector<8x8xf32>
    %182 = arith.subf %178, %181 : vector<8x8xf32>
    %183 = math.exp %182 : vector<8x8xf32>
    %cst_99 = arith.constant dense<0.000000e+00> : vector<8xf32>
    %184 = vector.multi_reduction <add>, %183, %cst_99 [1] : vector<8x8xf32> to vector<8xf32>
    %185 = vector.shape_cast %184 : vector<8xf32> to vector<8x1xf32>
    %186 = tpu.reciprocal %185 {approx = true} : vector<8x1xf32> -> vector<8x1xf32>
    %187 = vector.broadcast %186 : vector<8x1xf32> to vector<8x8xf32>
    %188 = arith.mulf %183, %187 : vector<8x8xf32>
    %189 = arith.truncf %188 : vector<8x8xf32> to vector<8x8xbf16>
    %cst_100 = arith.constant dense<0.000000e+00> : vector<8x8xf32>
    %190 = tpu.matmul %189, %174, %cst_100 {dimension_numbers = #tpu.dot_dimension_numbers<[1], [0], [0], [1], [0, 0, 1, 1], [], []>} : vector<8x8xbf16>, vector<8x8xbf16>, vector<8x8xf32> -> vector<8x8xf32>
    %191 = arith.truncf %190 : vector<8x8xf32> to vector<8x8xbf16>
    %c8_101 = arith.constant 8 : index
    %c16_102 = arith.constant 16 : index
    %192 = vector.load %arg23[%c8_101, %c16_102] : memref<16x32xbf16, #tpu.memory_space<vmem>>, vector<8x8xbf16>
    tpu.vector_store %arg23[%c8_101, %c16_102], %191 {strides = array<i32>} : memref<16x32xbf16, #tpu.memory_space<vmem>>, vector<8x8xbf16>,
    %c8_103 = arith.constant 8 : index
    %c24_104 = arith.constant 24 : index
    %193 = vector.load %arg22[%c8_103, %c24_104] : memref<16x96xbf16, #tpu.memory_space<vmem>>, vector<8x8xbf16>
    %c8_105 = arith.constant 8 : index
    %c56_106 = arith.constant 56 : index
    %194 = vector.load %arg22[%c8_105, %c56_106] : memref<16x96xbf16, #tpu.memory_space<vmem>>, vector<8x8xbf16>
    %c8_107 = arith.constant 8 : index
    %c88_108 = arith.constant 88 : index
    %195 = vector.load %arg22[%c8_107, %c88_108] : memref<16x96xbf16, #tpu.memory_space<vmem>>, vector<8x8xbf16>
    %cst_109 = arith.constant dense<0.000000e+00> : vector<8x8xf32>
    %196 = tpu.matmul %193, %194, %cst_109 {dimension_numbers = #tpu.dot_dimension_numbers<[1], [1], [0], [0], [0, 0, 1, 0], [], []>} : vector<8x8xbf16>, vector<8x8xbf16>, vector<8x8xf32> -> vector<8x8xf32>
    %cst_110 = arith.constant 0.353553385 : f32
    %197 = vector.broadcast %cst_110 : f32 to vector<8x8xf32>
    %198 = arith.mulf %196, %197 : vector<8x8xf32>
    %199 = arith.addf %198, %45 : vector<8x8xf32>
    %cst_111 = arith.constant dense<0xFF800000> : vector<8xf32>
    %200 = vector.multi_reduction <maximumf>, %199, %cst_111 [1] : vector<8x8xf32> to vector<8xf32>
    %201 = vector.shape_cast %200 : vector<8xf32> to vector<8x1xf32>
    %202 = vector.broadcast %201 : vector<8x1xf32> to vector<8x8xf32>
    %203 = arith.subf %199, %202 : vector<8x8xf32>
    %204 = math.exp %203 : vector<8x8xf32>
    %cst_112 = arith.constant dense<0.000000e+00> : vector<8xf32>
    %205 = vector.multi_reduction <add>, %204, %cst_112 [1] : vector<8x8xf32> to vector<8xf32>
    %206 = vector.shape_cast %205 : vector<8xf32> to vector<8x1xf32>
    %207 = tpu.reciprocal %206 {approx = true} : vector<8x1xf32> -> vector<8x1xf32>
    %208 = vector.broadcast %207 : vector<8x1xf32> to vector<8x8xf32>
    %209 = arith.mulf %204, %208 : vector<8x8xf32>
    %210 = arith.truncf %209 : vector<8x8xf32> to vector<8x8xbf16>
    %cst_113 = arith.constant dense<0.000000e+00> : vector<8x8xf32>
    %211 = tpu.matmul %210, %195, %cst_113 {dimension_numbers = #tpu.dot_dimension_numbers<[1], [0], [0], [1], [0, 0, 1, 1], [], []>} : vector<8x8xbf16>, vector<8x8xbf16>, vector<8x8xf32> -> vector<8x8xf32>
    %212 = arith.truncf %211 : vector<8x8xf32> to vector<8x8xbf16>
    %c8_114 = arith.constant 8 : index
    %c24_115 = arith.constant 24 : index
    %213 = vector.load %arg23[%c8_114, %c24_115] : memref<16x32xbf16, #tpu.memory_space<vmem>>, vector<8x8xbf16>
    tpu.vector_store %arg23[%c8_114, %c24_115], %212 {strides = array<i32>} : memref<16x32xbf16, #tpu.memory_space<vmem>>, vector<8x8xbf16>,
    %c0_116 = arith.constant 0 : index
    %c0_117 = arith.constant 0 : index
    %214 = vector.load %arg23[%c0_116, %c0_117] : memref<16x32xbf16, #tpu.memory_space<vmem>>, vector<16x32xbf16>
    %c0_118 = arith.constant 0 : index
    %c0_119 = arith.constant 0 : index
    %c0_120 = arith.constant 0 : index
    %215 = vector.load %arg9[%c0_118, %c0_119, %c0_120] : memref<1x32x32xbf16, #tpu.memory_space<vmem>>, vector<1x32x32xbf16>
    %216 = vector.shape_cast %215 : vector<1x32x32xbf16> to vector<32x32xbf16>
    %cst_121 = arith.constant dense<0.000000e+00> : vector<16x32xf32>
    %217 = tpu.matmul %214, %216, %cst_121 {dimension_numbers = #tpu.dot_dimension_numbers<[1], [0], [0], [1], [0, 0, 1, 1], [], []>} : vector<16x32xbf16>, vector<32x32xbf16>, vector<16x32xf32> -> vector<16x32xf32>
    %c0_122 = arith.constant 0 : index
    %c0_123 = arith.constant 0 : index
    %c0_124 = arith.constant 0 : index
    %218 = vector.load %arg10[%c0_122, %c0_123, %c0_124] : memref<1x1x32xf32, #tpu.memory_space<vmem>>, vector<1x1x32xf32>
    %219 = vector.shape_cast %218 : vector<1x1x32xf32> to vector<1x32xf32>
    %220 = vector.broadcast %219 : vector<1x32xf32> to vector<16x32xf32>
    %221 = arith.addf %217, %220 : vector<16x32xf32>
    %222 = arith.addf %3, %221 : vector<16x32xf32>
    %c0_125 = arith.constant 0 : index
    %c0_126 = arith.constant 0 : index
    %c0_127 = arith.constant 0 : index
    %223 = vector.load %arg11[%c0_125, %c0_126, %c0_127] : memref<1x1x32xf32, #tpu.memory_space<vmem>>, vector<1x1x32xf32>
    %224 = vector.shape_cast %223 : vector<1x1x32xf32> to vector<1x32xf32>
    %c0_128 = arith.constant 0 : index
    %c0_129 = arith.constant 0 : index
    %c0_130 = arith.constant 0 : index
    %225 = vector.load %arg12[%c0_128, %c0_129, %c0_130] : memref<1x1x32xf32, #tpu.memory_space<vmem>>, vector<1x1x32xf32>
    %226 = vector.shape_cast %225 : vector<1x1x32xf32> to vector<1x32xf32>
    %cst_131 = arith.constant dense<0.000000e+00> : vector<16xf32>
    %227 = vector.multi_reduction <add>, %222, %cst_131 [1] : vector<16x32xf32> to vector<16xf32>
    %228 = vector.shape_cast %227 : vector<16xf32> to vector<16x1xf32>
    %cst_132 = arith.constant 3.200000e+01 : f32
    %229 = vector.broadcast %cst_132 : f32 to vector<16x1xf32>
    %230 = arith.divf %228, %229 : vector<16x1xf32>
    %231 = vector.broadcast %230 : vector<16x1xf32> to vector<16x32xf32>
    %232 = arith.subf %222, %231 : vector<16x32xf32>
    %233 = arith.mulf %232, %232 : vector<16x32xf32>
    %cst_133 = arith.constant dense<0.000000e+00> : vector<16xf32>
    %234 = vector.multi_reduction <add>, %233, %cst_133 [1] : vector<16x32xf32> to vector<16xf32>
    %235 = vector.shape_cast %234 : vector<16xf32> to vector<16x1xf32>
    %cst_134 = arith.constant 3.200000e+01 : f32
    %236 = vector.broadcast %cst_134 : f32 to vector<16x1xf32>
    %237 = arith.divf %235, %236 : vector<16x1xf32>
    %238 = vector.broadcast %230 : vector<16x1xf32> to vector<16x32xf32>
    %239 = arith.subf %222, %238 : vector<16x32xf32>
    %cst_135 = arith.constant 9.99999974E-6 : f32
    %240 = vector.broadcast %cst_135 : f32 to vector<16x1xf32>
    %241 = arith.addf %237, %240 : vector<16x1xf32>
    %242 = math.rsqrt %241 : vector<16x1xf32>
    %243 = vector.broadcast %242 : vector<16x1xf32> to vector<16x32xf32>
    %244 = arith.mulf %239, %243 : vector<16x32xf32>
    %245 = vector.broadcast %224 : vector<1x32xf32> to vector<16x32xf32>
    %246 = arith.mulf %244, %245 : vector<16x32xf32>
    %247 = vector.broadcast %226 : vector<1x32xf32> to vector<16x32xf32>
    %248 = arith.addf %246, %247 : vector<16x32xf32>
    %249 = arith.truncf %248 : vector<16x32xf32> to vector<16x32xbf16>
    %c0_136 = arith.constant 0 : index
    %c0_137 = arith.constant 0 : index
    %c0_138 = arith.constant 0 : index
    %250 = vector.load %arg13[%c0_136, %c0_137, %c0_138] : memref<1x32x128xbf16, #tpu.memory_space<vmem>>, vector<1x32x128xbf16>
    %251 = vector.shape_cast %250 : vector<1x32x128xbf16> to vector<32x128xbf16>
    %cst_139 = arith.constant dense<0.000000e+00> : vector<16x128xf32>
    %252 = tpu.matmul %249, %251, %cst_139 {dimension_numbers = #tpu.dot_dimension_numbers<[1], [0], [0], [1], [0, 0, 1, 1], [], []>} : vector<16x32xbf16>, vector<32x128xbf16>, vector<16x128xf32> -> vector<16x128xf32>
    %c0_140 = arith.constant 0 : index
    %c0_141 = arith.constant 0 : index
    %c0_142 = arith.constant 0 : index
    %253 = vector.load %arg14[%c0_140, %c0_141, %c0_142] : memref<1x1x128xf32, #tpu.memory_space<vmem>>, vector<1x1x128xf32>
    %254 = vector.shape_cast %253 : vector<1x1x128xf32> to vector<1x128xf32>
    %255 = vector.broadcast %254 : vector<1x128xf32> to vector<16x128xf32>
    %256 = arith.addf %252, %255 : vector<16x128xf32>
    %cst_143 = arith.constant 1.702000e+00 : f32
    %257 = vector.broadcast %cst_143 : f32 to vector<16x128xf32>
    %258 = arith.mulf %257, %256 : vector<16x128xf32>
    %259 = arith.negf %258 : vector<16x128xf32>
    %260 = math.exp %259 : vector<16x128xf32>
    %cst_144 = arith.constant 1.000000e+00 : f32
    %261 = vector.broadcast %cst_144 : f32 to vector<16x128xf32>
    %262 = arith.addf %261, %260 : vector<16x128xf32>
    %263 = arith.divf %261, %262 : vector<16x128xf32>
    %264 = arith.mulf %256, %263 : vector<16x128xf32>
    %265 = arith.truncf %264 : vector<16x128xf32> to vector<16x128xbf16>
    %c0_145 = arith.constant 0 : index
    %c0_146 = arith.constant 0 : index
    %c0_147 = arith.constant 0 : index
    %266 = vector.load %arg15[%c0_145, %c0_146, %c0_147] : memref<1x128x32xbf16, #tpu.memory_space<vmem>>, vector<1x128x32xbf16>
    %267 = vector.shape_cast %266 : vector<1x128x32xbf16> to vector<128x32xbf16>
    %cst_148 = arith.constant dense<0.000000e+00> : vector<16x32xf32>
    %268 = tpu.matmul %265, %267, %cst_148 {dimension_numbers = #tpu.dot_dimension_numbers<[1], [0], [0], [1], [0, 0, 1, 1], [], []>} : vector<16x128xbf16>, vector<128x32xbf16>, vector<16x32xf32> -> vector<16x32xf32>
    %c0_149 = arith.constant 0 : index
    %c0_150 = arith.constant 0 : index
    %c0_151 = arith.constant 0 : index
    %269 = vector.load %arg16[%c0_149, %c0_150, %c0_151] : memref<1x1x32xf32, #tpu.memory_space<vmem>>, vector<1x1x32xf32>
    %270 = vector.shape_cast %269 : vector<1x1x32xf32> to vector<1x32xf32>
    %271 = vector.broadcast %270 : vector<1x32xf32> to vector<16x32xf32>
    %272 = arith.addf %268, %271 : vector<16x32xf32>
    %273 = arith.addf %222, %272 : vector<16x32xf32>
    %c0_152 = arith.constant 0 : index
    %c0_153 = arith.constant 0 : index
    %274 = vector.load %arg21[%c0_152, %c0_153] : memref<16x32xf32, #tpu.memory_space<vmem>>, vector<16x32xf32>
    tpu.vector_store %arg21[%c0_152, %c0_153], %273 {strides = array<i32>} : memref<16x32xf32, #tpu.memory_space<vmem>>, vector<16x32xf32>,
    %c1_i32 = arith.constant 1 : i32
    %275 = arith.cmpi eq, %arg1, %c1_i32 : i32
    %276 = arith.extui %275 : i1 to i32
    %c0_i32_154 = arith.constant 0 : i32
    %277 = arith.cmpi ne, %276, %c0_i32_154 : i32
    scf.if %277 {
      %c2_i32 = arith.constant 2 : i32
      %278 = arith.muli %arg0, %c2_i32 : i32
      %c0_i32_155 = arith.constant 0 : i32
      %279 = arith.addi %278, %c0_i32_155 : i32
      %280 = arith.index_cast %279 : i32 to index
      %281 = memref.load %arg2[%280] : memref<2xi32, #tpu.memory_space<smem>>
      %c0_i32_156 = arith.constant 0 : i32
      %282 = arith.addi %c0_i32_156, %281 : i32
      %283 = arith.index_cast %282 : i32 to index
      %c0_157 = arith.constant 0 : index
      %284 = vector.load %arg21[%283, %c0_157] : memref<16x32xf32, #tpu.memory_space<vmem>>, vector<1x32xf32>
      %c2_i32_158 = arith.constant 2 : i32
      %285 = arith.muli %arg0, %c2_i32_158 : i32
      %c1_i32_159 = arith.constant 1 : i32
      %286 = arith.addi %285, %c1_i32_159 : i32
      %287 = arith.index_cast %286 : i32 to index
      %288 = memref.load %arg2[%287] : memref<2xi32, #tpu.memory_space<smem>>
      %c8_i32 = arith.constant 8 : i32
      %289 = arith.addi %c8_i32, %288 : i32
      %290 = arith.index_cast %289 : i32 to index
      %c0_160 = arith.constant 0 : index
      %291 = vector.load %arg21[%290, %c0_160] : memref<16x32xf32, #tpu.memory_space<vmem>>, vector<1x32xf32>
      %292 = tpu.concatenate %284, %291 in 0 : vector<1x32xf32>, vector<1x32xf32> -> vector<2x32xf32>
      %c0_161 = arith.constant 0 : index
      %c0_162 = arith.constant 0 : index
      %293 = vector.load %arg17[%c0_161, %c0_162] : memref<1x32xf32, #tpu.memory_space<vmem>>, vector<1x32xf32>
      %c0_163 = arith.constant 0 : index
      %c0_164 = arith.constant 0 : index
      %294 = vector.load %arg18[%c0_163, %c0_164] : memref<1x32xf32, #tpu.memory_space<vmem>>, vector<1x32xf32>
      %cst_165 = arith.constant dense<0.000000e+00> : vector<2xf32>
      %295 = vector.multi_reduction <add>, %292, %cst_165 [1] : vector<2x32xf32> to vector<2xf32>
      %296 = vector.shape_cast %295 : vector<2xf32> to vector<2x1xf32>
      %cst_166 = arith.constant 3.200000e+01 : f32
      %297 = vector.broadcast %cst_166 : f32 to vector<2x1xf32>
      %298 = arith.divf %296, %297 : vector<2x1xf32>
      %299 = vector.broadcast %298 : vector<2x1xf32> to vector<2x32xf32>
      %300 = arith.subf %292, %299 : vector<2x32xf32>
      %301 = arith.mulf %300, %300 : vector<2x32xf32>
      %cst_167 = arith.constant dense<0.000000e+00> : vector<2xf32>
      %302 = vector.multi_reduction <add>, %301, %cst_167 [1] : vector<2x32xf32> to vector<2xf32>
      %303 = vector.shape_cast %302 : vector<2xf32> to vector<2x1xf32>
      %cst_168 = arith.constant 3.200000e+01 : f32
      %304 = vector.broadcast %cst_168 : f32 to vector<2x1xf32>
      %305 = arith.divf %303, %304 : vector<2x1xf32>
      %306 = vector.broadcast %298 : vector<2x1xf32> to vector<2x32xf32>
      %307 = arith.subf %292, %306 : vector<2x32xf32>
      %cst_169 = arith.constant 9.99999974E-6 : f32
      %308 = vector.broadcast %cst_169 : f32 to vector<2x1xf32>
      %309 = arith.addf %305, %308 : vector<2x1xf32>
      %310 = math.rsqrt %309 : vector<2x1xf32>
      %311 = vector.broadcast %310 : vector<2x1xf32> to vector<2x32xf32>
      %312 = arith.mulf %307, %311 : vector<2x32xf32>
      %313 = vector.broadcast %293 : vector<1x32xf32> to vector<2x32xf32>
      %314 = arith.mulf %312, %313 : vector<2x32xf32>
      %315 = vector.broadcast %294 : vector<1x32xf32> to vector<2x32xf32>
      %316 = arith.addf %314, %315 : vector<2x32xf32>
      %317 = arith.truncf %316 : vector<2x32xf32> to vector<2x32xbf16>
      %c0_170 = arith.constant 0 : index
      %c0_171 = arith.constant 0 : index
      %318 = vector.load %arg19[%c0_170, %c0_171] : memref<32x16xbf16, #tpu.memory_space<vmem>>, vector<32x16xbf16>
      %cst_172 = arith.constant dense<0.000000e+00> : vector<2x16xf32>
      %319 = tpu.matmul %317, %318, %cst_172 {dimension_numbers = #tpu.dot_dimension_numbers<[1], [0], [0], [1], [0, 0, 1, 1], [], []>} : vector<2x32xbf16>, vector<32x16xbf16>, vector<2x16xf32> -> vector<2x16xf32>
      %c0_173 = arith.constant 0 : index
      %c0_174 = arith.constant 0 : index
      %320 = vector.load %arg20[%c0_173, %c0_174] : memref<2x16xf32, #tpu.memory_space<vmem>>, vector<2x16xf32>
      tpu.vector_store %arg20[%c0_173, %c0_174], %319 {strides = array<i32>} : memref<2x16xf32, #tpu.memory_space<vmem>>, vector<2x16xf32>,
    } else {
    }
    return
  }
  func.func @transform_0(%arg0: i32, %arg1: i32, %arg2: memref<2xi32, #tpu.memory_space<smem>>) -> (i32, i32, i32) {
    %c0_i32 = arith.constant 0 : i32
    %c0_i32_0 = arith.constant 0 : i32
    %c0_i32_1 = arith.constant 0 : i32
    return %arg0, %c0_i32, %c0_i32_0 : i32, i32, i32
  }
  func.func @transform_1(%arg0: i32, %arg1: i32, %arg2: memref<2xi32, #tpu.memory_space<smem>>) -> (i32, i32) {
    %c0_i32 = arith.constant 0 : i32
    %c0_i32_0 = arith.constant 0 : i32
    %c0_i32_1 = arith.constant 0 : i32
    return %c0_i32, %c0_i32_0 : i32, i32
  }
  func.func @transform_2(%arg0: i32, %arg1: i32, %arg2: memref<2xi32, #tpu.memory_space<smem>>) -> (i32, i32, i32) {
    %c0_i32 = arith.constant 0 : i32
    %c0_i32_0 = arith.constant 0 : i32
    %c0_i32_1 = arith.constant 0 : i32
    return %arg1, %c0_i32, %c0_i32_0 : i32, i32, i32
  }
  func.func @transform_3(%arg0: i32, %arg1: i32, %arg2: memref<2xi32, #tpu.memory_space<smem>>) -> (i32, i32, i32) {
    %c0_i32 = arith.constant 0 : i32
    %c0_i32_0 = arith.constant 0 : i32
    %c0_i32_1 = arith.constant 0 : i32
    return %arg1, %c0_i32, %c0_i32_0 : i32, i32, i32
  }
  func.func @transform_4(%arg0: i32, %arg1: i32, %arg2: memref<2xi32, #tpu.memory_space<smem>>) -> (i32, i32, i32) {
    %c0_i32 = arith.constant 0 : i32
    %c0_i32_0 = arith.constant 0 : i32
    %c0_i32_1 = arith.constant 0 : i32
    return %arg1, %c0_i32, %c0_i32_0 : i32, i32, i32
  }
  func.func @transform_5(%arg0: i32, %arg1: i32, %arg2: memref<2xi32, #tpu.memory_space<smem>>) -> (i32, i32, i32) {
    %c0_i32 = arith.constant 0 : i32
    %c0_i32_0 = arith.constant 0 : i32
    %c0_i32_1 = arith.constant 0 : i32
    return %arg1, %c0_i32, %c0_i32_0 : i32, i32, i32
  }
  func.func @transform_6(%arg0: i32, %arg1: i32, %arg2: memref<2xi32, #tpu.memory_space<smem>>) -> (i32, i32, i32) {
    %c0_i32 = arith.constant 0 : i32
    %c0_i32_0 = arith.constant 0 : i32
    %c0_i32_1 = arith.constant 0 : i32
    return %arg1, %c0_i32, %c0_i32_0 : i32, i32, i32
  }
  func.func @transform_7(%arg0: i32, %arg1: i32, %arg2: memref<2xi32, #tpu.memory_space<smem>>) -> (i32, i32, i32) {
    %c0_i32 = arith.constant 0 : i32
    %c0_i32_0 = arith.constant 0 : i32
    %c0_i32_1 = arith.constant 0 : i32
    return %arg1, %c0_i32, %c0_i32_0 : i32, i32, i32
  }
  func.func @transform_8(%arg0: i32, %arg1: i32, %arg2: memref<2xi32, #tpu.memory_space<smem>>) -> (i32, i32, i32) {
    %c0_i32 = arith.constant 0 : i32
    %c0_i32_0 = arith.constant 0 : i32
    %c0_i32_1 = arith.constant 0 : i32
    return %arg1, %c0_i32, %c0_i32_0 : i32, i32, i32
  }
  func.func @transform_9(%arg0: i32, %arg1: i32, %arg2: memref<2xi32, #tpu.memory_space<smem>>) -> (i32, i32, i32) {
    %c0_i32 = arith.constant 0 : i32
    %c0_i32_0 = arith.constant 0 : i32
    %c0_i32_1 = arith.constant 0 : i32
    return %arg1, %c0_i32, %c0_i32_0 : i32, i32, i32
  }
  func.func @transform_10(%arg0: i32, %arg1: i32, %arg2: memref<2xi32, #tpu.memory_space<smem>>) -> (i32, i32, i32) {
    %c0_i32 = arith.constant 0 : i32
    %c0_i32_0 = arith.constant 0 : i32
    %c0_i32_1 = arith.constant 0 : i32
    return %arg1, %c0_i32, %c0_i32_0 : i32, i32, i32
  }
  func.func @transform_11(%arg0: i32, %arg1: i32, %arg2: memref<2xi32, #tpu.memory_space<smem>>) -> (i32, i32, i32) {
    %c0_i32 = arith.constant 0 : i32
    %c0_i32_0 = arith.constant 0 : i32
    %c0_i32_1 = arith.constant 0 : i32
    return %arg1, %c0_i32, %c0_i32_0 : i32, i32, i32
  }
  func.func @transform_12(%arg0: i32, %arg1: i32, %arg2: memref<2xi32, #tpu.memory_space<smem>>) -> (i32, i32, i32) {
    %c0_i32 = arith.constant 0 : i32
    %c0_i32_0 = arith.constant 0 : i32
    %c0_i32_1 = arith.constant 0 : i32
    return %arg1, %c0_i32, %c0_i32_0 : i32, i32, i32
  }
  func.func @transform_13(%arg0: i32, %arg1: i32, %arg2: memref<2xi32, #tpu.memory_space<smem>>) -> (i32, i32, i32) {
    %c0_i32 = arith.constant 0 : i32
    %c0_i32_0 = arith.constant 0 : i32
    %c0_i32_1 = arith.constant 0 : i32
    return %arg1, %c0_i32, %c0_i32_0 : i32, i32, i32
  }
  func.func @transform_14(%arg0: i32, %arg1: i32, %arg2: memref<2xi32, #tpu.memory_space<smem>>) -> (i32, i32) {
    %c0_i32 = arith.constant 0 : i32
    %c0_i32_0 = arith.constant 0 : i32
    %c0_i32_1 = arith.constant 0 : i32
    return %c0_i32, %c0_i32_0 : i32, i32
  }
  func.func @transform_15(%arg0: i32, %arg1: i32, %arg2: memref<2xi32, #tpu.memory_space<smem>>) -> (i32, i32) {
    %c0_i32 = arith.constant 0 : i32
    %c0_i32_0 = arith.constant 0 : i32
    %c0_i32_1 = arith.constant 0 : i32
    return %c0_i32, %c0_i32_0 : i32, i32
  }
  func.func @transform_16(%arg0: i32, %arg1: i32, %arg2: memref<2xi32, #tpu.memory_space<smem>>) -> (i32, i32) {
    %c0_i32 = arith.constant 0 : i32
    %c0_i32_0 = arith.constant 0 : i32
    %c0_i32_1 = arith.constant 0 : i32
    return %c0_i32, %c0_i32_0 : i32, i32
  }
  func.func @transform_17(%arg0: i32, %arg1: i32, %arg2: memref<2xi32, #tpu.memory_space<smem>>) -> (i32, i32) {
    %c0_i32 = arith.constant 0 : i32
    %c0_i32_0 = arith.constant 0 : i32
    return %arg0, %c0_i32 : i32, i32
  }
}

</mosaic_0001>

<llo_original>
// kernel: tpu_custom_call.1
$region0: #{tpu_custom_call.1}
  #allocation0 [shape = 'u32[]', space=smem, size = 0x4, offset = 0x4, fixed_abs, tag = 'smem constant byte address 0x4 - core index']
  #allocation1 [shape = 'u32[144,128]{1,0:T(1,128)}', space=vmem, size = 0x12000, scoped, tag = 'internal scratch']
  #allocation2 [shape = 'f32[16,32]{1,0:T(8,128)}', space=vmem, size = 0x2000, scoped, tag = 'scratch operand']
  #allocation3 [shape = 'bf16[16,96]{1,0:T(16,128)(2,1)}', space=vmem, size = 0x1000, scoped, tag = 'scratch operand']
  #allocation4 [shape = 'bf16[16,32]{1,0:T(16,128)(2,1)}', space=vmem, size = 0x1000, scoped, tag = 'scratch operand']
  #allocation5 [shape = 's32[1]{0}', space=sflag, size = 0x4, scoped, tag = 'scoped memory for tpu_custom_call.1']
  #allocation6 [shape = 'u8[512]{0}', space=smem, size = 0x200, scoped, tag = 'prefetched SMEM operand 0']
  %s0 = inlined_call_operand.hbm [shape: s32[2], index: 0, kind: input, shape index: {}]
  %s1 = inlined_call_operand.hbm [shape: f32[2,8,32], index: 1, kind: input, shape index: {}]
  %s2 = inlined_call_operand.hbm [shape: f32[8,32], index: 2, kind: input, shape index: {}]
  %s3 = inlined_call_operand.hbm [shape: f32[2,1,32], index: 3, kind: input, shape index: {}]
  %s4 = inlined_call_operand.hbm [shape: f32[2,1,32], index: 4, kind: input, shape index: {}]
  %s5 = inlined_call_operand.hbm [shape: bf16[2,32,96], index: 5, kind: input, shape index: {}]
  %s6 = inlined_call_operand.hbm [shape: f32[2,1,96], index: 6, kind: input, shape index: {}]
  %s7 = inlined_call_operand.hbm [shape: bf16[2,32,32], index: 7, kind: input, shape index: {}]
  %s8 = inlined_call_operand.hbm [shape: f32[2,1,32], index: 8, kind: input, shape index: {}]
  %s9 = inlined_call_operand.hbm [shape: f32[2,1,32], index: 9, kind: input, shape index: {}]
  %s10 = inlined_call_operand.hbm [shape: f32[2,1,32], index: 10, kind: input, shape index: {}]
  %s11 = inlined_call_operand.hbm [shape: bf16[2,32,128], index: 11, kind: input, shape index: {}]
  %s12 = inlined_call_operand.hbm [shape: f32[2,1,128], index: 12, kind: input, shape index: {}]
  %s13 = inlined_call_operand.hbm [shape: bf16[2,128,32], index: 13, kind: input, shape index: {}]
  %s14 = inlined_call_operand.hbm [shape: f32[2,1,32], index: 14, kind: input, shape index: {}]
  %s15 = inlined_call_operand.hbm [shape: f32[1,32], index: 15, kind: input, shape index: {}]
  %s16 = inlined_call_operand.hbm [shape: f32[1,32], index: 16, kind: input, shape index: {}]
  %s17 = inlined_call_operand.hbm [shape: bf16[32,16], index: 17, kind: input, shape index: {}]
  %s18 = inlined_call_operand.hbm [shape: f32[2,16], index: 18, kind: output, shape index: {}]
  %s19 = sld [smem:[#allocation0]]
  $region177: #{tpu_custom_call.1} parent=0
    _
  %s21 = ssub.s32 1, %s19
  %s22 = scalar_select 0, %s21, %s19
  %24 = dma.hbm_to_smem %s0, 16, [#allocation6], [#allocation5]
  %25 = dma.done [#allocation5], 16
  %26 = sfence
  $region1: #{tpu_custom_call.1} parent=0
    #allocation7 [shape = 'u8[8192]{0}', space=vmem, size = 0x2000, scoped, tag = 'input window, operand 1, single buffered']
    #allocation8 [shape = 's32[2]{0}', space=sflag, size = 0x8, scoped, tag = 'scoped memory for tpu_custom_call.1']
    #allocation9 [shape = 's32[2]{0}', space=sflag, size = 0x8, scoped, tag = 'scoped memory for tpu_custom_call.1']
    #allocation10 [shape = 'u8[4096]{0}', space=vmem, size = 0x1000, scoped, tag = 'input window, operand 2, single buffered']
    #allocation11 [shape = 's32[1]{0}', space=sflag, size = 0x4, scoped, tag = 'scoped memory for tpu_custom_call.1']
    #allocation12 [shape = 'u8[1024]{0}', space=vmem, size = 0x400, scoped, tag = 'input window, operand 3']
    #allocation13 [shape = 'u8[1024]{0}', space=vmem, size = 0x400, scoped, tag = 'input window, operand 4']
    #allocation14 [shape = 'u8[16384]{0}', space=vmem, size = 0x4000, scoped, tag = 'input window, operand 5']
    #allocation15 [shape = 'u8[1024]{0}', space=vmem, size = 0x400, scoped, tag = 'input window, operand 6']
    #allocation16 [shape = 'u8[16384]{0}', space=vmem, size = 0x4000, scoped, tag = 'input window, operand 7']
    #allocation17 [shape = 'u8[1024]{0}', space=vmem, size = 0x400, scoped, tag = 'input window, operand 8']
    #allocation18 [shape = 'u8[1024]{0}', space=vmem, size = 0x400, scoped, tag = 'input window, operand 9']
    #allocation19 [shape = 'u8[1024]{0}', space=vmem, size = 0x400, scoped, tag = 'input window, operand 10']
    #allocation20 [shape = 'u8[16384]{0}', space=vmem, size = 0x4000, scoped, tag = 'input window, operand 11']
    #allocation21 [shape = 'u8[1024]{0}', space=vmem, size = 0x400, scoped, tag = 'input window, operand 12']
    #allocation22 [shape = 'u8[65536]{0}', space=vmem, size = 0x10000, scoped, tag = 'input window, operand 13']
    #allocation23 [shape = 'u8[1024]{0}', space=vmem, size = 0x400, scoped, tag = 'input window, operand 14']
    #allocation24 [shape = 'u8[512]{0}', space=vmem, size = 0x400, scoped, tag = 'input window, operand 15, single buffered']
    #allocation25 [shape = 'u8[512]{0}', space=vmem, size = 0x400, scoped, tag = 'input window, operand 16, single buffered']
    #allocation26 [shape = 's32[1]{0}', space=sflag, size = 0x4, scoped, tag = 'scoped memory for tpu_custom_call.1']
    #allocation27 [shape = 'u8[8192]{0}', space=vmem, size = 0x2000, scoped, tag = 'input window, operand 17, single buffered']
    #allocation28 [shape = 'u8[1024]{0}', space=vmem, size = 0x400, scoped, tag = 'output window, operand 0, single buffered']
    %27 = vsyncpa [#allocation8], 0
    %28 = vsyncpa [#allocation11], 0
    %29 = vsyncpa [#allocation26], 0
    %30 = vsyncpa [#allocation9], 0
    loop: start=0, step=1, limit=4
    $region2: #{tpu_custom_call.1} parent=1 // loop_pre_header
      _
    $region3: #{tpu_custom_call.1} parent=1 // loop_header
      %s32 = sphi 0, %s36
      %p33 = scmp.ge.s32.totalorder %s32, 4
      %s39 = sphi 0, %s51
      %s40 = sphi 0, %s47
      %s41 = sphi 0, %s39
      %s42 = sphi 0, %s40
      %s43 = sphi 0, %s41
      %s44 = sphi 0, %s42
      %s54 = sphi 0, %s56
      %s57 = sphi 0, %s54
      %s58 = sphi 0, %s57
      %s74 = sphi 0, %s58
      %s78 = sphi 0, %s78
      %s80 = sphi 0, %s78
      %s81 = sphi 0, %s80
      %s95 = sphi 0, %s81
      %s101 = sphi 0, %s103
      %s104 = sphi 0, %s101
      %s105 = sphi 0, %s104
      %s121 = sphi 0, %s105
      %s127 = sphi 0, %s129
      %s130 = sphi 0, %s127
      %s131 = sphi 0, %s130
      %s147 = sphi 0, %s131
      %s153 = sphi 0, %s155
      %s156 = sphi 0, %s153
      %s157 = sphi 0, %s156
      %s173 = sphi 0, %s157
      %s179 = sphi 0, %s181
      %s182 = sphi 0, %s179
      %s183 = sphi 0, %s182
      %s199 = sphi 0, %s183
      %s205 = sphi 0, %s207
      %s208 = sphi 0, %s205
      %s209 = sphi 0, %s208
      %s225 = sphi 0, %s209
      %s231 = sphi 0, %s233
      %s234 = sphi 0, %s231
      %s235 = sphi 0, %s234
      %s251 = sphi 0, %s235
      %s257 = sphi 0, %s259
      %s260 = sphi 0, %s257
      %s261 = sphi 0, %s260
      %s277 = sphi 0, %s261
      %s283 = sphi 0, %s285
      %s286 = sphi 0, %s283
      %s287 = sphi 0, %s286
      %s303 = sphi 0, %s287
      %s309 = sphi 0, %s311
      %s312 = sphi 0, %s309
      %s313 = sphi 0, %s312
      %s329 = sphi 0, %s313
      %s335 = sphi 0, %s337
      %s338 = sphi 0, %s335
      %s339 = sphi 0, %s338
      %s355 = sphi 0, %s339
      %s361 = sphi 0, %s363
      %s364 = sphi 0, %s361
      %s365 = sphi 0, %s364
      %s381 = sphi 0, %s365
      %s387 = sphi 0, %s389
      %s390 = sphi 0, %s387
      %s391 = sphi 0, %s390
      %s407 = sphi 0, %s391
      %s411 = sphi 0, %s411
      %s413 = sphi 0, %s411
      %s414 = sphi 0, %s413
      %s428 = sphi 0, %s414
      %s432 = sphi 0, %s432
      %s434 = sphi 0, %s432
      %s435 = sphi 0, %s434
      %s449 = sphi 0, %s435
      %s453 = sphi 0, %s453
      %s455 = sphi 0, %s453
      %s456 = sphi 0, %s455
      %s470 = sphi 0, %s456
      %s476 = sphi 0, %s478
      %s479 = sphi 0, %s476
      %s480 = sphi 0, %s479
      %s496 = sphi 0, %s480
    $region4: #{tpu_custom_call.1} parent=1 // loop_header_branch
      %35 = sbr.rel (%p33) target = $region8
    $region5: #{tpu_custom_call.1} parent=1 // loop_body
      %s37 = ssub.s32 %s32, 1
      %s38 = ssub.s32 %s32, 2
      %s45 = sadd.s32 1, %s40
      %p46 = scmp.ge.s32.totalorder %s45, 2
      %s47 = scalar_select %p46, 0, %s45
      %s48 = sadd.s32 1, %s39
      %s49 = scalar_select %p46, %s48, %s39
      %p50 = scmp.ge.s32.totalorder %s49, 1
      %s51 = scalar_select %p50, 0, %s49
      %s52 = ssub.s32 %s39, %s51
      %p53 = scmp.eq.s32.totalorder %s52, 0
      %s55 = sadd.s32 %s54, 1
      %s56 = scalar_select %p53, %s54, %s55
      %p59 = pneg %p53
      %p60 = scmp.eq.s32.totalorder %s32, 1
      %p61 = por %p59, %p60
      %p62 = scmp.ne.s32.totalorder %s54, %s57
      %p63 = scmp.eq.s32.totalorder %s32, 0
      %p64 = por %p62, %p63
      %p65 = scmp.ne.s32.totalorder %s54, %s57
      %p66 = scmp.eq.s32.totalorder %s37, 1
      %p67 = por %p65, %p66
      %p68 = scmp.ne.s32.totalorder %s57, %s58
      %p69 = scmp.eq.s32.totalorder %s37, 0
      %p70 = por %p68, %p69
      %p71 = scmp.ne.s32.totalorder %s57, %s58
      %p72 = scmp.eq.s32.totalorder %s38, 1
      %p73 = por %p71, %p72
      %p75 = scmp.ne.s32.totalorder %s58, %s74
      %p76 = scmp.eq.s32.totalorder %s38, 0
      %p77 = por %p75, %p76
      %s79 = sadd.s32 %s78, 1
      %p82 = scmp.eq.s32.totalorder %s32, 1
      %p83 = scmp.ne.s32.totalorder %s78, %s80
      %p84 = scmp.eq.s32.totalorder %s32, 0
      %p85 = por %p83, %p84
      %p86 = scmp.ne.s32.totalorder %s78, %s80
      %p87 = scmp.eq.s32.totalorder %s37, 1
      %p88 = por %p86, %p87
      %p89 = scmp.ne.s32.totalorder %s80, %s81
      %p90 = scmp.eq.s32.totalorder %s37, 0
      %p91 = por %p89, %p90
      %p92 = scmp.ne.s32.totalorder %s80, %s81
      %p93 = scmp.eq.s32.totalorder %s38, 1
      %p94 = por %p92, %p93
      %p96 = scmp.ne.s32.totalorder %s81, %s95
      %p97 = scmp.eq.s32.totalorder %s38, 0
      %p98 = por %p96, %p97
      %s99 = ssub.s32 %s40, %s47
      %p100 = scmp.eq.s32.totalorder %s99, 0
      %s102 = sadd.s32 %s101, 1
      %s103 = scalar_select %p100, %s101, %s102
      %p106 = pneg %p100
      %p107 = scmp.eq.s32.totalorder %s32, 1
      %p108 = por %p106, %p107
      %p109 = scmp.ne.s32.totalorder %s101, %s104
      %p110 = scmp.eq.s32.totalorder %s32, 0
      %p111 = por %p109, %p110
      %p112 = scmp.ne.s32.totalorder %s101, %s104
      %p113 = scmp.eq.s32.totalorder %s37, 1
      %p114 = por %p112, %p113
      %p115 = scmp.ne.s32.totalorder %s104, %s105
      %p116 = scmp.eq.s32.totalorder %s37, 0
      %p117 = por %p115, %p116
      %p118 = scmp.ne.s32.totalorder %s104, %s105
      %p119 = scmp.eq.s32.totalorder %s38, 1
      %p120 = por %p118, %p119
      %p122 = scmp.ne.s32.totalorder %s105, %s121
      %p123 = scmp.eq.s32.totalorder %s38, 0
      %p124 = por %p122, %p123
      %s125 = ssub.s32 %s40, %s47
      %p126 = scmp.eq.s32.totalorder %s125, 0
      %s128 = sadd.s32 %s127, 1
      %s129 = scalar_select %p126, %s127, %s128
      %p132 = pneg %p126
      %p133 = scmp.eq.s32.totalorder %s32, 1
      %p134 = por %p132, %p133
      %p135 = scmp.ne.s32.totalorder %s127, %s130
      %p136 = scmp.eq.s32.totalorder %s32, 0
      %p137 = por %p135, %p136
      %p138 = scmp.ne.s32.totalorder %s127, %s130
      %p139 = scmp.eq.s32.totalorder %s37, 1
      %p140 = por %p138, %p139
      %p141 = scmp.ne.s32.totalorder %s130, %s131
      %p142 = scmp.eq.s32.totalorder %s37, 0
      %p143 = por %p141, %p142
      %p144 = scmp.ne.s32.totalorder %s130, %s131
      %p145 = scmp.eq.s32.totalorder %s38, 1
      %p146 = por %p144, %p145
      %p148 = scmp.ne.s32.totalorder %s131, %s147
      %p149 = scmp.eq.s32.totalorder %s38, 0
      %p150 = por %p148, %p149
      %s151 = ssub.s32 %s40, %s47
      %p152 = scmp.eq.s32.totalorder %s151, 0
      %s154 = sadd.s32 %s153, 1
      %s155 = scalar_select %p152, %s153, %s154
      %p158 = pneg %p152
      %p159 = scmp.eq.s32.totalorder %s32, 1
      %p160 = por %p158, %p159
      %p161 = scmp.ne.s32.totalorder %s153, %s156
      %p162 = scmp.eq.s32.totalorder %s32, 0
      %p163 = por %p161, %p162
      %p164 = scmp.ne.s32.totalorder %s153, %s156
      %p165 = scmp.eq.s32.totalorder %s37, 1
      %p166 = por %p164, %p165
      %p167 = scmp.ne.s32.totalorder %s156, %s157
      %p168 = scmp.eq.s32.totalorder %s37, 0
      %p169 = por %p167, %p168
      %p170 = scmp.ne.s32.totalorder %s156, %s157
      %p171 = scmp.eq.s32.totalorder %s38, 1
      %p172 = por %p170, %p171
      %p174 = scmp.ne.s32.totalorder %s157, %s173
      %p175 = scmp.eq.s32.totalorder %s38, 0
      %p176 = por %p174, %p175
      %s177 = ssub.s32 %s40, %s47
      %p178 = scmp.eq.s32.totalorder %s177, 0
      %s180 = sadd.s32 %s179, 1
      %s181 = scalar_select %p178, %s179, %s180
      %p184 = pneg %p178
      %p185 = scmp.eq.s32.totalorder %s32, 1
      %p186 = por %p184, %p185
      %p187 = scmp.ne.s32.totalorder %s179, %s182
      %p188 = scmp.eq.s32.totalorder %s32, 0
      %p189 = por %p187, %p188
      %p190 = scmp.ne.s32.totalorder %s179, %s182
      %p191 = scmp.eq.s32.totalorder %s37, 1
      %p192 = por %p190, %p191
      %p193 = scmp.ne.s32.totalorder %s182, %s183
      %p194 = scmp.eq.s32.totalorder %s37, 0
      %p195 = por %p193, %p194
      %p196 = scmp.ne.s32.totalorder %s182, %s183
      %p197 = scmp.eq.s32.totalorder %s38, 1
      %p198 = por %p196, %p197
      %p200 = scmp.ne.s32.totalorder %s183, %s199
      %p201 = scmp.eq.s32.totalorder %s38, 0
      %p202 = por %p200, %p201
      %s203 = ssub.s32 %s40, %s47
      %p204 = scmp.eq.s32.totalorder %s203, 0
      %s206 = sadd.s32 %s205, 1
      %s207 = scalar_select %p204, %s205, %s206
      %p210 = pneg %p204
      %p211 = scmp.eq.s32.totalorder %s32, 1
      %p212 = por %p210, %p211
      %p213 = scmp.ne.s32.totalorder %s205, %s208
      %p214 = scmp.eq.s32.totalorder %s32, 0
      %p215 = por %p213, %p214
      %p216 = scmp.ne.s32.totalorder %s205, %s208
      %p217 = scmp.eq.s32.totalorder %s37, 1
      %p218 = por %p216, %p217
      %p219 = scmp.ne.s32.totalorder %s208, %s209
      %p220 = scmp.eq.s32.totalorder %s37, 0
      %p221 = por %p219, %p220
      %p222 = scmp.ne.s32.totalorder %s208, %s209
      %p223 = scmp.eq.s32.totalorder %s38, 1
      %p224 = por %p222, %p223
      %p226 = scmp.ne.s32.totalorder %s209, %s225
      %p227 = scmp.eq.s32.totalorder %s38, 0
      %p228 = por %p226, %p227
      %s229 = ssub.s32 %s40, %s47
      %p230 = scmp.eq.s32.totalorder %s229, 0
      %s232 = sadd.s32 %s231, 1
      %s233 = scalar_select %p230, %s231, %s232
      %p236 = pneg %p230
      %p237 = scmp.eq.s32.totalorder %s32, 1
      %p238 = por %p236, %p237
      %p239 = scmp.ne.s32.totalorder %s231, %s234
      %p240 = scmp.eq.s32.totalorder %s32, 0
      %p241 = por %p239, %p240
      %p242 = scmp.ne.s32.totalorder %s231, %s234
      %p243 = scmp.eq.s32.totalorder %s37, 1
      %p244 = por %p242, %p243
      %p245 = scmp.ne.s32.totalorder %s234, %s235
      %p246 = scmp.eq.s32.totalorder %s37, 0
      %p247 = por %p245, %p246
      %p248 = scmp.ne.s32.totalorder %s234, %s235
      %p249 = scmp.eq.s32.totalorder %s38, 1
      %p250 = por %p248, %p249
      %p252 = scmp.ne.s32.totalorder %s235, %s251
      %p253 = scmp.eq.s32.totalorder %s38, 0
      %p254 = por %p252, %p253
      %s255 = ssub.s32 %s40, %s47
      %p256 = scmp.eq.s32.totalorder %s255, 0
      %s258 = sadd.s32 %s257, 1
      %s259 = scalar_select %p256, %s257, %s258
      %p262 = pneg %p256
      %p263 = scmp.eq.s32.totalorder %s32, 1
      %p264 = por %p262, %p263
      %p265 = scmp.ne.s32.totalorder %s257, %s260
      %p266 = scmp.eq.s32.totalorder %s32, 0
      %p267 = por %p265, %p266
      %p268 = scmp.ne.s32.totalorder %s257, %s260
      %p269 = scmp.eq.s32.totalorder %s37, 1
      %p270 = por %p268, %p269
      %p271 = scmp.ne.s32.totalorder %s260, %s261
      %p272 = scmp.eq.s32.totalorder %s37, 0
      %p273 = por %p271, %p272
      %p274 = scmp.ne.s32.totalorder %s260, %s261
      %p275 = scmp.eq.s32.totalorder %s38, 1
      %p276 = por %p274, %p275
      %p278 = scmp.ne.s32.totalorder %s261, %s277
      %p279 = scmp.eq.s32.totalorder %s38, 0
      %p280 = por %p278, %p279
      %s281 = ssub.s32 %s40, %s47
      %p282 = scmp.eq.s32.totalorder %s281, 0
      %s284 = sadd.s32 %s283, 1
      %s285 = scalar_select %p282, %s283, %s284
      %p288 = pneg %p282
      %p289 = scmp.eq.s32.totalorder %s32, 1
      %p290 = por %p288, %p289
      %p291 = scmp.ne.s32.totalorder %s283, %s286
      %p292 = scmp.eq.s32.totalorder %s32, 0
      %p293 = por %p291, %p292
      %p294 = scmp.ne.s32.totalorder %s283, %s286
      %p295 = scmp.eq.s32.totalorder %s37, 1
      %p296 = por %p294, %p295
      %p297 = scmp.ne.s32.totalorder %s286, %s287
      %p298 = scmp.eq.s32.totalorder %s37, 0
      %p299 = por %p297, %p298
      %p300 = scmp.ne.s32.totalorder %s286, %s287
      %p301 = scmp.eq.s32.totalorder %s38, 1
      %p302 = por %p300, %p301
      %p304 = scmp.ne.s32.totalorder %s287, %s303
      %p305 = scmp.eq.s32.totalorder %s38, 0
      %p306 = por %p304, %p305
      %s307 = ssub.s32 %s40, %s47
      %p308 = scmp.eq.s32.totalorder %s307, 0
      %s310 = sadd.s32 %s309, 1
      %s311 = scalar_select %p308, %s309, %s310
      %p314 = pneg %p308
      %p315 = scmp.eq.s32.totalorder %s32, 1
      %p316 = por %p314, %p315
      %p317 = scmp.ne.s32.totalorder %s309, %s312
      %p318 = scmp.eq.s32.totalorder %s32, 0
      %p319 = por %p317, %p318
      %p320 = scmp.ne.s32.totalorder %s309, %s312
      %p321 = scmp.eq.s32.totalorder %s37, 1
      %p322 = por %p320, %p321
      %p323 = scmp.ne.s32.totalorder %s312, %s313
      %p324 = scmp.eq.s32.totalorder %s37, 0
      %p325 = por %p323, %p324
      %p326 = scmp.ne.s32.totalorder %s312, %s313
      %p327 = scmp.eq.s32.totalorder %s38, 1
      %p328 = por %p326, %p327
      %p330 = scmp.ne.s32.totalorder %s313, %s329
      %p331 = scmp.eq.s32.totalorder %s38, 0
      %p332 = por %p330, %p331
      %s333 = ssub.s32 %s40, %s47
      %p334 = scmp.eq.s32.totalorder %s333, 0
      %s336 = sadd.s32 %s335, 1
      %s337 = scalar_select %p334, %s335, %s336
      %p340 = pneg %p334
      %p341 = scmp.eq.s32.totalorder %s32, 1
      %p342 = por %p340, %p341
      %p343 = scmp.ne.s32.totalorder %s335, %s338
      %p344 = scmp.eq.s32.totalorder %s32, 0
      %p345 = por %p343, %p344
      %p346 = scmp.ne.s32.totalorder %s335, %s338
      %p347 = scmp.eq.s32.totalorder %s37, 1
      %p348 = por %p346, %p347
      %p349 = scmp.ne.s32.totalorder %s338, %s339
      %p350 = scmp.eq.s32.totalorder %s37, 0
      %p351 = por %p349, %p350
      %p352 = scmp.ne.s32.totalorder %s338, %s339
      %p353 = scmp.eq.s32.totalorder %s38, 1
      %p354 = por %p352, %p353
      %p356 = scmp.ne.s32.totalorder %s339, %s355
      %p357 = scmp.eq.s32.totalorder %s38, 0
      %p358 = por %p356, %p357
      %s359 = ssub.s32 %s40, %s47
      %p360 = scmp.eq.s32.totalorder %s359, 0
      %s362 = sadd.s32 %s361, 1
      %s363 = scalar_select %p360, %s361, %s362
      %p366 = pneg %p360
      %p367 = scmp.eq.s32.totalorder %s32, 1
      %p368 = por %p366, %p367
      %p369 = scmp.ne.s32.totalorder %s361, %s364
      %p370 = scmp.eq.s32.totalorder %s32, 0
      %p371 = por %p369, %p370
      %p372 = scmp.ne.s32.totalorder %s361, %s364
      %p373 = scmp.eq.s32.totalorder %s37, 1
      %p374 = por %p372, %p373
      %p375 = scmp.ne.s32.totalorder %s364, %s365
      %p376 = scmp.eq.s32.totalorder %s37, 0
      %p377 = por %p375, %p376
      %p378 = scmp.ne.s32.totalorder %s364, %s365
      %p379 = scmp.eq.s32.totalorder %s38, 1
      %p380 = por %p378, %p379
      %p382 = scmp.ne.s32.totalorder %s365, %s381
      %p383 = scmp.eq.s32.totalorder %s38, 0
      %p384 = por %p382, %p383
      %s385 = ssub.s32 %s40, %s47
      %p386 = scmp.eq.s32.totalorder %s385, 0
      %s388 = sadd.s32 %s387, 1
      %s389 = scalar_select %p386, %s387, %s388
      %p392 = pneg %p386
      %p393 = scmp.eq.s32.totalorder %s32, 1
      %p394 = por %p392, %p393
      %p395 = scmp.ne.s32.totalorder %s387, %s390
      %p396 = scmp.eq.s32.totalorder %s32, 0
      %p397 = por %p395, %p396
      %p398 = scmp.ne.s32.totalorder %s387, %s390
      %p399 = scmp.eq.s32.totalorder %s37, 1
      %p400 = por %p398, %p399
      %p401 = scmp.ne.s32.totalorder %s390, %s391
      %p402 = scmp.eq.s32.totalorder %s37, 0
      %p403 = por %p401, %p402
      %p404 = scmp.ne.s32.totalorder %s390, %s391
      %p405 = scmp.eq.s32.totalorder %s38, 1
      %p406 = por %p404, %p405
      %p408 = scmp.ne.s32.totalorder %s391, %s407
      %p409 = scmp.eq.s32.totalorder %s38, 0
      %p410 = por %p408, %p409
      %s412 = sadd.s32 %s411, 1
      %p415 = scmp.eq.s32.totalorder %s32, 1
      %p416 = scmp.ne.s32.totalorder %s411, %s413
      %p417 = scmp.eq.s32.totalorder %s32, 0
      %p418 = por %p416, %p417
      %p419 = scmp.ne.s32.totalorder %s411, %s413
      %p420 = scmp.eq.s32.totalorder %s37, 1
      %p421 = por %p419, %p420
      %p422 = scmp.ne.s32.totalorder %s413, %s414
      %p423 = scmp.eq.s32.totalorder %s37, 0
      %p424 = por %p422, %p423
      %p425 = scmp.ne.s32.totalorder %s413, %s414
      %p426 = scmp.eq.s32.totalorder %s38, 1
      %p427 = por %p425, %p426
      %p429 = scmp.ne.s32.totalorder %s414, %s428
      %p430 = scmp.eq.s32.totalorder %s38, 0
      %p431 = por %p429, %p430
      %s433 = sadd.s32 %s432, 1
      %p436 = scmp.eq.s32.totalorder %s32, 1
      %p437 = scmp.ne.s32.totalorder %s432, %s434
      %p438 = scmp.eq.s32.totalorder %s32, 0
      %p439 = por %p437, %p438
      %p440 = scmp.ne.s32.totalorder %s432, %s434
      %p441 = scmp.eq.s32.totalorder %s37, 1
      %p442 = por %p440, %p441
      %p443 = scmp.ne.s32.totalorder %s434, %s435
      %p444 = scmp.eq.s32.totalorder %s37, 0
      %p445 = por %p443, %p444
      %p446 = scmp.ne.s32.totalorder %s434, %s435
      %p447 = scmp.eq.s32.totalorder %s38, 1
      %p448 = por %p446, %p447
      %p450 = scmp.ne.s32.totalorder %s435, %s449
      %p451 = scmp.eq.s32.totalorder %s38, 0
      %p452 = por %p450, %p451
      %s454 = sadd.s32 %s453, 1
      %p457 = scmp.eq.s32.totalorder %s32, 1
      %p458 = scmp.ne.s32.totalorder %s453, %s455
      %p459 = scmp.eq.s32.totalorder %s32, 0
      %p460 = por %p458, %p459
      %p461 = scmp.ne.s32.totalorder %s453, %s455
      %p462 = scmp.eq.s32.totalorder %s37, 1
      %p463 = por %p461, %p462
      %p464 = scmp.ne.s32.totalorder %s455, %s456
      %p465 = scmp.eq.s32.totalorder %s37, 0
      %p466 = por %p464, %p465
      %p467 = scmp.ne.s32.totalorder %s455, %s456
      %p468 = scmp.eq.s32.totalorder %s38, 1
      %p469 = por %p467, %p468
      %p471 = scmp.ne.s32.totalorder %s456, %s470
      %p472 = scmp.eq.s32.totalorder %s38, 0
      %p473 = por %p471, %p472
      %s474 = ssub.s32 %s39, %s51
      %p475 = scmp.eq.s32.totalorder %s474, 0
      %s477 = sadd.s32 %s476, 1
      %s478 = scalar_select %p475, %s476, %s477
      %p481 = pneg %p475
      %p482 = scmp.eq.s32.totalorder %s32, 1
      %p483 = por %p481, %p482
      %p484 = scmp.ne.s32.totalorder %s476, %s479
      %p485 = scmp.eq.s32.totalorder %s32, 0
      %p486 = por %p484, %p485
      %p487 = scmp.ne.s32.totalorder %s476, %s479
      %p488 = scmp.eq.s32.totalorder %s37, 1
      %p489 = por %p487, %p488
      %p490 = scmp.ne.s32.totalorder %s479, %s480
      %p491 = scmp.eq.s32.totalorder %s37, 0
      %p492 = por %p490, %p491
      %p493 = scmp.ne.s32.totalorder %s479, %s480
      %p494 = scmp.eq.s32.totalorder %s38, 1
      %p495 = por %p493, %p494
      %p497 = scmp.ne.s32.totalorder %s480, %s496
      %p498 = scmp.eq.s32.totalorder %s38, 0
      %p499 = por %p497, %p498
      %p500 = scmp.le.s32.totalorder 1, %s32
      %p501 = scmp.lt.s32.totalorder %s32, 3
      %p502 = pnand %p500, %p501
      %p503 = pneg %p502
      // Predicated region
      $region9: #{tpu_custom_call.1} parent=5 // pred_check
        _
      $region10: #{tpu_custom_call.1} parent=5 // pred_check_branch
        %505 = sbr.rel (%p502) target = $region12
      $region11: #{tpu_custom_call.1} parent=5 // pred_region
        %s506 = ssub.s32 %s32, 1
        // Predicated region
        $region13: #{tpu_custom_call.1} parent=11 // pred_check
          %p507 = pneg %p70
        $region14: #{tpu_custom_call.1} parent=11 // pred_check_branch
          %509 = sbr.rel (%p507) target = $region16
        $region15: #{tpu_custom_call.1} parent=11 // pred_region
          %s510 = smul.u32 2, %s41
          %s512 = ssub.s32 256, 256
          %513 = vsyncadd [#allocation8], %s512
          %s514 = smul.addr %s510, 128
          %s515 = scalar_lea.hbm %s1, %s514
          %s516 = sshll.u32 [#allocation7], 4
          %s517 = int_to_ptr.vmem [resolvable:$true] %s516
          %522 = dma.hbm_to_vmem [thread:$0]  %s515, 256, %s517, [#allocation8], 128, 128, 8
        $region16: #{tpu_custom_call.1} parent=11 // pred_fallthru
          _
        // Predicated region
        $region17: #{tpu_custom_call.1} parent=11 // pred_check
          %p523 = pneg %p91
        $region18: #{tpu_custom_call.1} parent=11 // pred_check_branch
          %525 = sbr.rel (%p523) target = $region20
        $region19: #{tpu_custom_call.1} parent=11 // pred_region
          %s527 = ssub.s32 128, 128
          %528 = vsyncadd [#allocation11], %s527
          %s530 = sshll.u32 [#allocation10], 4
          %s531 = int_to_ptr.vmem [resolvable:$true] %s530
          %533 = dma.hbm_to_vmem [thread:$0]  %s2, 128, %s531, [#allocation11]
        $region20: #{tpu_custom_call.1} parent=11 // pred_fallthru
          _
        // Predicated region
        $region21: #{tpu_custom_call.1} parent=11 // pred_check
          %p534 = pneg %p424
        $region22: #{tpu_custom_call.1} parent=11 // pred_check_branch
          %536 = sbr.rel (%p534) target = $region24
        $region23: #{tpu_custom_call.1} parent=11 // pred_region
          %s538 = ssub.s32 16, 16
          %539 = vsyncadd [#allocation11], %s538
          %s541 = sshll.u32 [#allocation24], 4
          %s542 = int_to_ptr.vmem [resolvable:$true] %s541
          %544 = dma.hbm_to_vmem [thread:$0]  %s15, 16, %s542, [#allocation11]
        $region24: #{tpu_custom_call.1} parent=11 // pred_fallthru
          _
        // Predicated region
        $region25: #{tpu_custom_call.1} parent=11 // pred_check
          %p545 = pneg %p445
        $region26: #{tpu_custom_call.1} parent=11 // pred_check_branch
          %547 = sbr.rel (%p545) target = $region28
        $region27: #{tpu_custom_call.1} parent=11 // pred_region
          %s549 = ssub.s32 16, 16
          %550 = vsyncadd [#allocation26], %s549
          %s552 = sshll.u32 [#allocation25], 4
          %s553 = int_to_ptr.vmem [resolvable:$true] %s552
          %555 = dma.hbm_to_vmem [thread:$0]  %s16, 16, %s553, [#allocation26]
        $region28: #{tpu_custom_call.1} parent=11 // pred_fallthru
          _
        // Predicated region
        $region29: #{tpu_custom_call.1} parent=11 // pred_check
          %p556 = pneg %p466
        $region30: #{tpu_custom_call.1} parent=11 // pred_check_branch
          %558 = sbr.rel (%p556) target = $region32
        $region31: #{tpu_custom_call.1} parent=11 // pred_region
          %s560 = ssub.s32 256, 256
          %561 = vsyncadd [#allocation26], %s560
          %s562 = sshll.u32 [#allocation27], 4
          %s563 = int_to_ptr.vmem [resolvable:$true] %s562
          %568 = dma.hbm_to_vmem [thread:$0]  %s17, 256, %s563, [#allocation26], 64, 64, 4
        $region32: #{tpu_custom_call.1} parent=11 // pred_fallthru
          _
      $region12: #{tpu_custom_call.1} parent=5 // pred_fallthru
        _
      %p569 = scmp.lt.s32.totalorder %s32, 2
      // Predicated region
      $region33: #{tpu_custom_call.1} parent=5 // pred_check
        %p570 = pneg %p569
      $region34: #{tpu_custom_call.1} parent=5 // pred_check_branch
        %572 = sbr.rel (%p570) target = $region36
      $region35: #{tpu_custom_call.1} parent=5 // pred_region
        // Predicated region
        $region37: #{tpu_custom_call.1} parent=35 // pred_check
          %p573 = pneg %p111
        $region38: #{tpu_custom_call.1} parent=35 // pred_check_branch
          %575 = sbr.rel (%p573) target = $region40
        $region39: #{tpu_custom_call.1} parent=35 // pred_region
          %s576 = sand.u32 %s32, 1
          %s577 = scalar_lea.sflag [#allocation8], %s576
          %s578 = sand.u32 %s101, 1
          %s579 = scalar_lea.vmem [#allocation12], %s578
          %s581 = ssub.s32 16, 16
          %582 = vsyncadd %s577, %s581
          %s583 = smul.addr %s40, 16
          %s584 = scalar_lea.hbm %s3, %s583
          %s586 = sshll.u32 %s579, 4
          %s587 = int_to_ptr.vmem [resolvable:$true] %s586
          %589 = dma.hbm_to_vmem [thread:$0]  %s584, 16, %s587, %s577
        $region40: #{tpu_custom_call.1} parent=35 // pred_fallthru
          _
        // Predicated region
        $region41: #{tpu_custom_call.1} parent=35 // pred_check
          %p590 = pneg %p137
        $region42: #{tpu_custom_call.1} parent=35 // pred_check_branch
          %592 = sbr.rel (%p590) target = $region44
        $region43: #{tpu_custom_call.1} parent=35 // pred_region
          %s593 = sand.u32 %s32, 1
          %s594 = scalar_lea.sflag [#allocation8], %s593
          %s595 = sand.u32 %s127, 1
          %s596 = scalar_lea.vmem [#allocation13], %s595
          %s598 = ssub.s32 16, 16
          %599 = vsyncadd %s594, %s598
          %s600 = smul.addr %s40, 16
          %s601 = scalar_lea.hbm %s4, %s600
          %s603 = sshll.u32 %s596, 4
          %s604 = int_to_ptr.vmem [resolvable:$true] %s603
          %606 = dma.hbm_to_vmem [thread:$0]  %s601, 16, %s604, %s594
        $region44: #{tpu_custom_call.1} parent=35 // pred_fallthru
          _
        // Predicated region
        $region45: #{tpu_custom_call.1} parent=35 // pred_check
          %p607 = pneg %p163
        $region46: #{tpu_custom_call.1} parent=35 // pred_check_branch
          %609 = sbr.rel (%p607) target = $region48
        $region47: #{tpu_custom_call.1} parent=35 // pred_region
          %s610 = sand.u32 %s32, 1
          %s611 = scalar_lea.sflag [#allocation8], %s610
          %s612 = sand.u32 %s153, 1
          %s613 = smul.addr %s612, 16
          %s614 = scalar_lea.vmem [#allocation14], %s613
          %s616 = ssub.s32 256, 256
          %617 = vsyncadd %s611, %s616
          %s618 = smul.addr %s40, 4
          %s619 = smul.addr %s618, 64
          %s620 = scalar_lea.hbm %s5, %s619
          %s621 = sshll.u32 %s614, 4
          %s622 = int_to_ptr.vmem [resolvable:$true] %s621
          %627 = dma.hbm_to_vmem [thread:$0]  %s620, 256, %s622, %s611, 64, 64, 4
        $region48: #{tpu_custom_call.1} parent=35 // pred_fallthru
          _
        // Predicated region
        $region49: #{tpu_custom_call.1} parent=35 // pred_check
          %p628 = pneg %p189
        $region50: #{tpu_custom_call.1} parent=35 // pred_check_branch
          %630 = sbr.rel (%p628) target = $region52
        $region51: #{tpu_custom_call.1} parent=35 // pred_region
          %s631 = sand.u32 %s32, 1
          %s632 = scalar_lea.sflag [#allocation8], %s631
          %s633 = sand.u32 %s179, 1
          %s634 = scalar_lea.vmem [#allocation15], %s633
          %s636 = ssub.s32 16, 16
          %637 = vsyncadd %s632, %s636
          %s638 = smul.addr %s40, 16
          %s639 = scalar_lea.hbm %s6, %s638
          %s641 = sshll.u32 %s634, 4
          %s642 = int_to_ptr.vmem [resolvable:$true] %s641
          %644 = dma.hbm_to_vmem [thread:$0]  %s639, 16, %s642, %s632
        $region52: #{tpu_custom_call.1} parent=35 // pred_fallthru
          _
        // Predicated region
        $region53: #{tpu_custom_call.1} parent=35 // pred_check
          %p645 = pneg %p215
        $region54: #{tpu_custom_call.1} parent=35 // pred_check_branch
          %647 = sbr.rel (%p645) target = $region56
        $region55: #{tpu_custom_call.1} parent=35 // pred_region
          %s648 = sand.u32 %s32, 1
          %s649 = scalar_lea.sflag [#allocation8], %s648
          %s650 = sand.u32 %s205, 1
          %s651 = smul.addr %s650, 16
          %s652 = scalar_lea.vmem [#allocation16], %s651
          %s654 = ssub.s32 256, 256
          %655 = vsyncadd %s649, %s654
          %s656 = smul.addr %s40, 4
          %s657 = smul.addr %s656, 64
          %s658 = scalar_lea.hbm %s7, %s657
          %s659 = sshll.u32 %s652, 4
          %s660 = int_to_ptr.vmem [resolvable:$true] %s659
          %665 = dma.hbm_to_vmem [thread:$0]  %s658, 256, %s660, %s649, 64, 64, 4
        $region56: #{tpu_custom_call.1} parent=35 // pred_fallthru
          _
        // Predicated region
        $region57: #{tpu_custom_call.1} parent=35 // pred_check
          %p666 = pneg %p241
        $region58: #{tpu_custom_call.1} parent=35 // pred_check_branch
          %668 = sbr.rel (%p666) target = $region60
        $region59: #{tpu_custom_call.1} parent=35 // pred_region
          %s669 = sand.u32 %s32, 1
          %s670 = scalar_lea.sflag [#allocation8], %s669
          %s671 = sand.u32 %s231, 1
          %s672 = scalar_lea.vmem [#allocation17], %s671
          %s674 = ssub.s32 16, 16
          %675 = vsyncadd %s670, %s674
          %s676 = smul.addr %s40, 16
          %s677 = scalar_lea.hbm %s8, %s676
          %s679 = sshll.u32 %s672, 4
          %s680 = int_to_ptr.vmem [resolvable:$true] %s679
          %682 = dma.hbm_to_vmem [thread:$0]  %s677, 16, %s680, %s670
        $region60: #{tpu_custom_call.1} parent=35 // pred_fallthru
          _
        // Predicated region
        $region61: #{tpu_custom_call.1} parent=35 // pred_check
          %p683 = pneg %p267
        $region62: #{tpu_custom_call.1} parent=35 // pred_check_branch
          %685 = sbr.rel (%p683) target = $region64
        $region63: #{tpu_custom_call.1} parent=35 // pred_region
          %s686 = sand.u32 %s32, 1
          %s687 = scalar_lea.sflag [#allocation8], %s686
          %s688 = sand.u32 %s257, 1
          %s689 = scalar_lea.vmem [#allocation18], %s688
          %s691 = ssub.s32 16, 16
          %692 = vsyncadd %s687, %s691
          %s693 = smul.addr %s40, 16
          %s694 = scalar_lea.hbm %s9, %s693
          %s696 = sshll.u32 %s689, 4
          %s697 = int_to_ptr.vmem [resolvable:$true] %s696
          %699 = dma.hbm_to_vmem [thread:$0]  %s694, 16, %s697, %s687
        $region64: #{tpu_custom_call.1} parent=35 // pred_fallthru
          _
        // Predicated region
        $region65: #{tpu_custom_call.1} parent=35 // pred_check
          %p700 = pneg %p293
        $region66: #{tpu_custom_call.1} parent=35 // pred_check_branch
          %702 = sbr.rel (%p700) target = $region68
        $region67: #{tpu_custom_call.1} parent=35 // pred_region
          %s703 = sand.u32 %s32, 1
          %s704 = scalar_lea.sflag [#allocation8], %s703
          %s705 = sand.u32 %s283, 1
          %s706 = scalar_lea.vmem [#allocation19], %s705
          %s708 = ssub.s32 16, 16
          %709 = vsyncadd %s704, %s708
          %s710 = smul.addr %s40, 16
          %s711 = scalar_lea.hbm %s10, %s710
          %s713 = sshll.u32 %s706, 4
          %s714 = int_to_ptr.vmem [resolvable:$true] %s713
          %716 = dma.hbm_to_vmem [thread:$0]  %s711, 16, %s714, %s704
        $region68: #{tpu_custom_call.1} parent=35 // pred_fallthru
          _
        // Predicated region
        $region69: #{tpu_custom_call.1} parent=35 // pred_check
          %p717 = pneg %p319
        $region70: #{tpu_custom_call.1} parent=35 // pred_check_branch
          %719 = sbr.rel (%p717) target = $region72
        $region71: #{tpu_custom_call.1} parent=35 // pred_region
          %s720 = sand.u32 %s32, 1
          %s721 = scalar_lea.sflag [#allocation8], %s720
          %s722 = sand.u32 %s309, 1
          %s723 = smul.addr %s722, 16
          %s724 = scalar_lea.vmem [#allocation20], %s723
          %s726 = ssub.s32 256, 256
          %727 = vsyncadd %s721, %s726
          %s728 = smul.addr %s40, 4
          %s729 = smul.addr %s728, 64
          %s730 = scalar_lea.hbm %s11, %s729
          %s731 = sshll.u32 %s724, 4
          %s732 = int_to_ptr.vmem [resolvable:$true] %s731
          %737 = dma.hbm_to_vmem [thread:$0]  %s730, 256, %s732, %s721, 64, 64, 4
        $region72: #{tpu_custom_call.1} parent=35 // pred_fallthru
          _
        // Predicated region
        $region73: #{tpu_custom_call.1} parent=35 // pred_check
          %p738 = pneg %p345
        $region74: #{tpu_custom_call.1} parent=35 // pred_check_branch
          %740 = sbr.rel (%p738) target = $region76
        $region75: #{tpu_custom_call.1} parent=35 // pred_region
          %s741 = sand.u32 %s32, 1
          %s742 = scalar_lea.sflag [#allocation8], %s741
          %s743 = sand.u32 %s335, 1
          %s744 = scalar_lea.vmem [#allocation21], %s743
          %s746 = ssub.s32 16, 16
          %747 = vsyncadd %s742, %s746
          %s748 = smul.addr %s40, 16
          %s749 = scalar_lea.hbm %s12, %s748
          %s751 = sshll.u32 %s744, 4
          %s752 = int_to_ptr.vmem [resolvable:$true] %s751
          %754 = dma.hbm_to_vmem [thread:$0]  %s749, 16, %s752, %s742
        $region76: #{tpu_custom_call.1} parent=35 // pred_fallthru
          _
        // Predicated region
        $region77: #{tpu_custom_call.1} parent=35 // pred_check
          %p755 = pneg %p371
        $region78: #{tpu_custom_call.1} parent=35 // pred_check_branch
          %757 = sbr.rel (%p755) target = $region80
        $region79: #{tpu_custom_call.1} parent=35 // pred_region
          %s758 = sand.u32 %s32, 1
          %s759 = scalar_lea.sflag [#allocation8], %s758
          %s760 = sand.u32 %s361, 1
          %s761 = smul.addr %s760, 64
          %s762 = scalar_lea.vmem [#allocation22], %s761
          %s764 = ssub.s32 1024, 1024
          %765 = vsyncadd %s759, %s764
          %s766 = smul.addr %s40, 16
          %s767 = smul.addr %s766, 64
          %s768 = scalar_lea.hbm %s13, %s767
          %s769 = sshll.u32 %s762, 4
          %s770 = int_to_ptr.vmem [resolvable:$true] %s769
          %775 = dma.hbm_to_vmem [thread:$0]  %s768, 1024, %s770, %s759, 64, 64, 4
        $region80: #{tpu_custom_call.1} parent=35 // pred_fallthru
          _
        // Predicated region
        $region81: #{tpu_custom_call.1} parent=35 // pred_check
          %p776 = pneg %p397
        $region82: #{tpu_custom_call.1} parent=35 // pred_check_branch
          %778 = sbr.rel (%p776) target = $region84
        $region83: #{tpu_custom_call.1} parent=35 // pred_region
          %s779 = sand.u32 %s32, 1
          %s780 = scalar_lea.sflag [#allocation8], %s779
          %s781 = sand.u32 %s387, 1
          %s782 = scalar_lea.vmem [#allocation23], %s781
          %s784 = ssub.s32 16, 16
          %785 = vsyncadd %s780, %s784
          %s786 = smul.addr %s40, 16
          %s787 = scalar_lea.hbm %s14, %s786
          %s789 = sshll.u32 %s782, 4
          %s790 = int_to_ptr.vmem [resolvable:$true] %s789
          %792 = dma.hbm_to_vmem [thread:$0]  %s787, 16, %s790, %s780
        $region84: #{tpu_custom_call.1} parent=35 // pred_fallthru
          _
      $region36: #{tpu_custom_call.1} parent=5 // pred_fallthru
        _
      %p793 = scmp.le.s32.totalorder 1, %s32
      %p794 = scmp.lt.s32.totalorder %s32, 3
      %p795 = pnand %p793, %p794
      %p796 = pneg %p795
      // Predicated region
      $region85: #{tpu_custom_call.1} parent=5 // pred_check
        _
      $region86: #{tpu_custom_call.1} parent=5 // pred_check_branch
        %798 = sbr.rel (%p795) target = $region88
      $region87: #{tpu_custom_call.1} parent=5 // pred_region
        %s799 = ssub.s32 %s32, 1
        // Predicated region
        $region89: #{tpu_custom_call.1} parent=87 // pred_check
          %p800 = pneg %p70
        $region90: #{tpu_custom_call.1} parent=87 // pred_check_branch
          %802 = sbr.rel (%p800) target = $region92
        $region91: #{tpu_custom_call.1} parent=87 // pred_region
          %803 = dma.done [#allocation8], 256
        $region92: #{tpu_custom_call.1} parent=87 // pred_fallthru
          _
        // Predicated region
        $region93: #{tpu_custom_call.1} parent=87 // pred_check
          %p804 = pneg %p91
        $region94: #{tpu_custom_call.1} parent=87 // pred_check_branch
          %806 = sbr.rel (%p804) target = $region96
        $region95: #{tpu_custom_call.1} parent=87 // pred_region
          %807 = dma.done [#allocation11], 128
        $region96: #{tpu_custom_call.1} parent=87 // pred_fallthru
          _
        %s808 = sand.u32 %s37, 1
        %s809 = scalar_lea.sflag [#allocation8], %s808
        %s810 = sand.u32 %s104, 1
        %s811 = scalar_lea.vmem [#allocation12], %s810
        // Predicated region
        $region97: #{tpu_custom_call.1} parent=87 // pred_check
          %p812 = pneg %p117
        $region98: #{tpu_custom_call.1} parent=87 // pred_check_branch
          %814 = sbr.rel (%p812) target = $region100
        $region99: #{tpu_custom_call.1} parent=87 // pred_region
          %815 = dma.done %s809, 16
        $region100: #{tpu_custom_call.1} parent=87 // pred_fallthru
          _
        %s816 = sand.u32 %s37, 1
        %s817 = scalar_lea.sflag [#allocation8], %s816
        %s818 = sand.u32 %s130, 1
        %s819 = scalar_lea.vmem [#allocation13], %s818
        // Predicated region
        $region101: #{tpu_custom_call.1} parent=87 // pred_check
          %p820 = pneg %p143
        $region102: #{tpu_custom_call.1} parent=87 // pred_check_branch
          %822 = sbr.rel (%p820) target = $region104
        $region103: #{tpu_custom_call.1} parent=87 // pred_region
          %823 = dma.done %s817, 16
        $region104: #{tpu_custom_call.1} parent=87 // pred_fallthru
          _
        %s824 = sand.u32 %s37, 1
        %s825 = scalar_lea.sflag [#allocation8], %s824
        %s826 = sand.u32 %s156, 1
        %s827 = smul.addr %s826, 16
        %s828 = scalar_lea.vmem [#allocation14], %s827
        // Predicated region
        $region105: #{tpu_custom_call.1} parent=87 // pred_check
          %p829 = pneg %p169
        $region106: #{tpu_custom_call.1} parent=87 // pred_check_branch
          %831 = sbr.rel (%p829) target = $region108
        $region107: #{tpu_custom_call.1} parent=87 // pred_region
          %832 = dma.done %s825, 256
        $region108: #{tpu_custom_call.1} parent=87 // pred_fallthru
          _
        %s833 = sand.u32 %s37, 1
        %s834 = scalar_lea.sflag [#allocation8], %s833
        %s835 = sand.u32 %s182, 1
        %s836 = scalar_lea.vmem [#allocation15], %s835
        // Predicated region
        $region109: #{tpu_custom_call.1} parent=87 // pred_check
          %p837 = pneg %p195
        $region110: #{tpu_custom_call.1} parent=87 // pred_check_branch
          %839 = sbr.rel (%p837) target = $region112
        $region111: #{tpu_custom_call.1} parent=87 // pred_region
          %840 = dma.done %s834, 16
        $region112: #{tpu_custom_call.1} parent=87 // pred_fallthru
          _
        %s841 = sand.u32 %s37, 1
        %s842 = scalar_lea.sflag [#allocation8], %s841
        %s843 = sand.u32 %s208, 1
        %s844 = smul.addr %s843, 16
        %s845 = scalar_lea.vmem [#allocation16], %s844
        // Predicated region
        $region113: #{tpu_custom_call.1} parent=87 // pred_check
          %p846 = pneg %p221
        $region114: #{tpu_custom_call.1} parent=87 // pred_check_branch
          %848 = sbr.rel (%p846) target = $region116
        $region115: #{tpu_custom_call.1} parent=87 // pred_region
          %849 = dma.done %s842, 256
        $region116: #{tpu_custom_call.1} parent=87 // pred_fallthru
          _
        %s850 = sand.u32 %s37, 1
        %s851 = scalar_lea.sflag [#allocation8], %s850
        %s852 = sand.u32 %s234, 1
        %s853 = scalar_lea.vmem [#allocation17], %s852
        // Predicated region
        $region117: #{tpu_custom_call.1} parent=87 // pred_check
          %p854 = pneg %p247
        $region118: #{tpu_custom_call.1} parent=87 // pred_check_branch
          %856 = sbr.rel (%p854) target = $region120
        $region119: #{tpu_custom_call.1} parent=87 // pred_region
          %857 = dma.done %s851, 16
        $region120: #{tpu_custom_call.1} parent=87 // pred_fallthru
          _
        %s858 = sand.u32 %s37, 1
        %s859 = scalar_lea.sflag [#allocation8], %s858
        %s860 = sand.u32 %s260, 1
        %s861 = scalar_lea.vmem [#allocation18], %s860
        // Predicated region
        $region121: #{tpu_custom_call.1} parent=87 // pred_check
          %p862 = pneg %p273
        $region122: #{tpu_custom_call.1} parent=87 // pred_check_branch
          %864 = sbr.rel (%p862) target = $region124
        $region123: #{tpu_custom_call.1} parent=87 // pred_region
          %865 = dma.done %s859, 16
        $region124: #{tpu_custom_call.1} parent=87 // pred_fallthru
          _
        %s866 = sand.u32 %s37, 1
        %s867 = scalar_lea.sflag [#allocation8], %s866
        %s868 = sand.u32 %s286, 1
        %s869 = scalar_lea.vmem [#allocation19], %s868
        // Predicated region
        $region125: #{tpu_custom_call.1} parent=87 // pred_check
          %p870 = pneg %p299
        $region126: #{tpu_custom_call.1} parent=87 // pred_check_branch
          %872 = sbr.rel (%p870) target = $region128
        $region127: #{tpu_custom_call.1} parent=87 // pred_region
          %873 = dma.done %s867, 16
        $region128: #{tpu_custom_call.1} parent=87 // pred_fallthru
          _
        %s874 = sand.u32 %s37, 1
        %s875 = scalar_lea.sflag [#allocation8], %s874
        %s876 = sand.u32 %s312, 1
        %s877 = smul.addr %s876, 16
        %s878 = scalar_lea.vmem [#allocation20], %s877
        // Predicated region
        $region129: #{tpu_custom_call.1} parent=87 // pred_check
          %p879 = pneg %p325
        $region130: #{tpu_custom_call.1} parent=87 // pred_check_branch
          %881 = sbr.rel (%p879) target = $region132
        $region131: #{tpu_custom_call.1} parent=87 // pred_region
          %882 = dma.done %s875, 256
        $region132: #{tpu_custom_call.1} parent=87 // pred_fallthru
          _
        %s883 = sand.u32 %s37, 1
        %s884 = scalar_lea.sflag [#allocation8], %s883
        %s885 = sand.u32 %s338, 1
        %s886 = scalar_lea.vmem [#allocation21], %s885
        // Predicated region
        $region133: #{tpu_custom_call.1} parent=87 // pred_check
          %p887 = pneg %p351
        $region134: #{tpu_custom_call.1} parent=87 // pred_check_branch
          %889 = sbr.rel (%p887) target = $region136
        $region135: #{tpu_custom_call.1} parent=87 // pred_region
          %890 = dma.done %s884, 16
        $region136: #{tpu_custom_call.1} parent=87 // pred_fallthru
          _
        %s891 = sand.u32 %s37, 1
        %s892 = scalar_lea.sflag [#allocation8], %s891
        %s893 = sand.u32 %s364, 1
        %s894 = smul.addr %s893, 64
        %s895 = scalar_lea.vmem [#allocation22], %s894
        // Predicated region
        $region137: #{tpu_custom_call.1} parent=87 // pred_check
          %p896 = pneg %p377
        $region138: #{tpu_custom_call.1} parent=87 // pred_check_branch
          %898 = sbr.rel (%p896) target = $region140
        $region139: #{tpu_custom_call.1} parent=87 // pred_region
          %899 = dma.done %s892, 1024
        $region140: #{tpu_custom_call.1} parent=87 // pred_fallthru
          _
        %s900 = sand.u32 %s37, 1
        %s901 = scalar_lea.sflag [#allocation8], %s900
        %s902 = sand.u32 %s390, 1
        %s903 = scalar_lea.vmem [#allocation23], %s902
        // Predicated region
        $region141: #{tpu_custom_call.1} parent=87 // pred_check
          %p904 = pneg %p403
        $region142: #{tpu_custom_call.1} parent=87 // pred_check_branch
          %906 = sbr.rel (%p904) target = $region144
        $region143: #{tpu_custom_call.1} parent=87 // pred_region
          %907 = dma.done %s901, 16
        $region144: #{tpu_custom_call.1} parent=87 // pred_fallthru
          _
        // Predicated region
        $region145: #{tpu_custom_call.1} parent=87 // pred_check
          %p908 = pneg %p424
        $region146: #{tpu_custom_call.1} parent=87 // pred_check_branch
          %910 = sbr.rel (%p908) target = $region148
        $region147: #{tpu_custom_call.1} parent=87 // pred_region
          %911 = dma.done [#allocation11], 16
        $region148: #{tpu_custom_call.1} parent=87 // pred_fallthru
          _
        // Predicated region
        $region149: #{tpu_custom_call.1} parent=87 // pred_check
          %p912 = pneg %p445
        $region150: #{tpu_custom_call.1} parent=87 // pred_check_branch
          %914 = sbr.rel (%p912) target = $region152
        $region151: #{tpu_custom_call.1} parent=87 // pred_region
          %915 = dma.done [#allocation26], 16
        $region152: #{tpu_custom_call.1} parent=87 // pred_fallthru
          _
        // Predicated region
        $region153: #{tpu_custom_call.1} parent=87 // pred_check
          %p916 = pneg %p466
        $region154: #{tpu_custom_call.1} parent=87 // pred_check_branch
          %918 = sbr.rel (%p916) target = $region156
        $region155: #{tpu_custom_call.1} parent=87 // pred_region
          %919 = dma.done [#allocation26], 256
        $region156: #{tpu_custom_call.1} parent=87 // pred_fallthru
          _
        %p920 = pneg %p70
        %p921 = pneg %p67
        %p922 = pneg %p91
        %p923 = pneg %p88
        %s924 = sand.u32 %s37, 1
        %s925 = scalar_lea.sflag [#allocation8], %s924
        %s926 = sand.u32 %s104, 1
        %s927 = scalar_lea.vmem [#allocation12], %s926
        %p928 = pneg %p117
        %p929 = pneg %p114
        %s930 = sand.u32 %s37, 1
        %s931 = scalar_lea.sflag [#allocation8], %s930
        %s932 = sand.u32 %s130, 1
        %s933 = scalar_lea.vmem [#allocation13], %s932
        %p934 = pneg %p143
        %p935 = pneg %p140
        %s936 = sand.u32 %s37, 1
        %s937 = scalar_lea.sflag [#allocation8], %s936
        %s938 = sand.u32 %s156, 1
        %s939 = smul.addr %s938, 16
        %s940 = scalar_lea.vmem [#allocation14], %s939
        %p941 = pneg %p169
        %p942 = pneg %p166
        %s943 = sand.u32 %s37, 1
        %s944 = scalar_lea.sflag [#allocation8], %s943
        %s945 = sand.u32 %s182, 1
        %s946 = scalar_lea.vmem [#allocation15], %s945
        %p947 = pneg %p195
        %p948 = pneg %p192
        %s949 = sand.u32 %s37, 1
        %s950 = scalar_lea.sflag [#allocation8], %s949
        %s951 = sand.u32 %s208, 1
        %s952 = smul.addr %s951, 16
        %s953 = scalar_lea.vmem [#allocation16], %s952
        %p954 = pneg %p221
        %p955 = pneg %p218
        %s956 = sand.u32 %s37, 1
        %s957 = scalar_lea.sflag [#allocation8], %s956
        %s958 = sand.u32 %s234, 1
        %s959 = scalar_lea.vmem [#allocation17], %s958
        %p960 = pneg %p247
        %p961 = pneg %p244
        %s962 = sand.u32 %s37, 1
        %s963 = scalar_lea.sflag [#allocation8], %s962
        %s964 = sand.u32 %s260, 1
        %s965 = scalar_lea.vmem [#allocation18], %s964
        %p966 = pneg %p273
        %p967 = pneg %p270
        %s968 = sand.u32 %s37, 1
        %s969 = scalar_lea.sflag [#allocation8], %s968
        %s970 = sand.u32 %s286, 1
        %s971 = scalar_lea.vmem [#allocation19], %s970
        %p972 = pneg %p299
        %p973 = pneg %p296
        %s974 = sand.u32 %s37, 1
        %s975 = scalar_lea.sflag [#allocation8], %s974
        %s976 = sand.u32 %s312, 1
        %s977 = smul.addr %s976, 16
        %s978 = scalar_lea.vmem [#allocation20], %s977
        %p979 = pneg %p325
        %p980 = pneg %p322
        %s981 = sand.u32 %s37, 1
        %s982 = scalar_lea.sflag [#allocation8], %s981
        %s983 = sand.u32 %s338, 1
        %s984 = scalar_lea.vmem [#allocation21], %s983
        %p985 = pneg %p351
        %p986 = pneg %p348
        %s987 = sand.u32 %s37, 1
        %s988 = scalar_lea.sflag [#allocation8], %s987
        %s989 = sand.u32 %s364, 1
        %s990 = smul.addr %s989, 64
        %s991 = scalar_lea.vmem [#allocation22], %s990
        %p992 = pneg %p377
        %p993 = pneg %p374
        %s994 = sand.u32 %s37, 1
        %s995 = scalar_lea.sflag [#allocation8], %s994
        %s996 = sand.u32 %s390, 1
        %s997 = scalar_lea.vmem [#allocation23], %s996
        %p998 = pneg %p403
        %p999 = pneg %p400
        %p1000 = pneg %p424
        %p1001 = pneg %p421
        %p1002 = pneg %p445
        %p1003 = pneg %p442
        %p1004 = pneg %p466
        %p1005 = pneg %p463
        %p1006 = pneg %p492
        %p1007 = pneg %p489
        %s1008 = smul.u32 2, %s41
        %p1010 = scmp.eq.s32.totalorder %s42, 0
        // Predicated region
        $region157: #{tpu_custom_call.1} parent=87 // pred_check
          %p1011 = pneg %p1010
        $region158: #{tpu_custom_call.1} parent=87 // pred_check_branch
          %1013 = sbr.rel (%p1011) target = $region160
        $region159: #{tpu_custom_call.1} parent=87 // pred_region
          %v1014 = vld [vmem:[#allocation7] sm:$0xff]
          %v1015 = vld [vmem:[#allocation7 + $0x8] sm:$0xff]
          %v1016 = vld [vmem:[#allocation10] sm:$0xff]
          %v1017 = vadd.f32 %v1014, %v1016
          %v1018 = vadd.f32 %v1015, %v1016
          %vm1019 = vcmask 261120
          %1020 = vst.msk [vmem:[#allocation2] sm:$0xff] %vm1019, %v1017
          %1021 = vst.msk [vmem:[#allocation2 + $0x8] sm:$0xff] %vm1019, %v1018
        $region160: #{tpu_custom_call.1} parent=87 // pred_fallthru
          _
        %v1022 = vld [vmem:[#allocation2] sm:$0xff]
        %v1023 = vld [vmem:[#allocation2 + $0x8] sm:$0xff]
        %v1024 = vld [vmem:[%s811] sm:$0x1]
        %v1025 = vld [vmem:[%s819] sm:$0x1]
        %vm1026 = vcmask 261120
        %v1027 = vsel %vm1026, %v1022, 0.0
        %1028 = vadd.xlane.f32.xlu0 %v1027
        %v1029 = vpop.xlane.xlu0 %1028
        %v1030 = vsel %vm1026, %v1023, 0.0
        %1031 = vadd.xlane.f32.xlu0 %v1030
        %v1032 = vpop.xlane.xlu0 %1031
        %v1033 = vrcp.pop 32.0
        %v1034 = vmul.f32 %v1029, %v1033
        %v1035 = vmul.f32 %v1032, %v1033
        %v1036 = vsub.f32 %v1022, %v1034
        %v1037 = vsub.f32 %v1023, %v1035
        %v1038 = vmul.f32 %v1036, %v1036
        %v1039 = vmul.f32 %v1037, %v1037
        %v1040 = vsel %vm1026, %v1038, 0.0
        %1041 = vadd.xlane.f32.xlu0 %v1040
        %v1042 = vpop.xlane.xlu0 %1041
        %v1043 = vsel %vm1026, %v1039, 0.0
        %1044 = vadd.xlane.f32.xlu0 %v1043
        %v1045 = vpop.xlane.xlu0 %1044
        %v1046 = vmul.f32 %v1042, %v1033
        %v1047 = vmul.f32 %v1045, %v1033
        %v1048 = vadd.f32 %v1046, 1e-05
        %v1049 = vadd.f32 %v1047, 1e-05
        %v1050 = vrsqrt.pop %v1048
        %v1051 = vrsqrt.pop %v1049
        %v1052 = vmul.f32 %v1036, %v1050
        %v1053 = vmul.f32 %v1037, %v1051
        %v1055 = vlaneseq
        %v1056 = vshrl.u32 %v1055, 7
        %v1057 = vsub.s32 0, %v1056
        %v1058 = vrot.slane %v1024, %v1057
        %v1060 = vmul.f32 %v1052, %v1058
        %v1061 = vmul.f32 %v1053, %v1058
        %v1063 = vlaneseq
        %v1064 = vshrl.u32 %v1063, 7
        %v1065 = vsub.s32 0, %v1064
        %v1066 = vrot.slane %v1025, %v1065
        %v1068 = vadd.f32 %v1060, %v1066
        %v1069 = vadd.f32 %v1061, %v1066
        %v1070 = vpack.c.bf16 %v1069, %v1068
        %v1071 = vld [vmem:[%s828] sm:$0xf]
        %v1072 = vld [vmem:[%s828 + $0x4] sm:$0xf]
        %v1073 = vld [vmem:[%s828 + $0x8] sm:$0xf]
        %v1074 = vld [vmem:[%s828 + $0xc] sm:$0xf]
        %v1075 = vld [vmem:[%s836] sm:$0x1]
        %v1077 = vlaneseq
        %v1078 = vshrl.u32 %v1077, 7
        %v1079 = vsub.s32 0, %v1078
        %v1080 = vrot.slane %v1075, %v1079
        %v1086 = vunpack.c.l.b16 %v1071
        %v1087 = vunpack.c.l.b16 %v1072
        %v1088 = vunpack.c.l.b16 %v1073
        %v1089 = vunpack.c.l.b16 %v1074
        %v1090 = vpack.c.b16 %v1087, %v1086
        %v1091 = vpack.c.b16 %v1089, %v1088
        %v1095 = vsel %vm1026, %v1070, 0
        %1097 = vmatprep.subr.bf16.mxu0 0
        %1098 = vmatpush1.bf16.msra.mxu0 %v1090
        %1099 = vmatprep.subr.bf16.mxu0 0
        %1100 = vmatpush1.bf16.msra.mxu0 %v1091
        %1101 = vmatprep.subr.bf16.mxu0 0
        %1102 = vmatpush1.bf16.msra.mxu0 0
        %1103 = vmatprep.subr.bf16.mxu0 0
        %1104 = vmatpush1.bf16.msra.mxu0 0
        %1105 = vmatprep.subr.bf16.mxu0 0
        %1106 = vmatpush1.bf16.msra.mxu0 0
        %1107 = vmatprep.subr.bf16.mxu0 0
        %1108 = vmatpush1.bf16.msra.mxu0 0
        %1109 = vmatprep.subr.bf16.mxu0 0
        %1110 = vmatpush1.bf16.msra.mxu0 0
        %1111 = vmatprep.subr.bf16.mxu0 0
        %1112 = vmatpush1.bf16.msra.mxu0 0
        %1113 = vmatprep.subr.bf16.mxu0 0
        %1114 = vmatpush1.bf16.msra.mxu0 0
        %1115 = vmatprep.subr.bf16.mxu0 0
        %1116 = vmatpush1.bf16.msra.mxu0 0
        %1117 = vmatprep.subr.bf16.mxu0 0
        %1118 = vmatpush1.bf16.msra.mxu0 0
        %1119 = vmatprep.subr.bf16.mxu0 0
        %1120 = vmatpush1.bf16.msra.mxu0 0
        %1121 = vmatprep.subr.bf16.mxu0 0
        %1122 = vmatpush1.bf16.msra.mxu0 0
        %1123 = vmatprep.subr.bf16.mxu0 0
        %1124 = vmatpush1.bf16.msra.mxu0 0
        %1125 = vmatprep.subr.bf16.mxu0 0
        %1126 = vmatpush1.bf16.msra.mxu0 0
        %1127 = vmatprep.subr.bf16.mxu0 0
        %1128 = vmatpush1.bf16.msra.mxu0 0
        %1129 = vmatprep.mubr.bf16.mxu0 0
        %1130 = vmatmul.mubr.bf16.gmra.mrb[0].mxu0 %v1095
        %v1131 = vpop.f32.mrb[0].mxu0
        %v1132 = vadd.f32 %v1080, %v1131
        %v1133 = vpop.f32.mrb[0].mxu0
        %v1134 = vpop.f32.mrb[0].mxu0
        %v1135 = vadd.f32 %v1080, %v1134
        %v1136 = vpop.f32.mrb[0].mxu0
        %1137 = vdwg.mxu0
        %v1138 = vpack.c.bf16 %v1135, %v1132
        %vm1139 = vcmask 785408
        %1140 = vst.msk [vmem:[#allocation3] sm:$0xff] %vm1139, %v1138
        %v1141 = vlaneseq
        %v1142 = vshrl.u32 %v1141, 7
        %v1143 = vlaneseq
        %v1144 = vand.u32 %v1143, 127
        %vm1145 = vcmp.gt.s32.totalorder %v1144, %v1142
        %v1146 = vsel %vm1145, -1e+09, 0.0
        %v1147 = vld [vmem:[#allocation3] sm:$0xf]
        %1149 = vrot.lane.b32.xlu0 %v1147, 96
        %v1150 = vpop.permute.xlu0 %1149
        %vm1151 = vcmask 64512
        %v1153 = vsel %vm1151, %v1147, 0
        %v1156 = vsel %vm1151, %v1150, 0
        %1158 = vmatprep.subr.bf16.mxu0 0
        %1159 = vmatpush1.bf16.xpose.msra.mxu0 %v1156
        %1160 = vmatprep.subr.bf16.mxu0 0
        %1161 = vmatpush1.bf16.xpose.msra.mxu0 0
        %1162 = vmatprep.subr.bf16.mxu0 0
        %1163 = vmatpush1.bf16.xpose.msra.mxu0 0
        %1164 = vmatprep.subr.bf16.mxu0 0
        %1165 = vmatpush1.bf16.xpose.msra.mxu0 0
        %1166 = vmatprep.subr.bf16.mxu0 0
        %1167 = vmatpush1.bf16.xpose.msra.mxu0 0
        %1168 = vmatprep.subr.bf16.mxu0 0
        %1169 = vmatpush1.bf16.xpose.msra.mxu0 0
        %1170 = vmatprep.subr.bf16.mxu0 0
        %1171 = vmatpush1.bf16.xpose.msra.mxu0 0
        %1172 = vmatprep.subr.bf16.mxu0 0
        %1173 = vmatpush1.bf16.xpose.msra.mxu0 0
        %1174 = vmatprep.subr.bf16.mxu0 0
        %1175 = vmatpush1.bf16.xpose.msra.mxu0 0
        %1176 = vmatprep.subr.bf16.mxu0 0
        %1177 = vmatpush1.bf16.xpose.msra.mxu0 0
        %1178 = vmatprep.subr.bf16.mxu0 0
        %1179 = vmatpush1.bf16.xpose.msra.mxu0 0
        %1180 = vmatprep.subr.bf16.mxu0 0
        %1181 = vmatpush1.bf16.xpose.msra.mxu0 0
        %1182 = vmatprep.subr.bf16.mxu0 0
        %1183 = vmatpush1.bf16.xpose.msra.mxu0 0
        %1184 = vmatprep.subr.bf16.mxu0 0
        %1185 = vmatpush1.bf16.xpose.msra.mxu0 0
        %1186 = vmatprep.subr.bf16.mxu0 0
        %1187 = vmatpush1.bf16.xpose.msra.mxu0 0
        %1188 = vmatprep.subr.bf16.mxu0 0
        %1189 = vmatpush1.bf16.xpose.msra.mxu0 0
        %1190 = vmatprep.mubr.bf16.mxu0 0
        %1191 = vmatmul.mubr.bf16.gmra.mrb[0].mxu0 %v1153
        %v1192 = vpop.f32.mrb[0].mxu0
        %v1193 = vadd.f32 0.0, %v1192
        %v1194 = vpop.f32.mrb[0].mxu0
        %v1195 = vpop.f32.mrb[0].mxu0
        %v1196 = vpop.f32.mrb[0].mxu0
        %1197 = vdwg.mxu0
        %v1198 = vmul.f32 %v1193, 0.35355338
        %v1199 = vadd.f32 %v1198, %v1146
        %v1200 = vsel %vm1151, %v1199, -inf
        %1201 = vmax.xlane.f32.xlu0 %v1200
        %v1202 = vpop.xlane.xlu0 %1201
        %v1203 = vsub.f32 %v1199, %v1202
        %v1204 = vmul.f32 %v1203, 1.442695
        %v1205 = vpow.pop %v1204
        %v1206 = vsel %vm1151, %v1205, 0.0
        %1207 = vadd.xlane.f32.xlu0 %v1206
        %v1208 = vpop.xlane.xlu0 %1207
        %v1209 = vrcp.pop %v1208
        %v1210 = vmul.f32 %v1205, %v1209
        %v1211 = vpack.c.bf16 %v1210, %v1210
        %1212 = vrot.lane.b32.xlu0 %v1147, 64
        %v1213 = vpop.permute.xlu0 %1212
        %v1215 = vsel %vm1151, %v1211, 0
        %vm1217 = vcmask 1043456
        %v1219 = vsel %vm1217, %v1213, 0
        %1221 = vmatprep.subr.bf16.mxu0 0
        %1222 = vmatpush1.bf16.msra.mxu0 %v1219
        %1223 = vmatprep.subr.bf16.mxu0 0
        %1224 = vmatpush1.bf16.msra.mxu0 0
        %1225 = vmatprep.subr.bf16.mxu0 0
        %1226 = vmatpush1.bf16.msra.mxu0 0
        %1227 = vmatprep.subr.bf16.mxu0 0
        %1228 = vmatpush1.bf16.msra.mxu0 0
        %1229 = vmatprep.subr.bf16.mxu0 0
        %1230 = vmatpush1.bf16.msra.mxu0 0
        %1231 = vmatprep.subr.bf16.mxu0 0
        %1232 = vmatpush1.bf16.msra.mxu0 0
        %1233 = vmatprep.subr.bf16.mxu0 0
        %1234 = vmatpush1.bf16.msra.mxu0 0
        %1235 = vmatprep.subr.bf16.mxu0 0
        %1236 = vmatpush1.bf16.msra.mxu0 0
        %1237 = vmatprep.subr.bf16.mxu0 0
        %1238 = vmatpush1.bf16.msra.mxu0 0
        %1239 = vmatprep.subr.bf16.mxu0 0
        %1240 = vmatpush1.bf16.msra.mxu0 0
        %1241 = vmatprep.subr.bf16.mxu0 0
        %1242 = vmatpush1.bf16.msra.mxu0 0
        %1243 = vmatprep.subr.bf16.mxu0 0
        %1244 = vmatpush1.bf16.msra.mxu0 0
        %1245 = vmatprep.subr.bf16.mxu0 0
        %1246 = vmatpush1.bf16.msra.mxu0 0
        %1247 = vmatprep.subr.bf16.mxu0 0
        %1248 = vmatpush1.bf16.msra.mxu0 0
        %1249 = vmatprep.subr.bf16.mxu0 0
        %1250 = vmatpush1.bf16.msra.mxu0 0
        %1251 = vmatprep.subr.bf16.mxu0 0
        %1252 = vmatpush1.bf16.msra.mxu0 0
        %1253 = vmatprep.mubr.bf16.mxu0 0
        %1254 = vmatmul.mubr.bf16.gmra.mrb[0].mxu0 %v1215
        %v1255 = vpop.f32.mrb[0].mxu0
        %v1256 = vadd.f32 0.0, %v1255
        %v1257 = vpop.f32.mrb[0].mxu0
        %v1258 = vpop.f32.mrb[0].mxu0
        %v1259 = vpop.f32.mrb[0].mxu0
        %1260 = vdwg.mxu0
        %v1261 = vpack.c.bf16 %v1256, %v1256
        %vm1262 = vcmask 60416
        %1263 = vst.msk [vmem:[#allocation4] sm:$0xf] %vm1262, %v1261
        %v1264 = vld [vmem:[#allocation3] sm:$0xf]
        %1266 = vrot.lane.b32.xlu0 %v1264, 120
        %v1267 = vpop.permute.xlu0 %1266
        %1268 = vrot.lane.b32.xlu0 %v1264, 88
        %v1269 = vpop.permute.xlu0 %1268
        %v1271 = vsel %vm1151, %v1267, 0
        %v1274 = vsel %vm1151, %v1269, 0
        %1276 = vmatprep.subr.bf16.mxu0 0
        %1277 = vmatpush1.bf16.xpose.msra.mxu0 %v1274
        %1278 = vmatprep.subr.bf16.mxu0 0
        %1279 = vmatpush1.bf16.xpose.msra.mxu0 0
        %1280 = vmatprep.subr.bf16.mxu0 0
        %1281 = vmatpush1.bf16.xpose.msra.mxu0 0
        %1282 = vmatprep.subr.bf16.mxu0 0
        %1283 = vmatpush1.bf16.xpose.msra.mxu0 0
        %1284 = vmatprep.subr.bf16.mxu0 0
        %1285 = vmatpush1.bf16.xpose.msra.mxu0 0
        %1286 = vmatprep.subr.bf16.mxu0 0
        %1287 = vmatpush1.bf16.xpose.msra.mxu0 0
        %1288 = vmatprep.subr.bf16.mxu0 0
        %1289 = vmatpush1.bf16.xpose.msra.mxu0 0
        %1290 = vmatprep.subr.bf16.mxu0 0
        %1291 = vmatpush1.bf16.xpose.msra.mxu0 0
        %1292 = vmatprep.subr.bf16.mxu0 0
        %1293 = vmatpush1.bf16.xpose.msra.mxu0 0
        %1294 = vmatprep.subr.bf16.mxu0 0
        %1295 = vmatpush1.bf16.xpose.msra.mxu0 0
        %1296 = vmatprep.subr.bf16.mxu0 0
        %1297 = vmatpush1.bf16.xpose.msra.mxu0 0
        %1298 = vmatprep.subr.bf16.mxu0 0
        %1299 = vmatpush1.bf16.xpose.msra.mxu0 0
        %1300 = vmatprep.subr.bf16.mxu0 0
        %1301 = vmatpush1.bf16.xpose.msra.mxu0 0
        %1302 = vmatprep.subr.bf16.mxu0 0
        %1303 = vmatpush1.bf16.xpose.msra.mxu0 0
        %1304 = vmatprep.subr.bf16.mxu0 0
        %1305 = vmatpush1.bf16.xpose.msra.mxu0 0
        %1306 = vmatprep.subr.bf16.mxu0 0
        %1307 = vmatpush1.bf16.xpose.msra.mxu0 0
        %1308 = vmatprep.mubr.bf16.mxu0 0
        %1309 = vmatmul.mubr.bf16.gmra.mrb[0].mxu0 %v1271
        %v1310 = vpop.f32.mrb[0].mxu0
        %v1311 = vadd.f32 0.0, %v1310
        %v1312 = vpop.f32.mrb[0].mxu0
        %v1313 = vpop.f32.mrb[0].mxu0
        %v1314 = vpop.f32.mrb[0].mxu0
        %1315 = vdwg.mxu0
        %v1316 = vmul.f32 %v1311, 0.35355338
        %v1317 = vadd.f32 %v1316, %v1146
        %v1318 = vsel %vm1151, %v1317, -inf
        %1319 = vmax.xlane.f32.xlu0 %v1318
        %v1320 = vpop.xlane.xlu0 %1319
        %v1321 = vsub.f32 %v1317, %v1320
        %v1322 = vmul.f32 %v1321, 1.442695
        %v1323 = vpow.pop %v1322
        %v1324 = vsel %vm1151, %v1323, 0.0
        %1325 = vadd.xlane.f32.xlu0 %v1324
        %v1326 = vpop.xlane.xlu0 %1325
        %v1327 = vrcp.pop %v1326
        %v1328 = vmul.f32 %v1323, %v1327
        %v1329 = vpack.c.bf16 %v1328, %v1328
        %1330 = vrot.lane.b32.xlu0 %v1264, 56
        %v1331 = vpop.permute.xlu0 %1330
        %v1333 = vsel %vm1151, %v1329, 0
        %v1336 = vsel %vm1217, %v1331, 0
        %1338 = vmatprep.subr.bf16.mxu0 0
        %1339 = vmatpush1.bf16.msra.mxu0 %v1336
        %1340 = vmatprep.subr.bf16.mxu0 0
        %1341 = vmatpush1.bf16.msra.mxu0 0
        %1342 = vmatprep.subr.bf16.mxu0 0
        %1343 = vmatpush1.bf16.msra.mxu0 0
        %1344 = vmatprep.subr.bf16.mxu0 0
        %1345 = vmatpush1.bf16.msra.mxu0 0
        %1346 = vmatprep.subr.bf16.mxu0 0
        %1347 = vmatpush1.bf16.msra.mxu0 0
        %1348 = vmatprep.subr.bf16.mxu0 0
        %1349 = vmatpush1.bf16.msra.mxu0 0
        %1350 = vmatprep.subr.bf16.mxu0 0
        %1351 = vmatpush1.bf16.msra.mxu0 0
        %1352 = vmatprep.subr.bf16.mxu0 0
        %1353 = vmatpush1.bf16.msra.mxu0 0
        %1354 = vmatprep.subr.bf16.mxu0 0
        %1355 = vmatpush1.bf16.msra.mxu0 0
        %1356 = vmatprep.subr.bf16.mxu0 0
        %1357 = vmatpush1.bf16.msra.mxu0 0
        %1358 = vmatprep.subr.bf16.mxu0 0
        %1359 = vmatpush1.bf16.msra.mxu0 0
        %1360 = vmatprep.subr.bf16.mxu0 0
        %1361 = vmatpush1.bf16.msra.mxu0 0
        %1362 = vmatprep.subr.bf16.mxu0 0
        %1363 = vmatpush1.bf16.msra.mxu0 0
        %1364 = vmatprep.subr.bf16.mxu0 0
        %1365 = vmatpush1.bf16.msra.mxu0 0
        %1366 = vmatprep.subr.bf16.mxu0 0
        %1367 = vmatpush1.bf16.msra.mxu0 0
        %1368 = vmatprep.subr.bf16.mxu0 0
        %1369 = vmatpush1.bf16.msra.mxu0 0
        %1370 = vmatprep.mubr.bf16.mxu0 0
        %1371 = vmatmul.mubr.bf16.gmra.mrb[0].mxu0 %v1333
        %v1372 = vpop.f32.mrb[0].mxu0
        %v1373 = vadd.f32 0.0, %v1372
        %v1374 = vpop.f32.mrb[0].mxu0
        %v1375 = vpop.f32.mrb[0].mxu0
        %v1376 = vpop.f32.mrb[0].mxu0
        %1377 = vdwg.mxu0
        %v1378 = vpack.c.bf16 %v1373, %v1373
        %1380 = vrot.lane.b32.xlu0 %v1378, 8
        %v1381 = vpop.permute.xlu0 %1380
        %vm1383 = vcmask 126016
        %1384 = vst.msk [vmem:[#allocation4] sm:$0xf] %vm1383, %v1381
        %v1385 = vld [vmem:[#allocation3] sm:$0xf]
        %1387 = vrot.lane.b32.xlu0 %v1385, 112
        %v1388 = vpop.permute.xlu0 %1387
        %1389 = vrot.lane.b32.xlu0 %v1385, 80
        %v1390 = vpop.permute.xlu0 %1389
        %v1392 = vsel %vm1151, %v1388, 0
        %v1395 = vsel %vm1151, %v1390, 0
        %1397 = vmatprep.subr.bf16.mxu0 0
        %1398 = vmatpush1.bf16.xpose.msra.mxu0 %v1395
        %1399 = vmatprep.subr.bf16.mxu0 0
        %1400 = vmatpush1.bf16.xpose.msra.mxu0 0
        %1401 = vmatprep.subr.bf16.mxu0 0
        %1402 = vmatpush1.bf16.xpose.msra.mxu0 0
        %1403 = vmatprep.subr.bf16.mxu0 0
        %1404 = vmatpush1.bf16.xpose.msra.mxu0 0
        %1405 = vmatprep.subr.bf16.mxu0 0
        %1406 = vmatpush1.bf16.xpose.msra.mxu0 0
        %1407 = vmatprep.subr.bf16.mxu0 0
        %1408 = vmatpush1.bf16.xpose.msra.mxu0 0
        %1409 = vmatprep.subr.bf16.mxu0 0
        %1410 = vmatpush1.bf16.xpose.msra.mxu0 0
        %1411 = vmatprep.subr.bf16.mxu0 0
        %1412 = vmatpush1.bf16.xpose.msra.mxu0 0
        %1413 = vmatprep.subr.bf16.mxu0 0
        %1414 = vmatpush1.bf16.xpose.msra.mxu0 0
        %1415 = vmatprep.subr.bf16.mxu0 0
        %1416 = vmatpush1.bf16.xpose.msra.mxu0 0
        %1417 = vmatprep.subr.bf16.mxu0 0
        %1418 = vmatpush1.bf16.xpose.msra.mxu0 0
        %1419 = vmatprep.subr.bf16.mxu0 0
        %1420 = vmatpush1.bf16.xpose.msra.mxu0 0
        %1421 = vmatprep.subr.bf16.mxu0 0
        %1422 = vmatpush1.bf16.xpose.msra.mxu0 0
        %1423 = vmatprep.subr.bf16.mxu0 0
        %1424 = vmatpush1.bf16.xpose.msra.mxu0 0
        %1425 = vmatprep.subr.bf16.mxu0 0
        %1426 = vmatpush1.bf16.xpose.msra.mxu0 0
        %1427 = vmatprep.subr.bf16.mxu0 0
        %1428 = vmatpush1.bf16.xpose.msra.mxu0 0
        %1429 = vmatprep.mubr.bf16.mxu0 0
        %1430 = vmatmul.mubr.bf16.gmra.mrb[0].mxu0 %v1392
        %v1431 = vpop.f32.mrb[0].mxu0
        %v1432 = vadd.f32 0.0, %v1431
        %v1433 = vpop.f32.mrb[0].mxu0
        %v1434 = vpop.f32.mrb[0].mxu0
        %v1435 = vpop.f32.mrb[0].mxu0
        %1436 = vdwg.mxu0
        %v1437 = vmul.f32 %v1432, 0.35355338
        %v1438 = vadd.f32 %v1437, %v1146
        %v1439 = vsel %vm1151, %v1438, -inf
        %1440 = vmax.xlane.f32.xlu0 %v1439
        %v1441 = vpop.xlane.xlu0 %1440
        %v1442 = vsub.f32 %v1438, %v1441
        %v1443 = vmul.f32 %v1442, 1.442695
        %v1444 = vpow.pop %v1443
        %v1445 = vsel %vm1151, %v1444, 0.0
        %1446 = vadd.xlane.f32.xlu0 %v1445
        %v1447 = vpop.xlane.xlu0 %1446
        %v1448 = vrcp.pop %v1447
        %v1449 = vmul.f32 %v1444, %v1448
        %v1450 = vpack.c.bf16 %v1449, %v1449
        %1451 = vrot.lane.b32.xlu0 %v1385, 48
        %v1452 = vpop.permute.xlu0 %1451
        %v1454 = vsel %vm1151, %v1450, 0
        %v1457 = vsel %vm1217, %v1452, 0
        %1459 = vmatprep.subr.bf16.mxu0 0
        %1460 = vmatpush1.bf16.msra.mxu0 %v1457
        %1461 = vmatprep.subr.bf16.mxu0 0
        %1462 = vmatpush1.bf16.msra.mxu0 0
        %1463 = vmatprep.subr.bf16.mxu0 0
        %1464 = vmatpush1.bf16.msra.mxu0 0
        %1465 = vmatprep.subr.bf16.mxu0 0
        %1466 = vmatpush1.bf16.msra.mxu0 0
        %1467 = vmatprep.subr.bf16.mxu0 0
        %1468 = vmatpush1.bf16.msra.mxu0 0
        %1469 = vmatprep.subr.bf16.mxu0 0
        %1470 = vmatpush1.bf16.msra.mxu0 0
        %1471 = vmatprep.subr.bf16.mxu0 0
        %1472 = vmatpush1.bf16.msra.mxu0 0
        %1473 = vmatprep.subr.bf16.mxu0 0
        %1474 = vmatpush1.bf16.msra.mxu0 0
        %1475 = vmatprep.subr.bf16.mxu0 0
        %1476 = vmatpush1.bf16.msra.mxu0 0
        %1477 = vmatprep.subr.bf16.mxu0 0
        %1478 = vmatpush1.bf16.msra.mxu0 0
        %1479 = vmatprep.subr.bf16.mxu0 0
        %1480 = vmatpush1.bf16.msra.mxu0 0
        %1481 = vmatprep.subr.bf16.mxu0 0
        %1482 = vmatpush1.bf16.msra.mxu0 0
        %1483 = vmatprep.subr.bf16.mxu0 0
        %1484 = vmatpush1.bf16.msra.mxu0 0
        %1485 = vmatprep.subr.bf16.mxu0 0
        %1486 = vmatpush1.bf16.msra.mxu0 0
        %1487 = vmatprep.subr.bf16.mxu0 0
        %1488 = vmatpush1.bf16.msra.mxu0 0
        %1489 = vmatprep.subr.bf16.mxu0 0
        %1490 = vmatpush1.bf16.msra.mxu0 0
        %1491 = vmatprep.mubr.bf16.mxu0 0
        %1492 = vmatmul.mubr.bf16.gmra.mrb[0].mxu0 %v1454
        %v1493 = vpop.f32.mrb[0].mxu0
        %v1494 = vadd.f32 0.0, %v1493
        %v1495 = vpop.f32.mrb[0].mxu0
        %v1496 = vpop.f32.mrb[0].mxu0
        %v1497 = vpop.f32.mrb[0].mxu0
        %1498 = vdwg.mxu0
        %v1499 = vpack.c.bf16 %v1494, %v1494
        %1501 = vrot.lane.b32.xlu0 %v1499, 16
        %v1502 = vpop.permute.xlu0 %1501
        %vm1504 = vcmask 191616
        %1505 = vst.msk [vmem:[#allocation4] sm:$0xf] %vm1504, %v1502
        %v1506 = vld [vmem:[#allocation3] sm:$0xf]
        %1508 = vrot.lane.b32.xlu0 %v1506, 104
        %v1509 = vpop.permute.xlu0 %1508
        %1510 = vrot.lane.b32.xlu0 %v1506, 72
        %v1511 = vpop.permute.xlu0 %1510
        %v1513 = vsel %vm1151, %v1509, 0
        %v1516 = vsel %vm1151, %v1511, 0
        %1518 = vmatprep.subr.bf16.mxu0 0
        %1519 = vmatpush1.bf16.xpose.msra.mxu0 %v1516
        %1520 = vmatprep.subr.bf16.mxu0 0
        %1521 = vmatpush1.bf16.xpose.msra.mxu0 0
        %1522 = vmatprep.subr.bf16.mxu0 0
        %1523 = vmatpush1.bf16.xpose.msra.mxu0 0
        %1524 = vmatprep.subr.bf16.mxu0 0
        %1525 = vmatpush1.bf16.xpose.msra.mxu0 0
        %1526 = vmatprep.subr.bf16.mxu0 0
        %1527 = vmatpush1.bf16.xpose.msra.mxu0 0
        %1528 = vmatprep.subr.bf16.mxu0 0
        %1529 = vmatpush1.bf16.xpose.msra.mxu0 0
        %1530 = vmatprep.subr.bf16.mxu0 0
        %1531 = vmatpush1.bf16.xpose.msra.mxu0 0
        %1532 = vmatprep.subr.bf16.mxu0 0
        %1533 = vmatpush1.bf16.xpose.msra.mxu0 0
        %1534 = vmatprep.subr.bf16.mxu0 0
        %1535 = vmatpush1.bf16.xpose.msra.mxu0 0
        %1536 = vmatprep.subr.bf16.mxu0 0
        %1537 = vmatpush1.bf16.xpose.msra.mxu0 0
        %1538 = vmatprep.subr.bf16.mxu0 0
        %1539 = vmatpush1.bf16.xpose.msra.mxu0 0
        %1540 = vmatprep.subr.bf16.mxu0 0
        %1541 = vmatpush1.bf16.xpose.msra.mxu0 0
        %1542 = vmatprep.subr.bf16.mxu0 0
        %1543 = vmatpush1.bf16.xpose.msra.mxu0 0
        %1544 = vmatprep.subr.bf16.mxu0 0
        %1545 = vmatpush1.bf16.xpose.msra.mxu0 0
        %1546 = vmatprep.subr.bf16.mxu0 0
        %1547 = vmatpush1.bf16.xpose.msra.mxu0 0
        %1548 = vmatprep.subr.bf16.mxu0 0
        %1549 = vmatpush1.bf16.xpose.msra.mxu0 0
        %1550 = vmatprep.mubr.bf16.mxu0 0
        %1551 = vmatmul.mubr.bf16.gmra.mrb[0].mxu0 %v1513
        %v1552 = vpop.f32.mrb[0].mxu0
        %v1553 = vadd.f32 0.0, %v1552
        %v1554 = vpop.f32.mrb[0].mxu0
        %v1555 = vpop.f32.mrb[0].mxu0
        %v1556 = vpop.f32.mrb[0].mxu0
        %1557 = vdwg.mxu0
        %v1558 = vmul.f32 %v1553, 0.35355338
        %v1559 = vadd.f32 %v1558, %v1146
        %v1560 = vsel %vm1151, %v1559, -inf
        %1561 = vmax.xlane.f32.xlu0 %v1560
        %v1562 = vpop.xlane.xlu0 %1561
        %v1563 = vsub.f32 %v1559, %v1562
        %v1564 = vmul.f32 %v1563, 1.442695
        %v1565 = vpow.pop %v1564
        %v1566 = vsel %vm1151, %v1565, 0.0
        %1567 = vadd.xlane.f32.xlu0 %v1566
        %v1568 = vpop.xlane.xlu0 %1567
        %v1569 = vrcp.pop %v1568
        %v1570 = vmul.f32 %v1565, %v1569
        %v1571 = vpack.c.bf16 %v1570, %v1570
        %1572 = vrot.lane.b32.xlu0 %v1506, 40
        %v1573 = vpop.permute.xlu0 %1572
        %v1575 = vsel %vm1151, %v1571, 0
        %v1578 = vsel %vm1217, %v1573, 0
        %1580 = vmatprep.subr.bf16.mxu0 0
        %1581 = vmatpush1.bf16.msra.mxu0 %v1578
        %1582 = vmatprep.subr.bf16.mxu0 0
        %1583 = vmatpush1.bf16.msra.mxu0 0
        %1584 = vmatprep.subr.bf16.mxu0 0
        %1585 = vmatpush1.bf16.msra.mxu0 0
        %1586 = vmatprep.subr.bf16.mxu0 0
        %1587 = vmatpush1.bf16.msra.mxu0 0
        %1588 = vmatprep.subr.bf16.mxu0 0
        %1589 = vmatpush1.bf16.msra.mxu0 0
        %1590 = vmatprep.subr.bf16.mxu0 0
        %1591 = vmatpush1.bf16.msra.mxu0 0
        %1592 = vmatprep.subr.bf16.mxu0 0
        %1593 = vmatpush1.bf16.msra.mxu0 0
        %1594 = vmatprep.subr.bf16.mxu0 0
        %1595 = vmatpush1.bf16.msra.mxu0 0
        %1596 = vmatprep.subr.bf16.mxu0 0
        %1597 = vmatpush1.bf16.msra.mxu0 0
        %1598 = vmatprep.subr.bf16.mxu0 0
        %1599 = vmatpush1.bf16.msra.mxu0 0
        %1600 = vmatprep.subr.bf16.mxu0 0
        %1601 = vmatpush1.bf16.msra.mxu0 0
        %1602 = vmatprep.subr.bf16.mxu0 0
        %1603 = vmatpush1.bf16.msra.mxu0 0
        %1604 = vmatprep.subr.bf16.mxu0 0
        %1605 = vmatpush1.bf16.msra.mxu0 0
        %1606 = vmatprep.subr.bf16.mxu0 0
        %1607 = vmatpush1.bf16.msra.mxu0 0
        %1608 = vmatprep.subr.bf16.mxu0 0
        %1609 = vmatpush1.bf16.msra.mxu0 0
        %1610 = vmatprep.subr.bf16.mxu0 0
        %1611 = vmatpush1.bf16.msra.mxu0 0
        %1612 = vmatprep.mubr.bf16.mxu0 0
        %1613 = vmatmul.mubr.bf16.gmra.mrb[0].mxu0 %v1575
        %v1614 = vpop.f32.mrb[0].mxu0
        %v1615 = vadd.f32 0.0, %v1614
        %v1616 = vpop.f32.mrb[0].mxu0
        %v1617 = vpop.f32.mrb[0].mxu0
        %v1618 = vpop.f32.mrb[0].mxu0
        %1619 = vdwg.mxu0
        %v1620 = vpack.c.bf16 %v1615, %v1615
        %1622 = vrot.lane.b32.xlu0 %v1620, 24
        %v1623 = vpop.permute.xlu0 %1622
        %vm1625 = vcmask 257216
        %1626 = vst.msk [vmem:[#allocation4] sm:$0xf] %vm1625, %v1623
        %v1627 = vld [vmem:[#allocation3] sm:$0xf0]
        %v1629 = vrot.slane %v1627, 4
        %1630 = vrot.lane.b32.xlu0 %v1629, 96
        %v1631 = vpop.permute.xlu0 %1630
        %v1633 = vsel %vm1151, %v1629, 0
        %v1636 = vsel %vm1151, %v1631, 0
        %1638 = vmatprep.subr.bf16.mxu0 0
        %1639 = vmatpush1.bf16.xpose.msra.mxu0 %v1636
        %1640 = vmatprep.subr.bf16.mxu0 0
        %1641 = vmatpush1.bf16.xpose.msra.mxu0 0
        %1642 = vmatprep.subr.bf16.mxu0 0
        %1643 = vmatpush1.bf16.xpose.msra.mxu0 0
        %1644 = vmatprep.subr.bf16.mxu0 0
        %1645 = vmatpush1.bf16.xpose.msra.mxu0 0
        %1646 = vmatprep.subr.bf16.mxu0 0
        %1647 = vmatpush1.bf16.xpose.msra.mxu0 0
        %1648 = vmatprep.subr.bf16.mxu0 0
        %1649 = vmatpush1.bf16.xpose.msra.mxu0 0
        %1650 = vmatprep.subr.bf16.mxu0 0
        %1651 = vmatpush1.bf16.xpose.msra.mxu0 0
        %1652 = vmatprep.subr.bf16.mxu0 0
        %1653 = vmatpush1.bf16.xpose.msra.mxu0 0
        %1654 = vmatprep.subr.bf16.mxu0 0
        %1655 = vmatpush1.bf16.xpose.msra.mxu0 0
        %1656 = vmatprep.subr.bf16.mxu0 0
        %1657 = vmatpush1.bf16.xpose.msra.mxu0 0
        %1658 = vmatprep.subr.bf16.mxu0 0
        %1659 = vmatpush1.bf16.xpose.msra.mxu0 0
        %1660 = vmatprep.subr.bf16.mxu0 0
        %1661 = vmatpush1.bf16.xpose.msra.mxu0 0
        %1662 = vmatprep.subr.bf16.mxu0 0
        %1663 = vmatpush1.bf16.xpose.msra.mxu0 0
        %1664 = vmatprep.subr.bf16.mxu0 0
        %1665 = vmatpush1.bf16.xpose.msra.mxu0 0
        %1666 = vmatprep.subr.bf16.mxu0 0
        %1667 = vmatpush1.bf16.xpose.msra.mxu0 0
        %1668 = vmatprep.subr.bf16.mxu0 0
        %1669 = vmatpush1.bf16.xpose.msra.mxu0 0
        %1670 = vmatprep.mubr.bf16.mxu0 0
        %1671 = vmatmul.mubr.bf16.gmra.mrb[0].mxu0 %v1633
        %v1672 = vpop.f32.mrb[0].mxu0
        %v1673 = vadd.f32 0.0, %v1672
        %v1674 = vpop.f32.mrb[0].mxu0
        %v1675 = vpop.f32.mrb[0].mxu0
        %v1676 = vpop.f32.mrb[0].mxu0
        %1677 = vdwg.mxu0
        %v1678 = vmul.f32 %v1673, 0.35355338
        %v1679 = vadd.f32 %v1678, %v1146
        %v1680 = vsel %vm1151, %v1679, -inf
        %1681 = vmax.xlane.f32.xlu0 %v1680
        %v1682 = vpop.xlane.xlu0 %1681
        %v1683 = vsub.f32 %v1679, %v1682
        %v1684 = vmul.f32 %v1683, 1.442695
        %v1685 = vpow.pop %v1684
        %v1686 = vsel %vm1151, %v1685, 0.0
        %1687 = vadd.xlane.f32.xlu0 %v1686
        %v1688 = vpop.xlane.xlu0 %1687
        %v1689 = vrcp.pop %v1688
        %v1690 = vmul.f32 %v1685, %v1689
        %v1691 = vpack.c.bf16 %v1690, %v1690
        %1692 = vrot.lane.b32.xlu0 %v1629, 64
        %v1693 = vpop.permute.xlu0 %1692
        %v1695 = vsel %vm1151, %v1691, 0
        %v1698 = vsel %vm1217, %v1693, 0
        %1700 = vmatprep.subr.bf16.mxu0 0
        %1701 = vmatpush1.bf16.msra.mxu0 %v1698
        %1702 = vmatprep.subr.bf16.mxu0 0
        %1703 = vmatpush1.bf16.msra.mxu0 0
        %1704 = vmatprep.subr.bf16.mxu0 0
        %1705 = vmatpush1.bf16.msra.mxu0 0
        %1706 = vmatprep.subr.bf16.mxu0 0
        %1707 = vmatpush1.bf16.msra.mxu0 0
        %1708 = vmatprep.subr.bf16.mxu0 0
        %1709 = vmatpush1.bf16.msra.mxu0 0
        %1710 = vmatprep.subr.bf16.mxu0 0
        %1711 = vmatpush1.bf16.msra.mxu0 0
        %1712 = vmatprep.subr.bf16.mxu0 0
        %1713 = vmatpush1.bf16.msra.mxu0 0
        %1714 = vmatprep.subr.bf16.mxu0 0
        %1715 = vmatpush1.bf16.msra.mxu0 0
        %1716 = vmatprep.subr.bf16.mxu0 0
        %1717 = vmatpush1.bf16.msra.mxu0 0
        %1718 = vmatprep.subr.bf16.mxu0 0
        %1719 = vmatpush1.bf16.msra.mxu0 0
        %1720 = vmatprep.subr.bf16.mxu0 0
        %1721 = vmatpush1.bf16.msra.mxu0 0
        %1722 = vmatprep.subr.bf16.mxu0 0
        %1723 = vmatpush1.bf16.msra.mxu0 0
        %1724 = vmatprep.subr.bf16.mxu0 0
        %1725 = vmatpush1.bf16.msra.mxu0 0
        %1726 = vmatprep.subr.bf16.mxu0 0
        %1727 = vmatpush1.bf16.msra.mxu0 0
        %1728 = vmatprep.subr.bf16.mxu0 0
        %1729 = vmatpush1.bf16.msra.mxu0 0
        %1730 = vmatprep.subr.bf16.mxu0 0
        %1731 = vmatpush1.bf16.msra.mxu0 0
        %1732 = vmatprep.mubr.bf16.mxu0 0
        %1733 = vmatmul.mubr.bf16.gmra.mrb[0].mxu0 %v1695
        %v1734 = vpop.f32.mrb[0].mxu0
        %v1735 = vadd.f32 0.0, %v1734
        %v1736 = vpop.f32.mrb[0].mxu0
        %v1737 = vpop.f32.mrb[0].mxu0
        %v1738 = vpop.f32.mrb[0].mxu0
        %1739 = vdwg.mxu0
        %v1740 = vpack.c.bf16 %v1735, %v1735
        %v1742 = vrot.slane %v1740, 4
        %vm1744 = vcmask 64516
        %1745 = vst.msk [vmem:[#allocation4] sm:$0xf0] %vm1744, %v1742
        %v1746 = vld [vmem:[#allocation3] sm:$0xf0]
        %v1748 = vrot.slane %v1746, 4
        %1749 = vrot.lane.b32.xlu0 %v1748, 120
        %v1750 = vpop.permute.xlu0 %1749
        %1751 = vrot.lane.b32.xlu0 %v1748, 88
        %v1752 = vpop.permute.xlu0 %1751
        %v1754 = vsel %vm1151, %v1750, 0
        %v1757 = vsel %vm1151, %v1752, 0
        %1759 = vmatprep.subr.bf16.mxu0 0
        %1760 = vmatpush1.bf16.xpose.msra.mxu0 %v1757
        %1761 = vmatprep.subr.bf16.mxu0 0
        %1762 = vmatpush1.bf16.xpose.msra.mxu0 0
        %1763 = vmatprep.subr.bf16.mxu0 0
        %1764 = vmatpush1.bf16.xpose.msra.mxu0 0
        %1765 = vmatprep.subr.bf16.mxu0 0
        %1766 = vmatpush1.bf16.xpose.msra.mxu0 0
        %1767 = vmatprep.subr.bf16.mxu0 0
        %1768 = vmatpush1.bf16.xpose.msra.mxu0 0
        %1769 = vmatprep.subr.bf16.mxu0 0
        %1770 = vmatpush1.bf16.xpose.msra.mxu0 0
        %1771 = vmatprep.subr.bf16.mxu0 0
        %1772 = vmatpush1.bf16.xpose.msra.mxu0 0
        %1773 = vmatprep.subr.bf16.mxu0 0
        %1774 = vmatpush1.bf16.xpose.msra.mxu0 0
        %1775 = vmatprep.subr.bf16.mxu0 0
        %1776 = vmatpush1.bf16.xpose.msra.mxu0 0
        %1777 = vmatprep.subr.bf16.mxu0 0
        %1778 = vmatpush1.bf16.xpose.msra.mxu0 0
        %1779 = vmatprep.subr.bf16.mxu0 0
        %1780 = vmatpush1.bf16.xpose.msra.mxu0 0
        %1781 = vmatprep.subr.bf16.mxu0 0
        %1782 = vmatpush1.bf16.xpose.msra.mxu0 0
        %1783 = vmatprep.subr.bf16.mxu0 0
        %1784 = vmatpush1.bf16.xpose.msra.mxu0 0
        %1785 = vmatprep.subr.bf16.mxu0 0
        %1786 = vmatpush1.bf16.xpose.msra.mxu0 0
        %1787 = vmatprep.subr.bf16.mxu0 0
        %1788 = vmatpush1.bf16.xpose.msra.mxu0 0
        %1789 = vmatprep.subr.bf16.mxu0 0
        %1790 = vmatpush1.bf16.xpose.msra.mxu0 0
        %1791 = vmatprep.mubr.bf16.mxu0 0
        %1792 = vmatmul.mubr.bf16.gmra.mrb[0].mxu0 %v1754
        %v1793 = vpop.f32.mrb[0].mxu0
        %v1794 = vadd.f32 0.0, %v1793
        %v1795 = vpop.f32.mrb[0].mxu0
        %v1796 = vpop.f32.mrb[0].mxu0
        %v1797 = vpop.f32.mrb[0].mxu0
        %1798 = vdwg.mxu0
        %v1799 = vmul.f32 %v1794, 0.35355338
        %v1800 = vadd.f32 %v1799, %v1146
        %v1801 = vsel %vm1151, %v1800, -inf
        %1802 = vmax.xlane.f32.xlu0 %v1801
        %v1803 = vpop.xlane.xlu0 %1802
        %v1804 = vsub.f32 %v1800, %v1803
        %v1805 = vmul.f32 %v1804, 1.442695
        %v1806 = vpow.pop %v1805
        %v1807 = vsel %vm1151, %v1806, 0.0
        %1808 = vadd.xlane.f32.xlu0 %v1807
        %v1809 = vpop.xlane.xlu0 %1808
        %v1810 = vrcp.pop %v1809
        %v1811 = vmul.f32 %v1806, %v1810
        %v1812 = vpack.c.bf16 %v1811, %v1811
        %1813 = vrot.lane.b32.xlu0 %v1748, 56
        %v1814 = vpop.permute.xlu0 %1813
        %v1816 = vsel %vm1151, %v1812, 0
        %v1819 = vsel %vm1217, %v1814, 0
        %1821 = vmatprep.subr.bf16.mxu0 0
        %1822 = vmatpush1.bf16.msra.mxu0 %v1819
        %1823 = vmatprep.subr.bf16.mxu0 0
        %1824 = vmatpush1.bf16.msra.mxu0 0
        %1825 = vmatprep.subr.bf16.mxu0 0
        %1826 = vmatpush1.bf16.msra.mxu0 0
        %1827 = vmatprep.subr.bf16.mxu0 0
        %1828 = vmatpush1.bf16.msra.mxu0 0
        %1829 = vmatprep.subr.bf16.mxu0 0
        %1830 = vmatpush1.bf16.msra.mxu0 0
        %1831 = vmatprep.subr.bf16.mxu0 0
        %1832 = vmatpush1.bf16.msra.mxu0 0
        %1833 = vmatprep.subr.bf16.mxu0 0
        %1834 = vmatpush1.bf16.msra.mxu0 0
        %1835 = vmatprep.subr.bf16.mxu0 0
        %1836 = vmatpush1.bf16.msra.mxu0 0
        %1837 = vmatprep.subr.bf16.mxu0 0
        %1838 = vmatpush1.bf16.msra.mxu0 0
        %1839 = vmatprep.subr.bf16.mxu0 0
        %1840 = vmatpush1.bf16.msra.mxu0 0
        %1841 = vmatprep.subr.bf16.mxu0 0
        %1842 = vmatpush1.bf16.msra.mxu0 0
        %1843 = vmatprep.subr.bf16.mxu0 0
        %1844 = vmatpush1.bf16.msra.mxu0 0
        %1845 = vmatprep.subr.bf16.mxu0 0
        %1846 = vmatpush1.bf16.msra.mxu0 0
        %1847 = vmatprep.subr.bf16.mxu0 0
        %1848 = vmatpush1.bf16.msra.mxu0 0
        %1849 = vmatprep.subr.bf16.mxu0 0
        %1850 = vmatpush1.bf16.msra.mxu0 0
        %1851 = vmatprep.subr.bf16.mxu0 0
        %1852 = vmatpush1.bf16.msra.mxu0 0
        %1853 = vmatprep.mubr.bf16.mxu0 0
        %1854 = vmatmul.mubr.bf16.gmra.mrb[0].mxu0 %v1816
        %v1855 = vpop.f32.mrb[0].mxu0
        %v1856 = vadd.f32 0.0, %v1855
        %v1857 = vpop.f32.mrb[0].mxu0
        %v1858 = vpop.f32.mrb[0].mxu0
        %v1859 = vpop.f32.mrb[0].mxu0
        %1860 = vdwg.mxu0
        %v1861 = vpack.c.bf16 %v1856, %v1856
        %v1863 = vrot.slane %v1861, 4
        %1864 = vrot.lane.b32.xlu0 %v1863, 8
        %v1865 = vpop.permute.xlu0 %1864
        %vm1867 = vcmask 130116
        %1868 = vst.msk [vmem:[#allocation4] sm:$0xf0] %vm1867, %v1865
        %v1869 = vld [vmem:[#allocation3] sm:$0xf0]
        %v1871 = vrot.slane %v1869, 4
        %1872 = vrot.lane.b32.xlu0 %v1871, 112
        %v1873 = vpop.permute.xlu0 %1872
        %1874 = vrot.lane.b32.xlu0 %v1871, 80
        %v1875 = vpop.permute.xlu0 %1874
        %v1877 = vsel %vm1151, %v1873, 0
        %v1880 = vsel %vm1151, %v1875, 0
        %1882 = vmatprep.subr.bf16.mxu0 0
        %1883 = vmatpush1.bf16.xpose.msra.mxu0 %v1880
        %1884 = vmatprep.subr.bf16.mxu0 0
        %1885 = vmatpush1.bf16.xpose.msra.mxu0 0
        %1886 = vmatprep.subr.bf16.mxu0 0
        %1887 = vmatpush1.bf16.xpose.msra.mxu0 0
        %1888 = vmatprep.subr.bf16.mxu0 0
        %1889 = vmatpush1.bf16.xpose.msra.mxu0 0
        %1890 = vmatprep.subr.bf16.mxu0 0
        %1891 = vmatpush1.bf16.xpose.msra.mxu0 0
        %1892 = vmatprep.subr.bf16.mxu0 0
        %1893 = vmatpush1.bf16.xpose.msra.mxu0 0
        %1894 = vmatprep.subr.bf16.mxu0 0
        %1895 = vmatpush1.bf16.xpose.msra.mxu0 0
        %1896 = vmatprep.subr.bf16.mxu0 0
        %1897 = vmatpush1.bf16.xpose.msra.mxu0 0
        %1898 = vmatprep.subr.bf16.mxu0 0
        %1899 = vmatpush1.bf16.xpose.msra.mxu0 0
        %1900 = vmatprep.subr.bf16.mxu0 0
        %1901 = vmatpush1.bf16.xpose.msra.mxu0 0
        %1902 = vmatprep.subr.bf16.mxu0 0
        %1903 = vmatpush1.bf16.xpose.msra.mxu0 0
        %1904 = vmatprep.subr.bf16.mxu0 0
        %1905 = vmatpush1.bf16.xpose.msra.mxu0 0
        %1906 = vmatprep.subr.bf16.mxu0 0
        %1907 = vmatpush1.bf16.xpose.msra.mxu0 0
        %1908 = vmatprep.subr.bf16.mxu0 0
        %1909 = vmatpush1.bf16.xpose.msra.mxu0 0
        %1910 = vmatprep.subr.bf16.mxu0 0
        %1911 = vmatpush1.bf16.xpose.msra.mxu0 0
        %1912 = vmatprep.subr.bf16.mxu0 0
        %1913 = vmatpush1.bf16.xpose.msra.mxu0 0
        %1914 = vmatprep.mubr.bf16.mxu0 0
        %1915 = vmatmul.mubr.bf16.gmra.mrb[0].mxu0 %v1877
        %v1916 = vpop.f32.mrb[0].mxu0
        %v1917 = vadd.f32 0.0, %v1916
        %v1918 = vpop.f32.mrb[0].mxu0
        %v1919 = vpop.f32.mrb[0].mxu0
        %v1920 = vpop.f32.mrb[0].mxu0
        %1921 = vdwg.mxu0
        %v1922 = vmul.f32 %v1917, 0.35355338
        %v1923 = vadd.f32 %v1922, %v1146
        %v1924 = vsel %vm1151, %v1923, -inf
        %1925 = vmax.xlane.f32.xlu0 %v1924
        %v1926 = vpop.xlane.xlu0 %1925
        %v1927 = vsub.f32 %v1923, %v1926
        %v1928 = vmul.f32 %v1927, 1.442695
        %v1929 = vpow.pop %v1928
        %v1930 = vsel %vm1151, %v1929, 0.0
        %1931 = vadd.xlane.f32.xlu0 %v1930
        %v1932 = vpop.xlane.xlu0 %1931
        %v1933 = vrcp.pop %v1932
        %v1934 = vmul.f32 %v1929, %v1933
        %v1935 = vpack.c.bf16 %v1934, %v1934
        %1936 = vrot.lane.b32.xlu0 %v1871, 48
        %v1937 = vpop.permute.xlu0 %1936
        %v1939 = vsel %vm1151, %v1935, 0
        %v1942 = vsel %vm1217, %v1937, 0
        %1944 = vmatprep.subr.bf16.mxu0 0
        %1945 = vmatpush1.bf16.msra.mxu0 %v1942
        %1946 = vmatprep.subr.bf16.mxu0 0
        %1947 = vmatpush1.bf16.msra.mxu0 0
        %1948 = vmatprep.subr.bf16.mxu0 0
        %1949 = vmatpush1.bf16.msra.mxu0 0
        %1950 = vmatprep.subr.bf16.mxu0 0
        %1951 = vmatpush1.bf16.msra.mxu0 0
        %1952 = vmatprep.subr.bf16.mxu0 0
        %1953 = vmatpush1.bf16.msra.mxu0 0
        %1954 = vmatprep.subr.bf16.mxu0 0
        %1955 = vmatpush1.bf16.msra.mxu0 0
        %1956 = vmatprep.subr.bf16.mxu0 0
        %1957 = vmatpush1.bf16.msra.mxu0 0
        %1958 = vmatprep.subr.bf16.mxu0 0
        %1959 = vmatpush1.bf16.msra.mxu0 0
        %1960 = vmatprep.subr.bf16.mxu0 0
        %1961 = vmatpush1.bf16.msra.mxu0 0
        %1962 = vmatprep.subr.bf16.mxu0 0
        %1963 = vmatpush1.bf16.msra.mxu0 0
        %1964 = vmatprep.subr.bf16.mxu0 0
        %1965 = vmatpush1.bf16.msra.mxu0 0
        %1966 = vmatprep.subr.bf16.mxu0 0
        %1967 = vmatpush1.bf16.msra.mxu0 0
        %1968 = vmatprep.subr.bf16.mxu0 0
        %1969 = vmatpush1.bf16.msra.mxu0 0
        %1970 = vmatprep.subr.bf16.mxu0 0
        %1971 = vmatpush1.bf16.msra.mxu0 0
        %1972 = vmatprep.subr.bf16.mxu0 0
        %1973 = vmatpush1.bf16.msra.mxu0 0
        %1974 = vmatprep.subr.bf16.mxu0 0
        %1975 = vmatpush1.bf16.msra.mxu0 0
        %1976 = vmatprep.mubr.bf16.mxu0 0
        %1977 = vmatmul.mubr.bf16.gmra.mrb[0].mxu0 %v1939
        %v1978 = vpop.f32.mrb[0].mxu0
        %v1979 = vadd.f32 0.0, %v1978
        %v1980 = vpop.f32.mrb[0].mxu0
        %v1981 = vpop.f32.mrb[0].mxu0
        %v1982 = vpop.f32.mrb[0].mxu0
        %1983 = vdwg.mxu0
        %v1984 = vpack.c.bf16 %v1979, %v1979
        %v1986 = vrot.slane %v1984, 4
        %1987 = vrot.lane.b32.xlu0 %v1986, 16
        %v1988 = vpop.permute.xlu0 %1987
        %vm1990 = vcmask 195716
        %1991 = vst.msk [vmem:[#allocation4] sm:$0xf0] %vm1990, %v1988
        %v1992 = vld [vmem:[#allocation3] sm:$0xf0]
        %v1994 = vrot.slane %v1992, 4
        %1995 = vrot.lane.b32.xlu0 %v1994, 104
        %v1996 = vpop.permute.xlu0 %1995
        %1997 = vrot.lane.b32.xlu0 %v1994, 72
        %v1998 = vpop.permute.xlu0 %1997
        %v2000 = vsel %vm1151, %v1996, 0
        %v2003 = vsel %vm1151, %v1998, 0
        %2005 = vmatprep.subr.bf16.mxu0 0
        %2006 = vmatpush1.bf16.xpose.msra.mxu0 %v2003
        %2007 = vmatprep.subr.bf16.mxu0 0
        %2008 = vmatpush1.bf16.xpose.msra.mxu0 0
        %2009 = vmatprep.subr.bf16.mxu0 0
        %2010 = vmatpush1.bf16.xpose.msra.mxu0 0
        %2011 = vmatprep.subr.bf16.mxu0 0
        %2012 = vmatpush1.bf16.xpose.msra.mxu0 0
        %2013 = vmatprep.subr.bf16.mxu0 0
        %2014 = vmatpush1.bf16.xpose.msra.mxu0 0
        %2015 = vmatprep.subr.bf16.mxu0 0
        %2016 = vmatpush1.bf16.xpose.msra.mxu0 0
        %2017 = vmatprep.subr.bf16.mxu0 0
        %2018 = vmatpush1.bf16.xpose.msra.mxu0 0
        %2019 = vmatprep.subr.bf16.mxu0 0
        %2020 = vmatpush1.bf16.xpose.msra.mxu0 0
        %2021 = vmatprep.subr.bf16.mxu0 0
        %2022 = vmatpush1.bf16.xpose.msra.mxu0 0
        %2023 = vmatprep.subr.bf16.mxu0 0
        %2024 = vmatpush1.bf16.xpose.msra.mxu0 0
        %2025 = vmatprep.subr.bf16.mxu0 0
        %2026 = vmatpush1.bf16.xpose.msra.mxu0 0
        %2027 = vmatprep.subr.bf16.mxu0 0
        %2028 = vmatpush1.bf16.xpose.msra.mxu0 0
        %2029 = vmatprep.subr.bf16.mxu0 0
        %2030 = vmatpush1.bf16.xpose.msra.mxu0 0
        %2031 = vmatprep.subr.bf16.mxu0 0
        %2032 = vmatpush1.bf16.xpose.msra.mxu0 0
        %2033 = vmatprep.subr.bf16.mxu0 0
        %2034 = vmatpush1.bf16.xpose.msra.mxu0 0
        %2035 = vmatprep.subr.bf16.mxu0 0
        %2036 = vmatpush1.bf16.xpose.msra.mxu0 0
        %2037 = vmatprep.mubr.bf16.mxu0 0
        %2038 = vmatmul.mubr.bf16.gmra.mrb[0].mxu0 %v2000
        %v2039 = vpop.f32.mrb[0].mxu0
        %v2040 = vadd.f32 0.0, %v2039
        %v2041 = vpop.f32.mrb[0].mxu0
        %v2042 = vpop.f32.mrb[0].mxu0
        %v2043 = vpop.f32.mrb[0].mxu0
        %2044 = vdwg.mxu0
        %v2045 = vmul.f32 %v2040, 0.35355338
        %v2046 = vadd.f32 %v2045, %v1146
        %v2047 = vsel %vm1151, %v2046, -inf
        %2048 = vmax.xlane.f32.xlu0 %v2047
        %v2049 = vpop.xlane.xlu0 %2048
        %v2050 = vsub.f32 %v2046, %v2049
        %v2051 = vmul.f32 %v2050, 1.442695
        %v2052 = vpow.pop %v2051
        %v2053 = vsel %vm1151, %v2052, 0.0
        %2054 = vadd.xlane.f32.xlu0 %v2053
        %v2055 = vpop.xlane.xlu0 %2054
        %v2056 = vrcp.pop %v2055
        %v2057 = vmul.f32 %v2052, %v2056
        %v2058 = vpack.c.bf16 %v2057, %v2057
        %2059 = vrot.lane.b32.xlu0 %v1994, 40
        %v2060 = vpop.permute.xlu0 %2059
        %v2062 = vsel %vm1151, %v2058, 0
        %v2065 = vsel %vm1217, %v2060, 0
        %2067 = vmatprep.subr.bf16.mxu0 0
        %2068 = vmatpush1.bf16.msra.mxu0 %v2065
        %2069 = vmatprep.subr.bf16.mxu0 0
        %2070 = vmatpush1.bf16.msra.mxu0 0
        %2071 = vmatprep.subr.bf16.mxu0 0
        %2072 = vmatpush1.bf16.msra.mxu0 0
        %2073 = vmatprep.subr.bf16.mxu0 0
        %2074 = vmatpush1.bf16.msra.mxu0 0
        %2075 = vmatprep.subr.bf16.mxu0 0
        %2076 = vmatpush1.bf16.msra.mxu0 0
        %2077 = vmatprep.subr.bf16.mxu0 0
        %2078 = vmatpush1.bf16.msra.mxu0 0
        %2079 = vmatprep.subr.bf16.mxu0 0
        %2080 = vmatpush1.bf16.msra.mxu0 0
        %2081 = vmatprep.subr.bf16.mxu0 0
        %2082 = vmatpush1.bf16.msra.mxu0 0
        %2083 = vmatprep.subr.bf16.mxu0 0
        %2084 = vmatpush1.bf16.msra.mxu0 0
        %2085 = vmatprep.subr.bf16.mxu0 0
        %2086 = vmatpush1.bf16.msra.mxu0 0
        %2087 = vmatprep.subr.bf16.mxu0 0
        %2088 = vmatpush1.bf16.msra.mxu0 0
        %2089 = vmatprep.subr.bf16.mxu0 0
        %2090 = vmatpush1.bf16.msra.mxu0 0
        %2091 = vmatprep.subr.bf16.mxu0 0
        %2092 = vmatpush1.bf16.msra.mxu0 0
        %2093 = vmatprep.subr.bf16.mxu0 0
        %2094 = vmatpush1.bf16.msra.mxu0 0
        %2095 = vmatprep.subr.bf16.mxu0 0
        %2096 = vmatpush1.bf16.msra.mxu0 0
        %2097 = vmatprep.subr.bf16.mxu0 0
        %2098 = vmatpush1.bf16.msra.mxu0 0
        %2099 = vmatprep.mubr.bf16.mxu0 0
        %2100 = vmatmul.mubr.bf16.gmra.mrb[0].mxu0 %v2062
        %v2101 = vpop.f32.mrb[0].mxu0
        %v2102 = vadd.f32 0.0, %v2101
        %v2103 = vpop.f32.mrb[0].mxu0
        %v2104 = vpop.f32.mrb[0].mxu0
        %v2105 = vpop.f32.mrb[0].mxu0
        %2106 = vdwg.mxu0
        %v2107 = vpack.c.bf16 %v2102, %v2102
        %v2109 = vrot.slane %v2107, 4
        %2110 = vrot.lane.b32.xlu0 %v2109, 24
        %v2111 = vpop.permute.xlu0 %2110
        %vm2113 = vcmask 261316
        %2114 = vst.msk [vmem:[#allocation4] sm:$0xf0] %vm2113, %v2111
        %v2115 = vld [vmem:[#allocation4] sm:$0xff]
        %v2116 = vld [vmem:[%s845] sm:$0xf]
        %v2117 = vld [vmem:[%s845 + $0x4] sm:$0xf]
        %v2118 = vld [vmem:[%s845 + $0x8] sm:$0xf]
        %v2119 = vld [vmem:[%s845 + $0xc] sm:$0xf]
        %v2120 = vld [vmem:[%s853] sm:$0x1]
        %v2122 = vlaneseq
        %v2123 = vshrl.u32 %v2122, 7
        %v2124 = vsub.s32 0, %v2123
        %v2125 = vrot.slane %v2120, %v2124
        %v2131 = vunpack.c.l.b16 %v2116
        %v2132 = vunpack.c.l.b16 %v2117
        %v2133 = vunpack.c.l.b16 %v2118
        %v2134 = vunpack.c.l.b16 %v2119
        %v2135 = vpack.c.b16 %v2132, %v2131
        %v2136 = vpack.c.b16 %v2134, %v2133
        %v2140 = vsel %vm1026, %v2115, 0
        %2142 = vmatprep.subr.bf16.mxu0 0
        %2143 = vmatpush1.bf16.msra.mxu0 %v2135
        %2144 = vmatprep.subr.bf16.mxu0 0
        %2145 = vmatpush1.bf16.msra.mxu0 %v2136
        %2146 = vmatprep.subr.bf16.mxu0 0
        %2147 = vmatpush1.bf16.msra.mxu0 0
        %2148 = vmatprep.subr.bf16.mxu0 0
        %2149 = vmatpush1.bf16.msra.mxu0 0
        %2150 = vmatprep.subr.bf16.mxu0 0
        %2151 = vmatpush1.bf16.msra.mxu0 0
        %2152 = vmatprep.subr.bf16.mxu0 0
        %2153 = vmatpush1.bf16.msra.mxu0 0
        %2154 = vmatprep.subr.bf16.mxu0 0
        %2155 = vmatpush1.bf16.msra.mxu0 0
        %2156 = vmatprep.subr.bf16.mxu0 0
        %2157 = vmatpush1.bf16.msra.mxu0 0
        %2158 = vmatprep.subr.bf16.mxu0 0
        %2159 = vmatpush1.bf16.msra.mxu0 0
        %2160 = vmatprep.subr.bf16.mxu0 0
        %2161 = vmatpush1.bf16.msra.mxu0 0
        %2162 = vmatprep.subr.bf16.mxu0 0
        %2163 = vmatpush1.bf16.msra.mxu0 0
        %2164 = vmatprep.subr.bf16.mxu0 0
        %2165 = vmatpush1.bf16.msra.mxu0 0
        %2166 = vmatprep.subr.bf16.mxu0 0
        %2167 = vmatpush1.bf16.msra.mxu0 0
        %2168 = vmatprep.subr.bf16.mxu0 0
        %2169 = vmatpush1.bf16.msra.mxu0 0
        %2170 = vmatprep.subr.bf16.mxu0 0
        %2171 = vmatpush1.bf16.msra.mxu0 0
        %2172 = vmatprep.subr.bf16.mxu0 0
        %2173 = vmatpush1.bf16.msra.mxu0 0
        %2174 = vmatprep.mubr.bf16.mxu0 0
        %2175 = vmatmul.mubr.bf16.gmra.mrb[0].mxu0 %v2140
        %v2176 = vpop.f32.mrb[0].mxu0
        %v2177 = vadd.f32 %v2125, %v2176
        %v2178 = vpop.f32.mrb[0].mxu0
        %v2179 = vpop.f32.mrb[0].mxu0
        %v2180 = vadd.f32 %v2125, %v2179
        %v2181 = vpop.f32.mrb[0].mxu0
        %2182 = vdwg.mxu0
        %v2183 = vadd.f32 %v1022, %v2177
        %v2184 = vadd.f32 %v1023, %v2180
        %v2185 = vld [vmem:[%s861] sm:$0x1]
        %v2186 = vld [vmem:[%s869] sm:$0x1]
        %v2187 = vsel %vm1026, %v2183, 0.0
        %2188 = vadd.xlane.f32.xlu0 %v2187
        %v2189 = vpop.xlane.xlu0 %2188
        %v2190 = vsel %vm1026, %v2184, 0.0
        %2191 = vadd.xlane.f32.xlu0 %v2190
        %v2192 = vpop.xlane.xlu0 %2191
        %v2193 = vmul.f32 %v2189, %v1033
        %v2194 = vmul.f32 %v2192, %v1033
        %v2195 = vsub.f32 %v2183, %v2193
        %v2196 = vsub.f32 %v2184, %v2194
        %v2197 = vmul.f32 %v2195, %v2195
        %v2198 = vmul.f32 %v2196, %v2196
        %v2199 = vsel %vm1026, %v2197, 0.0
        %2200 = vadd.xlane.f32.xlu0 %v2199
        %v2201 = vpop.xlane.xlu0 %2200
        %v2202 = vsel %vm1026, %v2198, 0.0
        %2203 = vadd.xlane.f32.xlu0 %v2202
        %v2204 = vpop.xlane.xlu0 %2203
        %v2205 = vmul.f32 %v2201, %v1033
        %v2206 = vmul.f32 %v2204, %v1033
        %v2207 = vadd.f32 %v2205, 1e-05
        %v2208 = vadd.f32 %v2206, 1e-05
        %v2209 = vrsqrt.pop %v2207
        %v2210 = vrsqrt.pop %v2208
        %v2211 = vmul.f32 %v2195, %v2209
        %v2212 = vmul.f32 %v2196, %v2210
        %v2214 = vlaneseq
        %v2215 = vshrl.u32 %v2214, 7
        %v2216 = vsub.s32 0, %v2215
        %v2217 = vrot.slane %v2185, %v2216
        %v2219 = vmul.f32 %v2211, %v2217
        %v2220 = vmul.f32 %v2212, %v2217
        %v2222 = vlaneseq
        %v2223 = vshrl.u32 %v2222, 7
        %v2224 = vsub.s32 0, %v2223
        %v2225 = vrot.slane %v2186, %v2224
        %v2227 = vadd.f32 %v2219, %v2225
        %v2228 = vadd.f32 %v2220, %v2225
        %v2229 = vpack.c.bf16 %v2228, %v2227
        %v2230 = vld [vmem:[%s878] sm:$0xf]
        %v2231 = vld [vmem:[%s878 + $0x4] sm:$0xf]
        %v2232 = vld [vmem:[%s878 + $0x8] sm:$0xf]
        %v2233 = vld [vmem:[%s878 + $0xc] sm:$0xf]
        %v2234 = vld [vmem:[%s886] sm:$0x1]
        %v2236 = vlaneseq
        %v2237 = vshrl.u32 %v2236, 7
        %v2238 = vsub.s32 0, %v2237
        %v2239 = vrot.slane %v2234, %v2238
        %v2245 = vunpack.c.l.b16 %v2230
        %v2246 = vunpack.c.l.b16 %v2231
        %v2247 = vunpack.c.l.b16 %v2232
        %v2248 = vunpack.c.l.b16 %v2233
        %v2249 = vpack.c.b16 %v2246, %v2245
        %v2250 = vpack.c.b16 %v2248, %v2247
        %v2254 = vsel %vm1026, %v2229, 0
        %2256 = vmatprep.subr.bf16.mxu0 0
        %2257 = vmatpush1.bf16.msra.mxu0 %v2249
        %2258 = vmatprep.subr.bf16.mxu0 0
        %2259 = vmatpush1.bf16.msra.mxu0 %v2250
        %2260 = vmatprep.subr.bf16.mxu0 0
        %2261 = vmatpush1.bf16.msra.mxu0 0
        %2262 = vmatprep.subr.bf16.mxu0 0
        %2263 = vmatpush1.bf16.msra.mxu0 0
        %2264 = vmatprep.subr.bf16.mxu0 0
        %2265 = vmatpush1.bf16.msra.mxu0 0
        %2266 = vmatprep.subr.bf16.mxu0 0
        %2267 = vmatpush1.bf16.msra.mxu0 0
        %2268 = vmatprep.subr.bf16.mxu0 0
        %2269 = vmatpush1.bf16.msra.mxu0 0
        %2270 = vmatprep.subr.bf16.mxu0 0
        %2271 = vmatpush1.bf16.msra.mxu0 0
        %2272 = vmatprep.subr.bf16.mxu0 0
        %2273 = vmatpush1.bf16.msra.mxu0 0
        %2274 = vmatprep.subr.bf16.mxu0 0
        %2275 = vmatpush1.bf16.msra.mxu0 0
        %2276 = vmatprep.subr.bf16.mxu0 0
        %2277 = vmatpush1.bf16.msra.mxu0 0
        %2278 = vmatprep.subr.bf16.mxu0 0
        %2279 = vmatpush1.bf16.msra.mxu0 0
        %2280 = vmatprep.subr.bf16.mxu0 0
        %2281 = vmatpush1.bf16.msra.mxu0 0
        %2282 = vmatprep.subr.bf16.mxu0 0
        %2283 = vmatpush1.bf16.msra.mxu0 0
        %2284 = vmatprep.subr.bf16.mxu0 0
        %2285 = vmatpush1.bf16.msra.mxu0 0
        %2286 = vmatprep.subr.bf16.mxu0 0
        %2287 = vmatpush1.bf16.msra.mxu0 0
        %2288 = vmatprep.mubr.bf16.mxu0 0
        %2289 = vmatmul.mubr.bf16.gmra.mrb[0].mxu0 %v2254
        %v2290 = vpop.f32.mrb[0].mxu0
        %v2291 = vadd.f32 %v2239, %v2290
        %v2292 = vpop.f32.mrb[0].mxu0
        %v2293 = vpop.f32.mrb[0].mxu0
        %v2294 = vadd.f32 %v2239, %v2293
        %v2295 = vpop.f32.mrb[0].mxu0
        %2296 = vdwg.mxu0
        %v2297 = vmul.f32 %v2291, 1.702
        %v2298 = vmul.f32 %v2294, 1.702
        %v2299 = vxor.u32 %v2297, 2147483648
        %v2300 = vxor.u32 %v2298, 2147483648
        %v2301 = vmul.f32 %v2299, 1.442695
        %v2302 = vpow.pop %v2301
        %v2303 = vmul.f32 %v2300, 1.442695
        %v2304 = vpow.pop %v2303
        %v2305 = vadd.f32 %v2302, 1.0
        %v2306 = vadd.f32 %v2304, 1.0
        %v2307 = vrcp.pop %v2305
        %v2308 = vmul.f32 1.0, %v2307
        %v2309 = vrcp.pop %v2306
        %v2310 = vmul.f32 1.0, %v2309
        %v2311 = vmul.f32 %v2291, %v2308
        %v2312 = vmul.f32 %v2294, %v2310
        %v2313 = vpack.c.bf16 %v2312, %v2311
        %v2314 = vld [vmem:[%s895] sm:$0xf]
        %v2315 = vld [vmem:[%s895 + $0x4] sm:$0xf]
        %v2316 = vld [vmem:[%s895 + $0x8] sm:$0xf]
        %v2317 = vld [vmem:[%s895 + $0xc] sm:$0xf]
        %v2318 = vld [vmem:[%s895 + $0x10] sm:$0xf]
        %v2319 = vld [vmem:[%s895 + $0x14] sm:$0xf]
        %v2320 = vld [vmem:[%s895 + $0x18] sm:$0xf]
        %v2321 = vld [vmem:[%s895 + $0x1c] sm:$0xf]
        %v2322 = vld [vmem:[%s895 + $0x20] sm:$0xf]
        %v2323 = vld [vmem:[%s895 + $0x24] sm:$0xf]
        %v2324 = vld [vmem:[%s895 + $0x28] sm:$0xf]
        %v2325 = vld [vmem:[%s895 + $0x2c] sm:$0xf]
        %v2326 = vld [vmem:[%s895 + $0x30] sm:$0xf]
        %v2327 = vld [vmem:[%s895 + $0x34] sm:$0xf]
        %v2328 = vld [vmem:[%s895 + $0x38] sm:$0xf]
        %v2329 = vld [vmem:[%s895 + $0x3c] sm:$0xf]
        %v2330 = vld [vmem:[%s903] sm:$0x1]
        %v2332 = vlaneseq
        %v2333 = vshrl.u32 %v2332, 7
        %v2334 = vsub.s32 0, %v2333
        %v2335 = vrot.slane %v2330, %v2334
        %v2353 = vunpack.c.l.b16 %v2314
        %v2354 = vunpack.c.l.b16 %v2315
        %v2355 = vunpack.c.l.b16 %v2316
        %v2356 = vunpack.c.l.b16 %v2317
        %v2357 = vunpack.c.l.b16 %v2318
        %v2358 = vunpack.c.l.b16 %v2319
        %v2359 = vunpack.c.l.b16 %v2320
        %v2360 = vunpack.c.l.b16 %v2321
        %v2361 = vunpack.c.l.b16 %v2322
        %v2362 = vunpack.c.l.b16 %v2323
        %v2363 = vunpack.c.l.b16 %v2324
        %v2364 = vunpack.c.l.b16 %v2325
        %v2365 = vunpack.c.l.b16 %v2326
        %v2366 = vunpack.c.l.b16 %v2327
        %v2367 = vunpack.c.l.b16 %v2328
        %v2368 = vunpack.c.l.b16 %v2329
        %v2369 = vpack.c.b16 %v2354, %v2353
        %v2370 = vpack.c.b16 %v2356, %v2355
        %v2371 = vpack.c.b16 %v2358, %v2357
        %v2372 = vpack.c.b16 %v2360, %v2359
        %v2373 = vpack.c.b16 %v2362, %v2361
        %v2374 = vpack.c.b16 %v2364, %v2363
        %v2375 = vpack.c.b16 %v2366, %v2365
        %v2376 = vpack.c.b16 %v2368, %v2367
        %2385 = vmatprep.subr.bf16.mxu0 0
        %2386 = vmatpush1.bf16.msra.mxu0 %v2369
        %2387 = vmatprep.subr.bf16.mxu0 0
        %2388 = vmatpush1.bf16.msra.mxu0 %v2370
        %2389 = vmatprep.subr.bf16.mxu0 0
        %2390 = vmatpush1.bf16.msra.mxu0 %v2371
        %2391 = vmatprep.subr.bf16.mxu0 0
        %2392 = vmatpush1.bf16.msra.mxu0 %v2372
        %2393 = vmatprep.subr.bf16.mxu0 0
        %2394 = vmatpush1.bf16.msra.mxu0 %v2373
        %2395 = vmatprep.subr.bf16.mxu0 0
        %2396 = vmatpush1.bf16.msra.mxu0 %v2374
        %2397 = vmatprep.subr.bf16.mxu0 0
        %2398 = vmatpush1.bf16.msra.mxu0 %v2375
        %2399 = vmatprep.subr.bf16.mxu0 0
        %2400 = vmatpush1.bf16.msra.mxu0 %v2376
        %2401 = vmatprep.subr.bf16.mxu0 0
        %2402 = vmatpush1.bf16.msra.mxu0 0
        %2403 = vmatprep.subr.bf16.mxu0 0
        %2404 = vmatpush1.bf16.msra.mxu0 0
        %2405 = vmatprep.subr.bf16.mxu0 0
        %2406 = vmatpush1.bf16.msra.mxu0 0
        %2407 = vmatprep.subr.bf16.mxu0 0
        %2408 = vmatpush1.bf16.msra.mxu0 0
        %2409 = vmatprep.subr.bf16.mxu0 0
        %2410 = vmatpush1.bf16.msra.mxu0 0
        %2411 = vmatprep.subr.bf16.mxu0 0
        %2412 = vmatpush1.bf16.msra.mxu0 0
        %2413 = vmatprep.subr.bf16.mxu0 0
        %2414 = vmatpush1.bf16.msra.mxu0 0
        %2415 = vmatprep.subr.bf16.mxu0 0
        %2416 = vmatpush1.bf16.msra.mxu0 0
        %2417 = vmatprep.mubr.bf16.mxu0 0
        %2418 = vmatmul.mubr.bf16.gmra.mrb[0].mxu0 %v2313
        %v2419 = vpop.f32.mrb[0].mxu0
        %v2420 = vadd.f32 %v2335, %v2419
        %v2421 = vpop.f32.mrb[0].mxu0
        %v2422 = vpop.f32.mrb[0].mxu0
        %v2423 = vadd.f32 %v2335, %v2422
        %v2424 = vpop.f32.mrb[0].mxu0
        %2425 = vdwg.mxu0
        %v2426 = vadd.f32 %v2183, %v2420
        %v2427 = vadd.f32 %v2184, %v2423
        %2428 = vst.msk [vmem:[#allocation2] sm:$0xff] %vm1026, %v2426
        %2429 = vst.msk [vmem:[#allocation2 + $0x8] sm:$0xff] %vm1026, %v2427
        %p2430 = scmp.eq.s32.totalorder %s42, 1
        // Predicated region
        $region161: #{tpu_custom_call.1} parent=87 // pred_check
          %p2431 = pneg %p2430
        $region162: #{tpu_custom_call.1} parent=87 // pred_check_branch
          %2433 = sbr.rel (%p2431) target = $region164
        $region163: #{tpu_custom_call.1} parent=87 // pred_region
          %s2434 = smul.u32 %s41, 2
          %s2435 = sld [smem:[#allocation6 + %s2434]]
          %s2436 = scalar_lea.vmem [#allocation2], %s2435
          %v2437 = vld [vmem:[%s2436] sm:$0x1]
          %s2438 = sadd.s32 %s2434, 1
          %s2439 = sld [smem:[#allocation6 + %s2438]]
          %s2440 = sadd.s32 %s2439, 8
          %s2441 = scalar_lea.vmem [#allocation2], %s2440
          %v2442 = vld [vmem:[%s2441] sm:$0x1]
          %v2444 = vrot.slane %v2442, 7
          %vm2446 = vcmask 1040384
          %v2447 = vsel %vm2446, %v2437, %v2444
          %v2448 = vld [vmem:[#allocation24] sm:$0x1]
          %v2449 = vld [vmem:[#allocation25] sm:$0x1]
          %vm2450 = vcmask 254976
          %v2451 = vsel %vm2450, %v2447, 0.0
          %2452 = vadd.xlane.f32.xlu0 %v2451
          %v2453 = vpop.xlane.xlu0 %2452
          %v2454 = vmul.f32 %v2453, %v1033
          %v2455 = vsub.f32 %v2447, %v2454
          %v2456 = vmul.f32 %v2455, %v2455
          %v2457 = vsel %vm2450, %v2456, 0.0
          %2458 = vadd.xlane.f32.xlu0 %v2457
          %v2459 = vpop.xlane.xlu0 %2458
          %v2460 = vmul.f32 %v2459, %v1033
          %v2461 = vadd.f32 %v2460, 1e-05
          %v2462 = vrsqrt.pop %v2461
          %v2463 = vmul.f32 %v2455, %v2462
          %v2465 = vlaneseq
          %v2466 = vshrl.u32 %v2465, 7
          %v2467 = vsub.s32 0, %v2466
          %v2468 = vrot.slane %v2448, %v2467
          %v2470 = vmul.f32 %v2463, %v2468
          %v2472 = vlaneseq
          %v2473 = vshrl.u32 %v2472, 7
          %v2474 = vsub.s32 0, %v2473
          %v2475 = vrot.slane %v2449, %v2474
          %v2477 = vadd.f32 %v2470, %v2475
          %v2478 = vpack.c.bf16 %v2477, %v2477
          %v2479 = vld [vmem:[#allocation27] sm:$0xf]
          %v2480 = vld [vmem:[#allocation27 + $0x4] sm:$0xf]
          %v2481 = vld [vmem:[#allocation27 + $0x8] sm:$0xf]
          %v2482 = vld [vmem:[#allocation27 + $0xc] sm:$0xf]
          %v2487 = vunpack.c.l.b16 %v2479
          %v2488 = vunpack.c.l.b16 %v2480
          %v2489 = vunpack.c.l.b16 %v2481
          %v2490 = vunpack.c.l.b16 %v2482
          %v2491 = vpack.c.b16 %v2488, %v2487
          %v2492 = vpack.c.b16 %v2490, %v2489
          %v2496 = vsel %vm1026, %v2478, 0
          %2498 = vmatprep.subr.bf16.mxu0 0
          %2499 = vmatpush1.bf16.msra.mxu0 %v2491
          %2500 = vmatprep.subr.bf16.mxu0 0
          %2501 = vmatpush1.bf16.msra.mxu0 %v2492
          %2502 = vmatprep.subr.bf16.mxu0 0
          %2503 = vmatpush1.bf16.msra.mxu0 0
          %2504 = vmatprep.subr.bf16.mxu0 0
          %2505 = vmatpush1.bf16.msra.mxu0 0
          %2506 = vmatprep.subr.bf16.mxu0 0
          %2507 = vmatpush1.bf16.msra.mxu0 0
          %2508 = vmatprep.subr.bf16.mxu0 0
          %2509 = vmatpush1.bf16.msra.mxu0 0
          %2510 = vmatprep.subr.bf16.mxu0 0
          %2511 = vmatpush1.bf16.msra.mxu0 0
          %2512 = vmatprep.subr.bf16.mxu0 0
          %2513 = vmatpush1.bf16.msra.mxu0 0
          %2514 = vmatprep.subr.bf16.mxu0 0
          %2515 = vmatpush1.bf16.msra.mxu0 0
          %2516 = vmatprep.subr.bf16.mxu0 0
          %2517 = vmatpush1.bf16.msra.mxu0 0
          %2518 = vmatprep.subr.bf16.mxu0 0
          %2519 = vmatpush1.bf16.msra.mxu0 0
          %2520 = vmatprep.subr.bf16.mxu0 0
          %2521 = vmatpush1.bf16.msra.mxu0 0
          %2522 = vmatprep.subr.bf16.mxu0 0
          %2523 = vmatpush1.bf16.msra.mxu0 0
          %2524 = vmatprep.subr.bf16.mxu0 0
          %2525 = vmatpush1.bf16.msra.mxu0 0
          %2526 = vmatprep.subr.bf16.mxu0 0
          %2527 = vmatpush1.bf16.msra.mxu0 0
          %2528 = vmatprep.subr.bf16.mxu0 0
          %2529 = vmatpush1.bf16.msra.mxu0 0
          %2530 = vmatprep.mubr.bf16.mxu0 0
          %2531 = vmatmul.mubr.bf16.gmra.mrb[0].mxu0 %v2496
          %v2532 = vpop.f32.mrb[0].mxu0
          %v2533 = vadd.f32 0.0, %v2532
          %v2534 = vpop.f32.mrb[0].mxu0
          %v2535 = vpop.f32.mrb[0].mxu0
          %v2536 = vpop.f32.mrb[0].mxu0
          %2537 = vdwg.mxu0
          %vm2538 = vcmask 123904
          %2539 = vst.msk [vmem:[#allocation28] sm:$0x3] %vm2538, %v2533
        $region164: #{tpu_custom_call.1} parent=87 // pred_fallthru
          _
        // Predicated region
        $region165: #{tpu_custom_call.1} parent=87 // pred_check
          %p2540 = pneg %p489
        $region166: #{tpu_custom_call.1} parent=87 // pred_check_branch
          %2542 = sbr.rel (%p2540) target = $region168
        $region167: #{tpu_custom_call.1} parent=87 // pred_region
          %s2544 = ssub.s32 32, 32
          %2545 = vsyncadd [#allocation9], %s2544
          %s2546 = smul.addr %s41, 32
          %s2547 = scalar_lea.hbm %s18, %s2546
          %s2549 = sshll.u32 [#allocation28], 4
          %s2550 = int_to_ptr.vmem [resolvable:$true] %s2549
          %2552 = dma.vmem_to_hbm [thread:$0]  %s2550, 32, %s2547, [#allocation9]
        $region168: #{tpu_custom_call.1} parent=87 // pred_fallthru
          _
        // Predicated region
        $region169: #{tpu_custom_call.1} parent=87 // pred_check
          %p2553 = pneg %p489
        $region170: #{tpu_custom_call.1} parent=87 // pred_check_branch
          %2555 = sbr.rel (%p2553) target = $region172
        $region171: #{tpu_custom_call.1} parent=87 // pred_region
          %2556 = dma.done [#allocation9], 32
        $region172: #{tpu_custom_call.1} parent=87 // pred_fallthru
          _
      $region88: #{tpu_custom_call.1} parent=5 // pred_fallthru
        _
      %p2557 = scmp.le.s32.totalorder 2, %s32
      // Predicated region
      $region173: #{tpu_custom_call.1} parent=5 // pred_check
        %p2558 = pneg %p2557
      $region174: #{tpu_custom_call.1} parent=5 // pred_check_branch
        %2560 = sbr.rel (%p2558) target = $region176
      $region175: #{tpu_custom_call.1} parent=5 // pred_region
        %s2561 = ssub.s32 %s32, 2
      $region176: #{tpu_custom_call.1} parent=5 // pred_fallthru
        _
    $region6: #{tpu_custom_call.1} parent=1 // loop_footer
      %s36 = sadd.s32 1, %s32
    $region7: #{tpu_custom_call.1} parent=1 // loop_footer_branch
      %31 = sbr.rel target = $region3
    $region8: #{tpu_custom_call.1} parent=1 // loop_exit
      _
    %2562 = vsyncpa [#allocation8], 1
    %s2563 = scalar_lea.sflag [#allocation8], 1
    %2564 = vsyncpa %s2563, 1
    %2565 = vsyncpa [#allocation11], 1
    %2566 = vsyncpa [#allocation26], 1
    %2567 = vsyncpa [#allocation9], 1
    %s2568 = scalar_lea.sflag [#allocation9], 1
    %2569 = vsyncpa %s2568, 1

</llo_original>
